<compile_context>
chip_gen: v6e
topology: v6e:2x2x1
jax: 0.10.0
libtpu: 0.0.40
codegen_flags: <defaults>
</compile_context>

<pallas_src>
import jax
import jax.numpy as jnp
from jax.experimental import pallas as pl
from jax.experimental.pallas import tpu as pltpu

NEG_SLOPE = 0.01   # torch.nn.LeakyReLU default
TILE_N = 512       # batch tile (lane dim); (512, TILE_N) f32 activation = 1 MiB


def _leaky_relu(x):
    # max(x, a*x) == leaky_relu(x) for 0 < a < 1: one mul + one max on the VPU.
    return jnp.maximum(x, NEG_SLOPE * x)


def kernelnet_kernel(t_ref, w1t_ref, b1_ref, w2t_ref, b2_ref,
                     w3t_ref, b3_ref, w4c_ref, b4_ref, o_ref):
    t = t_ref[...]                                            # (1, T) f32

    # Layer 1: Linear(1, 128). K == 1 -> outer-product broadcast (VPU).
    h = _leaky_relu(w1t_ref[...] * t + b1_ref[...])           # (128,1)*(1,T) -> (128,T)

    # Layer 2: Linear(128, 512) -- MXU, bf16 operands, f32 accumulation.
    h = jnp.dot(w2t_ref[...], h.astype(jnp.bfloat16),
                preferred_element_type=jnp.float32) + b2_ref[...]   # (512, T)
    h = _leaky_relu(h)

    # Layer 3: Linear(512, 128) -- MXU, bf16 operands, f32 accumulation.
    h = jnp.dot(w3t_ref[...], h.astype(jnp.bfloat16),
                preferred_element_type=jnp.float32) + b3_ref[...]   # (128, T)
    h = _leaky_relu(h)

    # Layer 4: Linear(128, 1). Output dim == 1 -> sublane reduction (XLU),
    # scalar bias read from SMEM.  Result is a lane-dense (1, T) row.
    o_ref[...] = (jnp.sum(w4c_ref[...] * h, axis=0, keepdims=True)
                  + b4_ref[0, 0])


def kernelnet_forward(t, params, tile_n=TILE_N):
    """t: (N, 1) float32 -> (N, 1) float32."""
    n = t.shape[0]
    n_pad = ((n + tile_n - 1) // tile_n) * tile_n

    # Lane-dense input row (1, N_pad); zero-padded columns are sliced off below.
    t_row = t.reshape(1, n)
    if n_pad != n:
        t_row = jnp.pad(t_row, ((0, 0), (0, n_pad - n)))

    f32, bf16 = jnp.float32, jnp.bfloat16
    w1t = params["w1"].astype(f32).T                 # (128, 1)
    b1c = params["b1"].astype(f32).reshape(-1, 1)    # (128, 1)
    w2t = params["w2"].T.astype(bf16)                # (512, 128)  bf16 for MXU
    b2c = params["b2"].astype(f32).reshape(-1, 1)    # (512, 1)
    w3t = params["w3"].T.astype(bf16)                # (128, 512)  bf16 for MXU
    b3c = params["b3"].astype(f32).reshape(-1, 1)    # (128, 1)
    w4c = params["w4"].astype(f32).reshape(-1, 1)    # (128, 1)
    b4 = params["b4"].astype(f32).reshape(1, 1)      # (1, 1) scalar -> SMEM

    def const(shape):
        # Weights/biases: same block every grid step -> resident in VMEM.
        return pl.BlockSpec(shape, lambda i: (0, 0))

    out = pl.pallas_call(
        kernelnet_kernel,
        out_shape=jax.ShapeDtypeStruct((1, n_pad), jnp.float32),
        grid=(n_pad // tile_n,),
        in_specs=[
            pl.BlockSpec((1, tile_n), lambda i: (0, i)),        # t (tiled)
            const(w1t.shape), const(b1c.shape),
            const(w2t.shape), const(b2c.shape),
            const(w3t.shape), const(b3c.shape),
            const(w4c.shape),
            pl.BlockSpec(memory_space=pltpu.MemorySpace.SMEM),  # b4 scalar
        ],
        out_specs=pl.BlockSpec((1, tile_n), lambda i: (0, i)),
        compiler_params=pltpu.CompilerParams(
            dimension_semantics=("parallel",),   # megacore sharding on v7x
            vmem_limit_bytes=32 * 1024 * 1024,   # explicit, safe on v5e/v6e/v7x
        ),
    )(t_row, w1t, b1c, w2t, b2c, w3t, b3c, w4c, b4)

    return out[0, :n].reshape(n, 1)


def init_params(key):
    """Deterministic init matching KernelNet's layer shapes (torch-style uniform)."""
    dims = [(1, 128), (128, 512), (512, 128), (128, 1)]
    params = {}
    for idx, (fan_in, fan_out) in enumerate(dims, start=1):
        key, kw, kb = jax.random.split(key, 3)
        bound = 1.0 / jnp.sqrt(fan_in)
        params[f"w{idx}"] = jax.random.uniform(
            kw, (fan_in, fan_out), jnp.float32, -bound, bound)
        params[f"b{idx}"] = jax.random.uniform(
            kb, (fan_out,), jnp.float32, -bound, bound)
    return params


def kernelnet_ref(t, params):
    """Pure-f32 JAX reference of the PyTorch forward pass."""
    h = t
    for idx in range(1, 5):
        h = h @ params[f"w{idx}"] + params[f"b{idx}"]
        if idx < 4:
            h = jnp.where(h > 0, h, NEG_SLOPE * h)
    return h


if __name__ == "__main__":
    key = jax.random.PRNGKey(0)
    kp, kt = jax.random.split(key)
    params = init_params(kp)

    # Small example input: seq=8 scalar time samples -> (8, 1).
    t = jax.random.normal(kt, (8, 1), jnp.float32)

    out = kernelnet_forward(t, params)
    out = jax.block_until_ready(out)

    ref = kernelnet_ref(t, params)
    assert out.shape == (8, 1)
    # Tolerance loosened vs. the all-f32 version: layers 2/3 use bf16 operands
    # (f32 accumulation) on the MXU.
    assert jnp.allclose(out, ref, atol=5e-2, rtol=5e-2), "mismatch vs reference"

    print("KERNEL_OK")
</pallas_src>

<mosaic_0001>
module attributes {stable_mosaic.version = 11 : i64} {
  func.func @kernelnet_kernel(%arg0: i32, %arg1: memref<1x512xf32, #tpu.memory_space<vmem>>, %arg2: memref<128x1xf32, #tpu.memory_space<vmem>>, %arg3: memref<128x1xf32, #tpu.memory_space<vmem>>, %arg4: memref<512x128xbf16, #tpu.memory_space<vmem>>, %arg5: memref<512x1xf32, #tpu.memory_space<vmem>>, %arg6: memref<128x512xbf16, #tpu.memory_space<vmem>>, %arg7: memref<128x1xf32, #tpu.memory_space<vmem>>, %arg8: memref<128x1xf32, #tpu.memory_space<vmem>>, %arg9: memref<1x1xf32, #tpu.memory_space<smem>>, %arg10: memref<1x512xf32, #tpu.memory_space<vmem>>) attributes {dimension_semantics = [#tpu.dimension_semantics<parallel>], iteration_bounds = array<i64: 1>, scalar_prefetch = 0 : i64, scratch_operands = 0 : i64, tpu.core_type = #tpu.core_type<tc>, window_params = [{transform_indices = @transform_0, window_bounds = array<i64: 1, 512>}, {pipeline_mode = #tpu.pipeline_mode<synchronous>, transform_indices = @transform_1, window_bounds = array<i64: 128, 1>}, {pipeline_mode = #tpu.pipeline_mode<synchronous>, transform_indices = @transform_2, window_bounds = array<i64: 128, 1>}, {pipeline_mode = #tpu.pipeline_mode<synchronous>, transform_indices = @transform_3, window_bounds = array<i64: 512, 128>}, {pipeline_mode = #tpu.pipeline_mode<synchronous>, transform_indices = @transform_4, window_bounds = array<i64: 512, 1>}, {pipeline_mode = #tpu.pipeline_mode<synchronous>, transform_indices = @transform_5, window_bounds = array<i64: 128, 512>}, {pipeline_mode = #tpu.pipeline_mode<synchronous>, transform_indices = @transform_6, window_bounds = array<i64: 128, 1>}, {pipeline_mode = #tpu.pipeline_mode<synchronous>, transform_indices = @transform_7, window_bounds = array<i64: 128, 1>}, {transform_indices = @transform_8, window_bounds = array<i64: 1, 1>}, {transform_indices = @transform_9, window_bounds = array<i64: 1, 512>}]} {
    %c0 = arith.constant 0 : index
    %c0_0 = arith.constant 0 : index
    %0 = vector.load %arg1[%c0, %c0_0] : memref<1x512xf32, #tpu.memory_space<vmem>>, vector<1x512xf32>
    %c0_1 = arith.constant 0 : index
    %c0_2 = arith.constant 0 : index
    %1 = vector.load %arg2[%c0_1, %c0_2] : memref<128x1xf32, #tpu.memory_space<vmem>>, vector<128x1xf32>
    %2 = vector.broadcast %1 : vector<128x1xf32> to vector<128x512xf32>
    %3 = vector.broadcast %0 : vector<1x512xf32> to vector<128x512xf32>
    %4 = arith.mulf %2, %3 : vector<128x512xf32>
    %c0_3 = arith.constant 0 : index
    %c0_4 = arith.constant 0 : index
    %5 = vector.load %arg3[%c0_3, %c0_4] : memref<128x1xf32, #tpu.memory_space<vmem>>, vector<128x1xf32>
    %6 = vector.broadcast %5 : vector<128x1xf32> to vector<128x512xf32>
    %7 = arith.addf %4, %6 : vector<128x512xf32>
    %cst = arith.constant 0.00999999977 : f32
    %8 = vector.broadcast %cst : f32 to vector<128x512xf32>
    %9 = arith.mulf %8, %7 : vector<128x512xf32>
    %10 = arith.maximumf %7, %9 : vector<128x512xf32>
    %c0_5 = arith.constant 0 : index
    %c0_6 = arith.constant 0 : index
    %11 = vector.load %arg4[%c0_5, %c0_6] : memref<512x128xbf16, #tpu.memory_space<vmem>>, vector<512x128xbf16>
    %12 = arith.truncf %10 : vector<128x512xf32> to vector<128x512xbf16>
    %cst_7 = arith.constant dense<0.000000e+00> : vector<512x512xf32>
    %13 = tpu.matmul %11, %12, %cst_7 {dimension_numbers = #tpu.dot_dimension_numbers<[1], [0], [0], [1], [0, 0, 1, 1], [], []>} : vector<512x128xbf16>, vector<128x512xbf16>, vector<512x512xf32> -> vector<512x512xf32>
    %c0_8 = arith.constant 0 : index
    %c0_9 = arith.constant 0 : index
    %14 = vector.load %arg5[%c0_8, %c0_9] : memref<512x1xf32, #tpu.memory_space<vmem>>, vector<512x1xf32>
    %15 = vector.broadcast %14 : vector<512x1xf32> to vector<512x512xf32>
    %16 = arith.addf %13, %15 : vector<512x512xf32>
    %cst_10 = arith.constant 0.00999999977 : f32
    %17 = vector.broadcast %cst_10 : f32 to vector<512x512xf32>
    %18 = arith.mulf %17, %16 : vector<512x512xf32>
    %19 = arith.maximumf %16, %18 : vector<512x512xf32>
    %c0_11 = arith.constant 0 : index
    %c0_12 = arith.constant 0 : index
    %20 = vector.load %arg6[%c0_11, %c0_12] : memref<128x512xbf16, #tpu.memory_space<vmem>>, vector<128x512xbf16>
    %21 = arith.truncf %19 : vector<512x512xf32> to vector<512x512xbf16>
    %cst_13 = arith.constant dense<0.000000e+00> : vector<128x512xf32>
    %22 = tpu.matmul %20, %21, %cst_13 {dimension_numbers = #tpu.dot_dimension_numbers<[1], [0], [0], [1], [0, 0, 1, 1], [], []>} : vector<128x512xbf16>, vector<512x512xbf16>, vector<128x512xf32> -> vector<128x512xf32>
    %c0_14 = arith.constant 0 : index
    %c0_15 = arith.constant 0 : index
    %23 = vector.load %arg7[%c0_14, %c0_15] : memref<128x1xf32, #tpu.memory_space<vmem>>, vector<128x1xf32>
    %24 = vector.broadcast %23 : vector<128x1xf32> to vector<128x512xf32>
    %25 = arith.addf %22, %24 : vector<128x512xf32>
    %cst_16 = arith.constant 0.00999999977 : f32
    %26 = vector.broadcast %cst_16 : f32 to vector<128x512xf32>
    %27 = arith.mulf %26, %25 : vector<128x512xf32>
    %28 = arith.maximumf %25, %27 : vector<128x512xf32>
    %c0_17 = arith.constant 0 : index
    %c0_18 = arith.constant 0 : index
    %29 = vector.load %arg8[%c0_17, %c0_18] : memref<128x1xf32, #tpu.memory_space<vmem>>, vector<128x1xf32>
    %30 = vector.broadcast %29 : vector<128x1xf32> to vector<128x512xf32>
    %31 = arith.mulf %30, %28 : vector<128x512xf32>
    %cst_19 = arith.constant dense<0.000000e+00> : vector<512xf32>
    %32 = vector.multi_reduction <add>, %31, %cst_19 [0] : vector<128x512xf32> to vector<512xf32>
    %33 = vector.shape_cast %32 : vector<512xf32> to vector<1x512xf32>
    %c0_20 = arith.constant 0 : index
    %c0_21 = arith.constant 0 : index
    %34 = memref.load %arg9[%c0_20, %c0_21] : memref<1x1xf32, #tpu.memory_space<smem>>
    %35 = vector.broadcast %34 : f32 to vector<1x512xf32>
    %36 = arith.addf %33, %35 : vector<1x512xf32>
    %c0_22 = arith.constant 0 : index
    %c0_23 = arith.constant 0 : index
    %37 = vector.load %arg10[%c0_22, %c0_23] : memref<1x512xf32, #tpu.memory_space<vmem>>, vector<1x512xf32>
    tpu.vector_store %arg10[%c0_22, %c0_23], %36 {strides = array<i32>} : memref<1x512xf32, #tpu.memory_space<vmem>>, vector<1x512xf32>,
    return
  }
  func.func @transform_0(%arg0: i32) -> (i32, i32) {
    %c0_i32 = arith.constant 0 : i32
    %c0_i32_0 = arith.constant 0 : i32
    return %c0_i32, %arg0 : i32, i32
  }
  func.func @transform_1(%arg0: i32) -> (i32, i32) {
    %c0_i32 = arith.constant 0 : i32
    %c0_i32_0 = arith.constant 0 : i32
    %c0_i32_1 = arith.constant 0 : i32
    return %c0_i32, %c0_i32_0 : i32, i32
  }
  func.func @transform_2(%arg0: i32) -> (i32, i32) {
    %c0_i32 = arith.constant 0 : i32
    %c0_i32_0 = arith.constant 0 : i32
    %c0_i32_1 = arith.constant 0 : i32
    return %c0_i32, %c0_i32_0 : i32, i32
  }
  func.func @transform_3(%arg0: i32) -> (i32, i32) {
    %c0_i32 = arith.constant 0 : i32
    %c0_i32_0 = arith.constant 0 : i32
    %c0_i32_1 = arith.constant 0 : i32
    return %c0_i32, %c0_i32_0 : i32, i32
  }
  func.func @transform_4(%arg0: i32) -> (i32, i32) {
    %c0_i32 = arith.constant 0 : i32
    %c0_i32_0 = arith.constant 0 : i32
    %c0_i32_1 = arith.constant 0 : i32
    return %c0_i32, %c0_i32_0 : i32, i32
  }
  func.func @transform_5(%arg0: i32) -> (i32, i32) {
    %c0_i32 = arith.constant 0 : i32
    %c0_i32_0 = arith.constant 0 : i32
    %c0_i32_1 = arith.constant 0 : i32
    return %c0_i32, %c0_i32_0 : i32, i32
  }
  func.func @transform_6(%arg0: i32) -> (i32, i32) {
    %c0_i32 = arith.constant 0 : i32
    %c0_i32_0 = arith.constant 0 : i32
    %c0_i32_1 = arith.constant 0 : i32
    return %c0_i32, %c0_i32_0 : i32, i32
  }
  func.func @transform_7(%arg0: i32) -> (i32, i32) {
    %c0_i32 = arith.constant 0 : i32
    %c0_i32_0 = arith.constant 0 : i32
    %c0_i32_1 = arith.constant 0 : i32
    return %c0_i32, %c0_i32_0 : i32, i32
  }
  func.func @transform_8(%arg0: i32) -> (i32, i32) {
    %c0_i32 = arith.constant 0 : i32
    %c0_i32_0 = arith.constant 0 : i32
    %c0_i32_1 = arith.constant 0 : i32
    return %c0_i32, %c0_i32_0 : i32, i32
  }
  func.func @transform_9(%arg0: i32) -> (i32, i32) {
    %c0_i32 = arith.constant 0 : i32
    %c0_i32_0 = arith.constant 0 : i32
    return %c0_i32, %arg0 : i32, i32
  }
}

</mosaic_0001>

<llo_original>
// kernel: tpu_custom_call.1
$region0: #{tpu_custom_call.1}
  #allocation0 [shape = 'u32[]', space=smem, size = 0x4, offset = 0x4, fixed_abs, tag = 'smem constant byte address 0x4 - core index']
  #allocation1 [shape = 'u32[144,128]{1,0:T(1,128)}', space=vmem, size = 0x12000, scoped, tag = 'internal scratch']
  #allocation2 [shape = 'f32[1,1]{1,0:T(1,128)S(6)}', space=smem, size = 0x200, scoped, tag = 'scoped memory for tpu_custom_call.1']
  %s0 = inlined_call_operand.vmem [shape: f32[1,512], index: 0, kind: input, shape index: {}]
  %s1 = inlined_call_operand.vmem [shape: f32[128,1], index: 1, kind: input, shape index: {}]
  %s2 = inlined_call_operand.vmem [shape: f32[128,1], index: 2, kind: input, shape index: {}]
  %s3 = inlined_call_operand.vmem [shape: bf16[512,128], index: 3, kind: input, shape index: {}]
  %s4 = inlined_call_operand.vmem [shape: f32[512,1], index: 4, kind: input, shape index: {}]
  %s5 = inlined_call_operand.vmem [shape: bf16[128,512], index: 5, kind: input, shape index: {}]
  %s6 = inlined_call_operand.vmem [shape: f32[128,1], index: 6, kind: input, shape index: {}]
  %s7 = inlined_call_operand.vmem [shape: f32[128,1], index: 7, kind: input, shape index: {}]
  %s8 = inlined_call_operand.<no memory space> [shape: f32[1,1], index: 8, kind: input, shape index: {}]
  %s9 = inlined_call_operand.hbm [shape: f32[1,512], index: 9, kind: output, shape index: {}]
  %s10 = sld [smem:[#allocation0]]
  $region46: #{tpu_custom_call.1} parent=0
    _
  %s12 = ssub.s32 1, %s10
  %s13 = scalar_select 0, %s12, %s10
  %14 = sst [smem:[#allocation2]] %s8
  $region1: #{tpu_custom_call.1} parent=0
    #allocation3 [shape = 'u8[2048]{0}', space=vmem, size = 0x800, scoped, tag = 'output window, operand 0, single buffered']
    #allocation4 [shape = 's32[1]{0}', space=sflag, size = 0x4, scoped, tag = 'scoped memory for tpu_custom_call.1']
    %15 = vsyncpa [#allocation4], 0
    // Predicated region
    $region2: #{tpu_custom_call.1} parent=1 // pred_check
      _
    $region3: #{tpu_custom_call.1} parent=1 // pred_check_branch
      %17 = sbr.rel (0) target = $region5
    $region4: #{tpu_custom_call.1} parent=1 // pred_region
      _
    $region5: #{tpu_custom_call.1} parent=1 // pred_fallthru
      _
    // Predicated region
    $region6: #{tpu_custom_call.1} parent=1 // pred_check
      _
    $region7: #{tpu_custom_call.1} parent=1 // pred_check_branch
      %19 = sbr.rel (0) target = $region9
    $region8: #{tpu_custom_call.1} parent=1 // pred_region
      _
    $region9: #{tpu_custom_call.1} parent=1 // pred_fallthru
      _
    // Predicated region
    $region10: #{tpu_custom_call.1} parent=1 // pred_check
      _
    $region11: #{tpu_custom_call.1} parent=1 // pred_check_branch
      %21 = sbr.rel (0) target = $region13
    $region12: #{tpu_custom_call.1} parent=1 // pred_region
      _
    $region13: #{tpu_custom_call.1} parent=1 // pred_fallthru
      _
    // Predicated region
    $region14: #{tpu_custom_call.1} parent=1 // pred_check
      _
    $region15: #{tpu_custom_call.1} parent=1 // pred_check_branch
      %23 = sbr.rel (0) target = $region17
    $region16: #{tpu_custom_call.1} parent=1 // pred_region
      _
    $region17: #{tpu_custom_call.1} parent=1 // pred_fallthru
      _
    // Predicated region
    $region18: #{tpu_custom_call.1} parent=1 // pred_check
      _
    $region19: #{tpu_custom_call.1} parent=1 // pred_check_branch
      %25 = sbr.rel (0) target = $region21
    $region20: #{tpu_custom_call.1} parent=1 // pred_region
      _
    $region21: #{tpu_custom_call.1} parent=1 // pred_fallthru
      _
    // Predicated region
    $region22: #{tpu_custom_call.1} parent=1 // pred_check
      _
    $region23: #{tpu_custom_call.1} parent=1 // pred_check_branch
      %27 = sbr.rel (0) target = $region25
    $region24: #{tpu_custom_call.1} parent=1 // pred_region
      _
    $region25: #{tpu_custom_call.1} parent=1 // pred_fallthru
      _
    // Predicated region
    $region26: #{tpu_custom_call.1} parent=1 // pred_check
      _
    $region27: #{tpu_custom_call.1} parent=1 // pred_check_branch
      %29 = sbr.rel (0) target = $region29
    $region28: #{tpu_custom_call.1} parent=1 // pred_region
      _
    $region29: #{tpu_custom_call.1} parent=1 // pred_fallthru
      _
    // Predicated region
    $region30: #{tpu_custom_call.1} parent=1 // pred_check
      _
    $region31: #{tpu_custom_call.1} parent=1 // pred_check_branch
      %31 = sbr.rel (0) target = $region33
    $region32: #{tpu_custom_call.1} parent=1 // pred_region
      _
    $region33: #{tpu_custom_call.1} parent=1 // pred_fallthru
      _
    // Predicated region
    $region34: #{tpu_custom_call.1} parent=1 // pred_check
      _
    $region35: #{tpu_custom_call.1} parent=1 // pred_check_branch
      %33 = sbr.rel (0) target = $region37
    $region36: #{tpu_custom_call.1} parent=1 // pred_region
      _
    $region37: #{tpu_custom_call.1} parent=1 // pred_fallthru
      _
    %v35 = vld [vmem:[%s0] sm:$0xf]
    %v36 = vld [vmem:[%s1] sm:$0xff]
    %v37 = vld [vmem:[%s1 + $0x8] sm:$0xff]
    %v38 = vld [vmem:[%s1 + $0x10] sm:$0xff]
    %v39 = vld [vmem:[%s1 + $0x18] sm:$0xff]
    %v40 = vld [vmem:[%s1 + $0x20] sm:$0xff]
    %v41 = vld [vmem:[%s1 + $0x28] sm:$0xff]
    %v42 = vld [vmem:[%s1 + $0x30] sm:$0xff]
    %v43 = vld [vmem:[%s1 + $0x38] sm:$0xff]
    %v44 = vld [vmem:[%s1 + $0x40] sm:$0xff]
    %v45 = vld [vmem:[%s1 + $0x48] sm:$0xff]
    %v46 = vld [vmem:[%s1 + $0x50] sm:$0xff]
    %v47 = vld [vmem:[%s1 + $0x58] sm:$0xff]
    %v48 = vld [vmem:[%s1 + $0x60] sm:$0xff]
    %v49 = vld [vmem:[%s1 + $0x68] sm:$0xff]
    %v50 = vld [vmem:[%s1 + $0x70] sm:$0xff]
    %v51 = vld [vmem:[%s1 + $0x78] sm:$0xff]
    %53 = vset.pattern.permute.xlu0 0
    %54 = vperm.xlu0 %53, %v36
    %v55 = vpop.permute.xlu0 %54
    %58 = vset.pattern.permute.xlu0 0
    %59 = vperm.xlu0 %58, %v37
    %v60 = vpop.permute.xlu0 %59
    %63 = vset.pattern.permute.xlu0 0
    %64 = vperm.xlu0 %63, %v38
    %v65 = vpop.permute.xlu0 %64
    %68 = vset.pattern.permute.xlu0 0
    %69 = vperm.xlu0 %68, %v39
    %v70 = vpop.permute.xlu0 %69
    %73 = vset.pattern.permute.xlu0 0
    %74 = vperm.xlu0 %73, %v40
    %v75 = vpop.permute.xlu0 %74
    %78 = vset.pattern.permute.xlu0 0
    %79 = vperm.xlu0 %78, %v41
    %v80 = vpop.permute.xlu0 %79
    %83 = vset.pattern.permute.xlu0 0
    %84 = vperm.xlu0 %83, %v42
    %v85 = vpop.permute.xlu0 %84
    %88 = vset.pattern.permute.xlu0 0
    %89 = vperm.xlu0 %88, %v43
    %v90 = vpop.permute.xlu0 %89
    %93 = vset.pattern.permute.xlu0 0
    %94 = vperm.xlu0 %93, %v44
    %v95 = vpop.permute.xlu0 %94
    %98 = vset.pattern.permute.xlu0 0
    %99 = vperm.xlu0 %98, %v45
    %v100 = vpop.permute.xlu0 %99
    %103 = vset.pattern.permute.xlu0 0
    %104 = vperm.xlu0 %103, %v46
    %v105 = vpop.permute.xlu0 %104
    %108 = vset.pattern.permute.xlu0 0
    %109 = vperm.xlu0 %108, %v47
    %v110 = vpop.permute.xlu0 %109
    %113 = vset.pattern.permute.xlu0 0
    %114 = vperm.xlu0 %113, %v48
    %v115 = vpop.permute.xlu0 %114
    %118 = vset.pattern.permute.xlu0 0
    %119 = vperm.xlu0 %118, %v49
    %v120 = vpop.permute.xlu0 %119
    %123 = vset.pattern.permute.xlu0 0
    %124 = vperm.xlu0 %123, %v50
    %v125 = vpop.permute.xlu0 %124
    %128 = vset.pattern.permute.xlu0 0
    %129 = vperm.xlu0 %128, %v51
    %v130 = vpop.permute.xlu0 %129
    %v133 = vlaneseq
    %v134 = vshrl.u32 %v133, 7
    %v135 = vsub.s32 0, %v134
    %v136 = vrot.slane %v35, %v135
    %v137 = vlaneseq
    %v138 = vshrl.u32 %v137, 7
    %v139 = vsub.s32 1, %v138
    %v140 = vrot.slane %v35, %v139
    %v141 = vlaneseq
    %v142 = vshrl.u32 %v141, 7
    %v143 = vsub.s32 2, %v142
    %v144 = vrot.slane %v35, %v143
    %v145 = vlaneseq
    %v146 = vshrl.u32 %v145, 7
    %v147 = vsub.s32 3, %v146
    %v148 = vrot.slane %v35, %v147
    %v153 = vmul.f32 %v55, %v136
    %v154 = vmul.f32 %v55, %v140
    %v155 = vmul.f32 %v55, %v144
    %v156 = vmul.f32 %v55, %v148
    %v157 = vmul.f32 %v60, %v136
    %v158 = vmul.f32 %v60, %v140
    %v159 = vmul.f32 %v60, %v144
    %v160 = vmul.f32 %v60, %v148
    %v161 = vmul.f32 %v65, %v136
    %v162 = vmul.f32 %v65, %v140
    %v163 = vmul.f32 %v65, %v144
    %v164 = vmul.f32 %v65, %v148
    %v165 = vmul.f32 %v70, %v136
    %v166 = vmul.f32 %v70, %v140
    %v167 = vmul.f32 %v70, %v144
    %v168 = vmul.f32 %v70, %v148
    %v169 = vmul.f32 %v75, %v136
    %v170 = vmul.f32 %v75, %v140
    %v171 = vmul.f32 %v75, %v144
    %v172 = vmul.f32 %v75, %v148
    %v173 = vmul.f32 %v80, %v136
    %v174 = vmul.f32 %v80, %v140
    %v175 = vmul.f32 %v80, %v144
    %v176 = vmul.f32 %v80, %v148
    %v177 = vmul.f32 %v85, %v136
    %v178 = vmul.f32 %v85, %v140
    %v179 = vmul.f32 %v85, %v144
    %v180 = vmul.f32 %v85, %v148
    %v181 = vmul.f32 %v90, %v136
    %v182 = vmul.f32 %v90, %v140
    %v183 = vmul.f32 %v90, %v144
    %v184 = vmul.f32 %v90, %v148
    %v185 = vmul.f32 %v95, %v136
    %v186 = vmul.f32 %v95, %v140
    %v187 = vmul.f32 %v95, %v144
    %v188 = vmul.f32 %v95, %v148
    %v189 = vmul.f32 %v100, %v136
    %v190 = vmul.f32 %v100, %v140
    %v191 = vmul.f32 %v100, %v144
    %v192 = vmul.f32 %v100, %v148
    %v193 = vmul.f32 %v105, %v136
    %v194 = vmul.f32 %v105, %v140
    %v195 = vmul.f32 %v105, %v144
    %v196 = vmul.f32 %v105, %v148
    %v197 = vmul.f32 %v110, %v136
    %v198 = vmul.f32 %v110, %v140
    %v199 = vmul.f32 %v110, %v144
    %v200 = vmul.f32 %v110, %v148
    %v201 = vmul.f32 %v115, %v136
    %v202 = vmul.f32 %v115, %v140
    %v203 = vmul.f32 %v115, %v144
    %v204 = vmul.f32 %v115, %v148
    %v205 = vmul.f32 %v120, %v136
    %v206 = vmul.f32 %v120, %v140
    %v207 = vmul.f32 %v120, %v144
    %v208 = vmul.f32 %v120, %v148
    %v209 = vmul.f32 %v125, %v136
    %v210 = vmul.f32 %v125, %v140
    %v211 = vmul.f32 %v125, %v144
    %v212 = vmul.f32 %v125, %v148
    %v213 = vmul.f32 %v130, %v136
    %v214 = vmul.f32 %v130, %v140
    %v215 = vmul.f32 %v130, %v144
    %v216 = vmul.f32 %v130, %v148
    %v217 = vld [vmem:[%s2] sm:$0xff]
    %v218 = vld [vmem:[%s2 + $0x8] sm:$0xff]
    %v219 = vld [vmem:[%s2 + $0x10] sm:$0xff]
    %v220 = vld [vmem:[%s2 + $0x18] sm:$0xff]
    %v221 = vld [vmem:[%s2 + $0x20] sm:$0xff]
    %v222 = vld [vmem:[%s2 + $0x28] sm:$0xff]
    %v223 = vld [vmem:[%s2 + $0x30] sm:$0xff]
    %v224 = vld [vmem:[%s2 + $0x38] sm:$0xff]
    %v225 = vld [vmem:[%s2 + $0x40] sm:$0xff]
    %v226 = vld [vmem:[%s2 + $0x48] sm:$0xff]
    %v227 = vld [vmem:[%s2 + $0x50] sm:$0xff]
    %v228 = vld [vmem:[%s2 + $0x58] sm:$0xff]
    %v229 = vld [vmem:[%s2 + $0x60] sm:$0xff]
    %v230 = vld [vmem:[%s2 + $0x68] sm:$0xff]
    %v231 = vld [vmem:[%s2 + $0x70] sm:$0xff]
    %v232 = vld [vmem:[%s2 + $0x78] sm:$0xff]
    %234 = vset.pattern.permute.xlu0 0
    %235 = vperm.xlu0 %234, %v217
    %v236 = vpop.permute.xlu0 %235
    %239 = vset.pattern.permute.xlu0 0
    %240 = vperm.xlu0 %239, %v218
    %v241 = vpop.permute.xlu0 %240
    %244 = vset.pattern.permute.xlu0 0
    %245 = vperm.xlu0 %244, %v219
    %v246 = vpop.permute.xlu0 %245
    %249 = vset.pattern.permute.xlu0 0
    %250 = vperm.xlu0 %249, %v220
    %v251 = vpop.permute.xlu0 %250
    %254 = vset.pattern.permute.xlu0 0
    %255 = vperm.xlu0 %254, %v221
    %v256 = vpop.permute.xlu0 %255
    %259 = vset.pattern.permute.xlu0 0
    %260 = vperm.xlu0 %259, %v222
    %v261 = vpop.permute.xlu0 %260
    %264 = vset.pattern.permute.xlu0 0
    %265 = vperm.xlu0 %264, %v223
    %v266 = vpop.permute.xlu0 %265
    %269 = vset.pattern.permute.xlu0 0
    %270 = vperm.xlu0 %269, %v224
    %v271 = vpop.permute.xlu0 %270
    %274 = vset.pattern.permute.xlu0 0
    %275 = vperm.xlu0 %274, %v225
    %v276 = vpop.permute.xlu0 %275
    %279 = vset.pattern.permute.xlu0 0
    %280 = vperm.xlu0 %279, %v226
    %v281 = vpop.permute.xlu0 %280
    %284 = vset.pattern.permute.xlu0 0
    %285 = vperm.xlu0 %284, %v227
    %v286 = vpop.permute.xlu0 %285
    %289 = vset.pattern.permute.xlu0 0
    %290 = vperm.xlu0 %289, %v228
    %v291 = vpop.permute.xlu0 %290
    %294 = vset.pattern.permute.xlu0 0
    %295 = vperm.xlu0 %294, %v229
    %v296 = vpop.permute.xlu0 %295
    %299 = vset.pattern.permute.xlu0 0
    %300 = vperm.xlu0 %299, %v230
    %v301 = vpop.permute.xlu0 %300
    %304 = vset.pattern.permute.xlu0 0
    %305 = vperm.xlu0 %304, %v231
    %v306 = vpop.permute.xlu0 %305
    %309 = vset.pattern.permute.xlu0 0
    %310 = vperm.xlu0 %309, %v232
    %v311 = vpop.permute.xlu0 %310
    %v313 = vadd.f32 %v153, %v236
    %v314 = vadd.f32 %v154, %v236
    %v315 = vadd.f32 %v155, %v236
    %v316 = vadd.f32 %v156, %v236
    %v317 = vadd.f32 %v157, %v241
    %v318 = vadd.f32 %v158, %v241
    %v319 = vadd.f32 %v159, %v241
    %v320 = vadd.f32 %v160, %v241
    %v321 = vadd.f32 %v161, %v246
    %v322 = vadd.f32 %v162, %v246
    %v323 = vadd.f32 %v163, %v246
    %v324 = vadd.f32 %v164, %v246
    %v325 = vadd.f32 %v165, %v251
    %v326 = vadd.f32 %v166, %v251
    %v327 = vadd.f32 %v167, %v251
    %v328 = vadd.f32 %v168, %v251
    %v329 = vadd.f32 %v169, %v256
    %v330 = vadd.f32 %v170, %v256
    %v331 = vadd.f32 %v171, %v256
    %v332 = vadd.f32 %v172, %v256
    %v333 = vadd.f32 %v173, %v261
    %v334 = vadd.f32 %v174, %v261
    %v335 = vadd.f32 %v175, %v261
    %v336 = vadd.f32 %v176, %v261
    %v337 = vadd.f32 %v177, %v266
    %v338 = vadd.f32 %v178, %v266
    %v339 = vadd.f32 %v179, %v266
    %v340 = vadd.f32 %v180, %v266
    %v341 = vadd.f32 %v181, %v271
    %v342 = vadd.f32 %v182, %v271
    %v343 = vadd.f32 %v183, %v271
    %v344 = vadd.f32 %v184, %v271
    %v345 = vadd.f32 %v185, %v276
    %v346 = vadd.f32 %v186, %v276
    %v347 = vadd.f32 %v187, %v276
    %v348 = vadd.f32 %v188, %v276
    %v349 = vadd.f32 %v189, %v281
    %v350 = vadd.f32 %v190, %v281
    %v351 = vadd.f32 %v191, %v281
    %v352 = vadd.f32 %v192, %v281
    %v353 = vadd.f32 %v193, %v286
    %v354 = vadd.f32 %v194, %v286
    %v355 = vadd.f32 %v195, %v286
    %v356 = vadd.f32 %v196, %v286
    %v357 = vadd.f32 %v197, %v291
    %v358 = vadd.f32 %v198, %v291
    %v359 = vadd.f32 %v199, %v291
    %v360 = vadd.f32 %v200, %v291
    %v361 = vadd.f32 %v201, %v296
    %v362 = vadd.f32 %v202, %v296
    %v363 = vadd.f32 %v203, %v296
    %v364 = vadd.f32 %v204, %v296
    %v365 = vadd.f32 %v205, %v301
    %v366 = vadd.f32 %v206, %v301
    %v367 = vadd.f32 %v207, %v301
    %v368 = vadd.f32 %v208, %v301
    %v369 = vadd.f32 %v209, %v306
    %v370 = vadd.f32 %v210, %v306
    %v371 = vadd.f32 %v211, %v306
    %v372 = vadd.f32 %v212, %v306
    %v373 = vadd.f32 %v213, %v311
    %v374 = vadd.f32 %v214, %v311
    %v375 = vadd.f32 %v215, %v311
    %v376 = vadd.f32 %v216, %v311
    %v377 = vmul.f32 %v313, 0.01
    %v378 = vmul.f32 %v314, 0.01
    %v379 = vmul.f32 %v315, 0.01
    %v380 = vmul.f32 %v316, 0.01
    %v381 = vmul.f32 %v317, 0.01
    %v382 = vmul.f32 %v318, 0.01
    %v383 = vmul.f32 %v319, 0.01
    %v384 = vmul.f32 %v320, 0.01
    %v385 = vmul.f32 %v321, 0.01
    %v386 = vmul.f32 %v322, 0.01
    %v387 = vmul.f32 %v323, 0.01
    %v388 = vmul.f32 %v324, 0.01
    %v389 = vmul.f32 %v325, 0.01
    %v390 = vmul.f32 %v326, 0.01
    %v391 = vmul.f32 %v327, 0.01
    %v392 = vmul.f32 %v328, 0.01
    %v393 = vmul.f32 %v329, 0.01
    %v394 = vmul.f32 %v330, 0.01
    %v395 = vmul.f32 %v331, 0.01
    %v396 = vmul.f32 %v332, 0.01
    %v397 = vmul.f32 %v333, 0.01
    %v398 = vmul.f32 %v334, 0.01
    %v399 = vmul.f32 %v335, 0.01
    %v400 = vmul.f32 %v336, 0.01
    %v401 = vmul.f32 %v337, 0.01
    %v402 = vmul.f32 %v338, 0.01
    %v403 = vmul.f32 %v339, 0.01
    %v404 = vmul.f32 %v340, 0.01
    %v405 = vmul.f32 %v341, 0.01
    %v406 = vmul.f32 %v342, 0.01
    %v407 = vmul.f32 %v343, 0.01
    %v408 = vmul.f32 %v344, 0.01
    %v409 = vmul.f32 %v345, 0.01
    %v410 = vmul.f32 %v346, 0.01
    %v411 = vmul.f32 %v347, 0.01
    %v412 = vmul.f32 %v348, 0.01
    %v413 = vmul.f32 %v349, 0.01
    %v414 = vmul.f32 %v350, 0.01
    %v415 = vmul.f32 %v351, 0.01
    %v416 = vmul.f32 %v352, 0.01
    %v417 = vmul.f32 %v353, 0.01
    %v418 = vmul.f32 %v354, 0.01
    %v419 = vmul.f32 %v355, 0.01
    %v420 = vmul.f32 %v356, 0.01
    %v421 = vmul.f32 %v357, 0.01
    %v422 = vmul.f32 %v358, 0.01
    %v423 = vmul.f32 %v359, 0.01
    %v424 = vmul.f32 %v360, 0.01
    %v425 = vmul.f32 %v361, 0.01
    %v426 = vmul.f32 %v362, 0.01
    %v427 = vmul.f32 %v363, 0.01
    %v428 = vmul.f32 %v364, 0.01
    %v429 = vmul.f32 %v365, 0.01
    %v430 = vmul.f32 %v366, 0.01
    %v431 = vmul.f32 %v367, 0.01
    %v432 = vmul.f32 %v368, 0.01
    %v433 = vmul.f32 %v369, 0.01
    %v434 = vmul.f32 %v370, 0.01
    %v435 = vmul.f32 %v371, 0.01
    %v436 = vmul.f32 %v372, 0.01
    %v437 = vmul.f32 %v373, 0.01
    %v438 = vmul.f32 %v374, 0.01
    %v439 = vmul.f32 %v375, 0.01
    %v440 = vmul.f32 %v376, 0.01
    %v441 = vmax.f32 %v313, %v377
    %v442 = vmax.f32 %v314, %v378
    %v443 = vmax.f32 %v315, %v379
    %v444 = vmax.f32 %v316, %v380
    %v445 = vmax.f32 %v317, %v381
    %v446 = vmax.f32 %v318, %v382
    %v447 = vmax.f32 %v319, %v383
    %v448 = vmax.f32 %v320, %v384
    %v449 = vmax.f32 %v321, %v385
    %v450 = vmax.f32 %v322, %v386
    %v451 = vmax.f32 %v323, %v387
    %v452 = vmax.f32 %v324, %v388
    %v453 = vmax.f32 %v325, %v389
    %v454 = vmax.f32 %v326, %v390
    %v455 = vmax.f32 %v327, %v391
    %v456 = vmax.f32 %v328, %v392
    %v457 = vmax.f32 %v329, %v393
    %v458 = vmax.f32 %v330, %v394
    %v459 = vmax.f32 %v331, %v395
    %v460 = vmax.f32 %v332, %v396
    %v461 = vmax.f32 %v333, %v397
    %v462 = vmax.f32 %v334, %v398
    %v463 = vmax.f32 %v335, %v399
    %v464 = vmax.f32 %v336, %v400
    %v465 = vmax.f32 %v337, %v401
    %v466 = vmax.f32 %v338, %v402
    %v467 = vmax.f32 %v339, %v403
    %v468 = vmax.f32 %v340, %v404
    %v469 = vmax.f32 %v341, %v405
    %v470 = vmax.f32 %v342, %v406
    %v471 = vmax.f32 %v343, %v407
    %v472 = vmax.f32 %v344, %v408
    %v473 = vmax.f32 %v345, %v409
    %v474 = vmax.f32 %v346, %v410
    %v475 = vmax.f32 %v347, %v411
    %v476 = vmax.f32 %v348, %v412
    %v477 = vmax.f32 %v349, %v413
    %v478 = vmax.f32 %v350, %v414
    %v479 = vmax.f32 %v351, %v415
    %v480 = vmax.f32 %v352, %v416
    %v481 = vmax.f32 %v353, %v417
    %v482 = vmax.f32 %v354, %v418
    %v483 = vmax.f32 %v355, %v419
    %v484 = vmax.f32 %v356, %v420
    %v485 = vmax.f32 %v357, %v421
    %v486 = vmax.f32 %v358, %v422
    %v487 = vmax.f32 %v359, %v423
    %v488 = vmax.f32 %v360, %v424
    %v489 = vmax.f32 %v361, %v425
    %v490 = vmax.f32 %v362, %v426
    %v491 = vmax.f32 %v363, %v427
    %v492 = vmax.f32 %v364, %v428
    %v493 = vmax.f32 %v365, %v429
    %v494 = vmax.f32 %v366, %v430
    %v495 = vmax.f32 %v367, %v431
    %v496 = vmax.f32 %v368, %v432
    %v497 = vmax.f32 %v369, %v433
    %v498 = vmax.f32 %v370, %v434
    %v499 = vmax.f32 %v371, %v435
    %v500 = vmax.f32 %v372, %v436
    %v501 = vmax.f32 %v373, %v437
    %v502 = vmax.f32 %v374, %v438
    %v503 = vmax.f32 %v375, %v439
    %v504 = vmax.f32 %v376, %v440
    %v505 = vld [vmem:[%s3] sm:$0xf]
    %v506 = vld [vmem:[%s3 + $0x4] sm:$0xf]
    %v507 = vld [vmem:[%s3 + $0x8] sm:$0xf]
    %v508 = vld [vmem:[%s3 + $0xc] sm:$0xf]
    %v509 = vld [vmem:[%s3 + $0x10] sm:$0xf]
    %v510 = vld [vmem:[%s3 + $0x14] sm:$0xf]
    %v511 = vld [vmem:[%s3 + $0x18] sm:$0xf]
    %v512 = vld [vmem:[%s3 + $0x1c] sm:$0xf]
    %v513 = vld [vmem:[%s3 + $0x20] sm:$0xf]
    %v514 = vld [vmem:[%s3 + $0x24] sm:$0xf]
    %v515 = vld [vmem:[%s3 + $0x28] sm:$0xf]
    %v516 = vld [vmem:[%s3 + $0x2c] sm:$0xf]
    %v517 = vld [vmem:[%s3 + $0x30] sm:$0xf]
    %v518 = vld [vmem:[%s3 + $0x34] sm:$0xf]
    %v519 = vld [vmem:[%s3 + $0x38] sm:$0xf]
    %v520 = vld [vmem:[%s3 + $0x3c] sm:$0xf]
    %v521 = vld [vmem:[%s3 + $0x40] sm:$0xf]
    %v522 = vld [vmem:[%s3 + $0x44] sm:$0xf]
    %v523 = vld [vmem:[%s3 + $0x48] sm:$0xf]
    %v524 = vld [vmem:[%s3 + $0x4c] sm:$0xf]
    %v525 = vld [vmem:[%s3 + $0x50] sm:$0xf]
    %v526 = vld [vmem:[%s3 + $0x54] sm:$0xf]
    %v527 = vld [vmem:[%s3 + $0x58] sm:$0xf]
    %v528 = vld [vmem:[%s3 + $0x5c] sm:$0xf]
    %v529 = vld [vmem:[%s3 + $0x60] sm:$0xf]
    %v530 = vld [vmem:[%s3 + $0x64] sm:$0xf]
    %v531 = vld [vmem:[%s3 + $0x68] sm:$0xf]
    %v532 = vld [vmem:[%s3 + $0x6c] sm:$0xf]
    %v533 = vld [vmem:[%s3 + $0x70] sm:$0xf]
    %v534 = vld [vmem:[%s3 + $0x74] sm:$0xf]
    %v535 = vld [vmem:[%s3 + $0x78] sm:$0xf]
    %v536 = vld [vmem:[%s3 + $0x7c] sm:$0xf]
    %v537 = vld [vmem:[%s3 + $0x80] sm:$0xf]
    %v538 = vld [vmem:[%s3 + $0x84] sm:$0xf]
    %v539 = vld [vmem:[%s3 + $0x88] sm:$0xf]
    %v540 = vld [vmem:[%s3 + $0x8c] sm:$0xf]
    %v541 = vld [vmem:[%s3 + $0x90] sm:$0xf]
    %v542 = vld [vmem:[%s3 + $0x94] sm:$0xf]
    %v543 = vld [vmem:[%s3 + $0x98] sm:$0xf]
    %v544 = vld [vmem:[%s3 + $0x9c] sm:$0xf]
    %v545 = vld [vmem:[%s3 + $0xa0] sm:$0xf]
    %v546 = vld [vmem:[%s3 + $0xa4] sm:$0xf]
    %v547 = vld [vmem:[%s3 + $0xa8] sm:$0xf]
    %v548 = vld [vmem:[%s3 + $0xac] sm:$0xf]
    %v549 = vld [vmem:[%s3 + $0xb0] sm:$0xf]
    %v550 = vld [vmem:[%s3 + $0xb4] sm:$0xf]
    %v551 = vld [vmem:[%s3 + $0xb8] sm:$0xf]
    %v552 = vld [vmem:[%s3 + $0xbc] sm:$0xf]
    %v553 = vld [vmem:[%s3 + $0xc0] sm:$0xf]
    %v554 = vld [vmem:[%s3 + $0xc4] sm:$0xf]
    %v555 = vld [vmem:[%s3 + $0xc8] sm:$0xf]
    %v556 = vld [vmem:[%s3 + $0xcc] sm:$0xf]
    %v557 = vld [vmem:[%s3 + $0xd0] sm:$0xf]
    %v558 = vld [vmem:[%s3 + $0xd4] sm:$0xf]
    %v559 = vld [vmem:[%s3 + $0xd8] sm:$0xf]
    %v560 = vld [vmem:[%s3 + $0xdc] sm:$0xf]
    %v561 = vld [vmem:[%s3 + $0xe0] sm:$0xf]
    %v562 = vld [vmem:[%s3 + $0xe4] sm:$0xf]
    %v563 = vld [vmem:[%s3 + $0xe8] sm:$0xf]
    %v564 = vld [vmem:[%s3 + $0xec] sm:$0xf]
    %v565 = vld [vmem:[%s3 + $0xf0] sm:$0xf]
    %v566 = vld [vmem:[%s3 + $0xf4] sm:$0xf]
    %v567 = vld [vmem:[%s3 + $0xf8] sm:$0xf]
    %v568 = vld [vmem:[%s3 + $0xfc] sm:$0xf]
    %v569 = vpack.c.bf16 %v445, %v441
    %v570 = vpack.c.bf16 %v446, %v442
    %v571 = vpack.c.bf16 %v447, %v443
    %v572 = vpack.c.bf16 %v448, %v444
    %v573 = vpack.c.bf16 %v453, %v449
    %v574 = vpack.c.bf16 %v454, %v450
    %v575 = vpack.c.bf16 %v455, %v451
    %v576 = vpack.c.bf16 %v456, %v452
    %v577 = vpack.c.bf16 %v461, %v457
    %v578 = vpack.c.bf16 %v462, %v458
    %v579 = vpack.c.bf16 %v463, %v459
    %v580 = vpack.c.bf16 %v464, %v460
    %v581 = vpack.c.bf16 %v469, %v465
    %v582 = vpack.c.bf16 %v470, %v466
    %v583 = vpack.c.bf16 %v471, %v467
    %v584 = vpack.c.bf16 %v472, %v468
    %v585 = vpack.c.bf16 %v477, %v473
    %v586 = vpack.c.bf16 %v478, %v474
    %v587 = vpack.c.bf16 %v479, %v475
    %v588 = vpack.c.bf16 %v480, %v476
    %v589 = vpack.c.bf16 %v485, %v481
    %v590 = vpack.c.bf16 %v486, %v482
    %v591 = vpack.c.bf16 %v487, %v483
    %v592 = vpack.c.bf16 %v488, %v484
    %v593 = vpack.c.bf16 %v493, %v489
    %v594 = vpack.c.bf16 %v494, %v490
    %v595 = vpack.c.bf16 %v495, %v491
    %v596 = vpack.c.bf16 %v496, %v492
    %v597 = vpack.c.bf16 %v501, %v497
    %v598 = vpack.c.bf16 %v502, %v498
    %v599 = vpack.c.bf16 %v503, %v499
    %v600 = vpack.c.bf16 %v504, %v500
    %v601 = vld [vmem:[%s4] sm:$0xff]
    %v602 = vld [vmem:[%s4 + $0x8] sm:$0xff]
    %v603 = vld [vmem:[%s4 + $0x10] sm:$0xff]
    %v604 = vld [vmem:[%s4 + $0x18] sm:$0xff]
    %v605 = vld [vmem:[%s4 + $0x20] sm:$0xff]
    %v606 = vld [vmem:[%s4 + $0x28] sm:$0xff]
    %v607 = vld [vmem:[%s4 + $0x30] sm:$0xff]
    %v608 = vld [vmem:[%s4 + $0x38] sm:$0xff]
    %v609 = vld [vmem:[%s4 + $0x40] sm:$0xff]
    %v610 = vld [vmem:[%s4 + $0x48] sm:$0xff]
    %v611 = vld [vmem:[%s4 + $0x50] sm:$0xff]
    %v612 = vld [vmem:[%s4 + $0x58] sm:$0xff]
    %v613 = vld [vmem:[%s4 + $0x60] sm:$0xff]
    %v614 = vld [vmem:[%s4 + $0x68] sm:$0xff]
    %v615 = vld [vmem:[%s4 + $0x70] sm:$0xff]
    %v616 = vld [vmem:[%s4 + $0x78] sm:$0xff]
    %v617 = vld [vmem:[%s4 + $0x80] sm:$0xff]
    %v618 = vld [vmem:[%s4 + $0x88] sm:$0xff]
    %v619 = vld [vmem:[%s4 + $0x90] sm:$0xff]
    %v620 = vld [vmem:[%s4 + $0x98] sm:$0xff]
    %v621 = vld [vmem:[%s4 + $0xa0] sm:$0xff]
    %v622 = vld [vmem:[%s4 + $0xa8] sm:$0xff]
    %v623 = vld [vmem:[%s4 + $0xb0] sm:$0xff]
    %v624 = vld [vmem:[%s4 + $0xb8] sm:$0xff]
    %v625 = vld [vmem:[%s4 + $0xc0] sm:$0xff]
    %v626 = vld [vmem:[%s4 + $0xc8] sm:$0xff]
    %v627 = vld [vmem:[%s4 + $0xd0] sm:$0xff]
    %v628 = vld [vmem:[%s4 + $0xd8] sm:$0xff]
    %v629 = vld [vmem:[%s4 + $0xe0] sm:$0xff]
    %v630 = vld [vmem:[%s4 + $0xe8] sm:$0xff]
    %v631 = vld [vmem:[%s4 + $0xf0] sm:$0xff]
    %v632 = vld [vmem:[%s4 + $0xf8] sm:$0xff]
    %v633 = vld [vmem:[%s4 + $0x100] sm:$0xff]
    %v634 = vld [vmem:[%s4 + $0x108] sm:$0xff]
    %v635 = vld [vmem:[%s4 + $0x110] sm:$0xff]
    %v636 = vld [vmem:[%s4 + $0x118] sm:$0xff]
    %v637 = vld [vmem:[%s4 + $0x120] sm:$0xff]
    %v638 = vld [vmem:[%s4 + $0x128] sm:$0xff]
    %v639 = vld [vmem:[%s4 + $0x130] sm:$0xff]
    %v640 = vld [vmem:[%s4 + $0x138] sm:$0xff]
    %v641 = vld [vmem:[%s4 + $0x140] sm:$0xff]
    %v642 = vld [vmem:[%s4 + $0x148] sm:$0xff]
    %v643 = vld [vmem:[%s4 + $0x150] sm:$0xff]
    %v644 = vld [vmem:[%s4 + $0x158] sm:$0xff]
    %v645 = vld [vmem:[%s4 + $0x160] sm:$0xff]
    %v646 = vld [vmem:[%s4 + $0x168] sm:$0xff]
    %v647 = vld [vmem:[%s4 + $0x170] sm:$0xff]
    %v648 = vld [vmem:[%s4 + $0x178] sm:$0xff]
    %v649 = vld [vmem:[%s4 + $0x180] sm:$0xff]
    %v650 = vld [vmem:[%s4 + $0x188] sm:$0xff]
    %v651 = vld [vmem:[%s4 + $0x190] sm:$0xff]
    %v652 = vld [vmem:[%s4 + $0x198] sm:$0xff]
    %v653 = vld [vmem:[%s4 + $0x1a0] sm:$0xff]
    %v654 = vld [vmem:[%s4 + $0x1a8] sm:$0xff]
    %v655 = vld [vmem:[%s4 + $0x1b0] sm:$0xff]
    %v656 = vld [vmem:[%s4 + $0x1b8] sm:$0xff]
    %v657 = vld [vmem:[%s4 + $0x1c0] sm:$0xff]
    %v658 = vld [vmem:[%s4 + $0x1c8] sm:$0xff]
    %v659 = vld [vmem:[%s4 + $0x1d0] sm:$0xff]
    %v660 = vld [vmem:[%s4 + $0x1d8] sm:$0xff]
    %v661 = vld [vmem:[%s4 + $0x1e0] sm:$0xff]
    %v662 = vld [vmem:[%s4 + $0x1e8] sm:$0xff]
    %v663 = vld [vmem:[%s4 + $0x1f0] sm:$0xff]
    %v664 = vld [vmem:[%s4 + $0x1f8] sm:$0xff]
    %666 = vset.pattern.permute.xlu0 0
    %667 = vperm.xlu0 %666, %v601
    %v668 = vpop.permute.xlu0 %667
    %671 = vset.pattern.permute.xlu0 0
    %672 = vperm.xlu0 %671, %v602
    %v673 = vpop.permute.xlu0 %672
    %676 = vset.pattern.permute.xlu0 0
    %677 = vperm.xlu0 %676, %v603
    %v678 = vpop.permute.xlu0 %677
    %681 = vset.pattern.permute.xlu0 0
    %682 = vperm.xlu0 %681, %v604
    %v683 = vpop.permute.xlu0 %682
    %686 = vset.pattern.permute.xlu0 0
    %687 = vperm.xlu0 %686, %v605
    %v688 = vpop.permute.xlu0 %687
    %691 = vset.pattern.permute.xlu0 0
    %692 = vperm.xlu0 %691, %v606
    %v693 = vpop.permute.xlu0 %692
    %696 = vset.pattern.permute.xlu0 0
    %697 = vperm.xlu0 %696, %v607
    %v698 = vpop.permute.xlu0 %697
    %701 = vset.pattern.permute.xlu0 0
    %702 = vperm.xlu0 %701, %v608
    %v703 = vpop.permute.xlu0 %702
    %706 = vset.pattern.permute.xlu0 0
    %707 = vperm.xlu0 %706, %v609
    %v708 = vpop.permute.xlu0 %707
    %711 = vset.pattern.permute.xlu0 0
    %712 = vperm.xlu0 %711, %v610
    %v713 = vpop.permute.xlu0 %712
    %716 = vset.pattern.permute.xlu0 0
    %717 = vperm.xlu0 %716, %v611
    %v718 = vpop.permute.xlu0 %717
    %721 = vset.pattern.permute.xlu0 0
    %722 = vperm.xlu0 %721, %v612
    %v723 = vpop.permute.xlu0 %722
    %726 = vset.pattern.permute.xlu0 0
    %727 = vperm.xlu0 %726, %v613
    %v728 = vpop.permute.xlu0 %727
    %731 = vset.pattern.permute.xlu0 0
    %732 = vperm.xlu0 %731, %v614
    %v733 = vpop.permute.xlu0 %732
    %736 = vset.pattern.permute.xlu0 0
    %737 = vperm.xlu0 %736, %v615
    %v738 = vpop.permute.xlu0 %737
    %741 = vset.pattern.permute.xlu0 0
    %742 = vperm.xlu0 %741, %v616
    %v743 = vpop.permute.xlu0 %742
    %746 = vset.pattern.permute.xlu0 0
    %747 = vperm.xlu0 %746, %v617
    %v748 = vpop.permute.xlu0 %747
    %751 = vset.pattern.permute.xlu0 0
    %752 = vperm.xlu0 %751, %v618
    %v753 = vpop.permute.xlu0 %752
    %756 = vset.pattern.permute.xlu0 0
    %757 = vperm.xlu0 %756, %v619
    %v758 = vpop.permute.xlu0 %757
    %761 = vset.pattern.permute.xlu0 0
    %762 = vperm.xlu0 %761, %v620
    %v763 = vpop.permute.xlu0 %762
    %766 = vset.pattern.permute.xlu0 0
    %767 = vperm.xlu0 %766, %v621
    %v768 = vpop.permute.xlu0 %767
    %771 = vset.pattern.permute.xlu0 0
    %772 = vperm.xlu0 %771, %v622
    %v773 = vpop.permute.xlu0 %772
    %776 = vset.pattern.permute.xlu0 0
    %777 = vperm.xlu0 %776, %v623
    %v778 = vpop.permute.xlu0 %777
    %781 = vset.pattern.permute.xlu0 0
    %782 = vperm.xlu0 %781, %v624
    %v783 = vpop.permute.xlu0 %782
    %786 = vset.pattern.permute.xlu0 0
    %787 = vperm.xlu0 %786, %v625
    %v788 = vpop.permute.xlu0 %787
    %791 = vset.pattern.permute.xlu0 0
    %792 = vperm.xlu0 %791, %v626
    %v793 = vpop.permute.xlu0 %792
    %796 = vset.pattern.permute.xlu0 0
    %797 = vperm.xlu0 %796, %v627
    %v798 = vpop.permute.xlu0 %797
    %801 = vset.pattern.permute.xlu0 0
    %802 = vperm.xlu0 %801, %v628
    %v803 = vpop.permute.xlu0 %802
    %806 = vset.pattern.permute.xlu0 0
    %807 = vperm.xlu0 %806, %v629
    %v808 = vpop.permute.xlu0 %807
    %811 = vset.pattern.permute.xlu0 0
    %812 = vperm.xlu0 %811, %v630
    %v813 = vpop.permute.xlu0 %812
    %816 = vset.pattern.permute.xlu0 0
    %817 = vperm.xlu0 %816, %v631
    %v818 = vpop.permute.xlu0 %817
    %821 = vset.pattern.permute.xlu0 0
    %822 = vperm.xlu0 %821, %v632
    %v823 = vpop.permute.xlu0 %822
    %826 = vset.pattern.permute.xlu0 0
    %827 = vperm.xlu0 %826, %v633
    %v828 = vpop.permute.xlu0 %827
    %831 = vset.pattern.permute.xlu0 0
    %832 = vperm.xlu0 %831, %v634
    %v833 = vpop.permute.xlu0 %832
    %836 = vset.pattern.permute.xlu0 0
    %837 = vperm.xlu0 %836, %v635
    %v838 = vpop.permute.xlu0 %837
    %841 = vset.pattern.permute.xlu0 0
    %842 = vperm.xlu0 %841, %v636
    %v843 = vpop.permute.xlu0 %842
    %846 = vset.pattern.permute.xlu0 0
    %847 = vperm.xlu0 %846, %v637
    %v848 = vpop.permute.xlu0 %847
    %851 = vset.pattern.permute.xlu0 0
    %852 = vperm.xlu0 %851, %v638
    %v853 = vpop.permute.xlu0 %852
    %856 = vset.pattern.permute.xlu0 0
    %857 = vperm.xlu0 %856, %v639
    %v858 = vpop.permute.xlu0 %857
    %861 = vset.pattern.permute.xlu0 0
    %862 = vperm.xlu0 %861, %v640
    %v863 = vpop.permute.xlu0 %862
    %866 = vset.pattern.permute.xlu0 0
    %867 = vperm.xlu0 %866, %v641
    %v868 = vpop.permute.xlu0 %867
    %871 = vset.pattern.permute.xlu0 0
    %872 = vperm.xlu0 %871, %v642
    %v873 = vpop.permute.xlu0 %872
    %876 = vset.pattern.permute.xlu0 0
    %877 = vperm.xlu0 %876, %v643
    %v878 = vpop.permute.xlu0 %877
    %881 = vset.pattern.permute.xlu0 0
    %882 = vperm.xlu0 %881, %v644
    %v883 = vpop.permute.xlu0 %882
    %886 = vset.pattern.permute.xlu0 0
    %887 = vperm.xlu0 %886, %v645
    %v888 = vpop.permute.xlu0 %887
    %891 = vset.pattern.permute.xlu0 0
    %892 = vperm.xlu0 %891, %v646
    %v893 = vpop.permute.xlu0 %892
    %896 = vset.pattern.permute.xlu0 0
    %897 = vperm.xlu0 %896, %v647
    %v898 = vpop.permute.xlu0 %897
    %901 = vset.pattern.permute.xlu0 0
    %902 = vperm.xlu0 %901, %v648
    %v903 = vpop.permute.xlu0 %902
    %906 = vset.pattern.permute.xlu0 0
    %907 = vperm.xlu0 %906, %v649
    %v908 = vpop.permute.xlu0 %907
    %911 = vset.pattern.permute.xlu0 0
    %912 = vperm.xlu0 %911, %v650
    %v913 = vpop.permute.xlu0 %912
    %916 = vset.pattern.permute.xlu0 0
    %917 = vperm.xlu0 %916, %v651
    %v918 = vpop.permute.xlu0 %917
    %921 = vset.pattern.permute.xlu0 0
    %922 = vperm.xlu0 %921, %v652
    %v923 = vpop.permute.xlu0 %922
    %926 = vset.pattern.permute.xlu0 0
    %927 = vperm.xlu0 %926, %v653
    %v928 = vpop.permute.xlu0 %927
    %931 = vset.pattern.permute.xlu0 0
    %932 = vperm.xlu0 %931, %v654
    %v933 = vpop.permute.xlu0 %932
    %936 = vset.pattern.permute.xlu0 0
    %937 = vperm.xlu0 %936, %v655
    %v938 = vpop.permute.xlu0 %937
    %941 = vset.pattern.permute.xlu0 0
    %942 = vperm.xlu0 %941, %v656
    %v943 = vpop.permute.xlu0 %942
    %946 = vset.pattern.permute.xlu0 0
    %947 = vperm.xlu0 %946, %v657
    %v948 = vpop.permute.xlu0 %947
    %951 = vset.pattern.permute.xlu0 0
    %952 = vperm.xlu0 %951, %v658
    %v953 = vpop.permute.xlu0 %952
    %956 = vset.pattern.permute.xlu0 0
    %957 = vperm.xlu0 %956, %v659
    %v958 = vpop.permute.xlu0 %957
    %961 = vset.pattern.permute.xlu0 0
    %962 = vperm.xlu0 %961, %v660
    %v963 = vpop.permute.xlu0 %962
    %966 = vset.pattern.permute.xlu0 0
    %967 = vperm.xlu0 %966, %v661
    %v968 = vpop.permute.xlu0 %967
    %971 = vset.pattern.permute.xlu0 0
    %972 = vperm.xlu0 %971, %v662
    %v973 = vpop.permute.xlu0 %972
    %976 = vset.pattern.permute.xlu0 0
    %977 = vperm.xlu0 %976, %v663
    %v978 = vpop.permute.xlu0 %977
    %981 = vset.pattern.permute.xlu0 0
    %982 = vperm.xlu0 %981, %v664
    %v983 = vpop.permute.xlu0 %982
    %v1049 = vunpack.c.l.b16 %v505
    %v1050 = vunpack.c.l.b16 %v506
    %v1051 = vunpack.c.l.b16 %v507
    %v1052 = vunpack.c.l.b16 %v508
    %v1053 = vunpack.c.l.b16 %v509
    %v1054 = vunpack.c.l.b16 %v510
    %v1055 = vunpack.c.l.b16 %v511
    %v1056 = vunpack.c.l.b16 %v512
    %v1057 = vunpack.c.l.b16 %v513
    %v1058 = vunpack.c.l.b16 %v514
    %v1059 = vunpack.c.l.b16 %v515
    %v1060 = vunpack.c.l.b16 %v516
    %v1061 = vunpack.c.l.b16 %v517
    %v1062 = vunpack.c.l.b16 %v518
    %v1063 = vunpack.c.l.b16 %v519
    %v1064 = vunpack.c.l.b16 %v520
    %v1065 = vunpack.c.l.b16 %v521
    %v1066 = vunpack.c.l.b16 %v522
    %v1067 = vunpack.c.l.b16 %v523
    %v1068 = vunpack.c.l.b16 %v524
    %v1069 = vunpack.c.l.b16 %v525
    %v1070 = vunpack.c.l.b16 %v526
    %v1071 = vunpack.c.l.b16 %v527
    %v1072 = vunpack.c.l.b16 %v528
    %v1073 = vunpack.c.l.b16 %v529
    %v1074 = vunpack.c.l.b16 %v530
    %v1075 = vunpack.c.l.b16 %v531
    %v1076 = vunpack.c.l.b16 %v532
    %v1077 = vunpack.c.l.b16 %v533
    %v1078 = vunpack.c.l.b16 %v534
    %v1079 = vunpack.c.l.b16 %v535
    %v1080 = vunpack.c.l.b16 %v536
    %v1081 = vunpack.c.l.b16 %v537
    %v1082 = vunpack.c.l.b16 %v538
    %v1083 = vunpack.c.l.b16 %v539
    %v1084 = vunpack.c.l.b16 %v540
    %v1085 = vunpack.c.l.b16 %v541
    %v1086 = vunpack.c.l.b16 %v542
    %v1087 = vunpack.c.l.b16 %v543
    %v1088 = vunpack.c.l.b16 %v544
    %v1089 = vunpack.c.l.b16 %v545
    %v1090 = vunpack.c.l.b16 %v546
    %v1091 = vunpack.c.l.b16 %v547
    %v1092 = vunpack.c.l.b16 %v548
    %v1093 = vunpack.c.l.b16 %v549
    %v1094 = vunpack.c.l.b16 %v550
    %v1095 = vunpack.c.l.b16 %v551
    %v1096 = vunpack.c.l.b16 %v552
    %v1097 = vunpack.c.l.b16 %v553
    %v1098 = vunpack.c.l.b16 %v554
    %v1099 = vunpack.c.l.b16 %v555
    %v1100 = vunpack.c.l.b16 %v556
    %v1101 = vunpack.c.l.b16 %v557
    %v1102 = vunpack.c.l.b16 %v558
    %v1103 = vunpack.c.l.b16 %v559
    %v1104 = vunpack.c.l.b16 %v560
    %v1105 = vunpack.c.l.b16 %v561
    %v1106 = vunpack.c.l.b16 %v562
    %v1107 = vunpack.c.l.b16 %v563
    %v1108 = vunpack.c.l.b16 %v564
    %v1109 = vunpack.c.l.b16 %v565
    %v1110 = vunpack.c.l.b16 %v566
    %v1111 = vunpack.c.l.b16 %v567
    %v1112 = vunpack.c.l.b16 %v568
    %v1113 = vpack.c.b16 %v1050, %v1049
    %v1114 = vpack.c.b16 %v1052, %v1051
    %v1115 = vpack.c.b16 %v1054, %v1053
    %v1116 = vpack.c.b16 %v1056, %v1055
    %v1117 = vpack.c.b16 %v1058, %v1057
    %v1118 = vpack.c.b16 %v1060, %v1059
    %v1119 = vpack.c.b16 %v1062, %v1061
    %v1120 = vpack.c.b16 %v1064, %v1063
    %v1121 = vpack.c.b16 %v1066, %v1065
    %v1122 = vpack.c.b16 %v1068, %v1067
    %v1123 = vpack.c.b16 %v1070, %v1069
    %v1124 = vpack.c.b16 %v1072, %v1071
    %v1125 = vpack.c.b16 %v1074, %v1073
    %v1126 = vpack.c.b16 %v1076, %v1075
    %v1127 = vpack.c.b16 %v1078, %v1077
    %v1128 = vpack.c.b16 %v1080, %v1079
    %v1129 = vpack.c.b16 %v1082, %v1081
    %v1130 = vpack.c.b16 %v1084, %v1083
    %v1131 = vpack.c.b16 %v1086, %v1085
    %v1132 = vpack.c.b16 %v1088, %v1087
    %v1133 = vpack.c.b16 %v1090, %v1089
    %v1134 = vpack.c.b16 %v1092, %v1091
    %v1135 = vpack.c.b16 %v1094, %v1093
    %v1136 = vpack.c.b16 %v1096, %v1095
    %v1137 = vpack.c.b16 %v1098, %v1097
    %v1138 = vpack.c.b16 %v1100, %v1099
    %v1139 = vpack.c.b16 %v1102, %v1101
    %v1140 = vpack.c.b16 %v1104, %v1103
    %v1141 = vpack.c.b16 %v1106, %v1105
    %v1142 = vpack.c.b16 %v1108, %v1107
    %v1143 = vpack.c.b16 %v1110, %v1109
    %v1144 = vpack.c.b16 %v1112, %v1111
    %1177 = vmatprep.subr.bf16.mxu0 %v598
    %1178 = vmatpush1.bf16.msra.mxu0 %v597
    %1179 = vmatprep.subr.bf16.mxu0 %v594
    %1180 = vmatpush1.bf16.msra.mxu0 %v593
    %1181 = vmatprep.subr.bf16.mxu0 %v590
    %1182 = vmatpush1.bf16.msra.mxu0 %v589
    %1183 = vmatprep.subr.bf16.mxu0 %v586
    %1184 = vmatpush1.bf16.msra.mxu0 %v585
    %1185 = vmatprep.subr.bf16.mxu0 %v582
    %1186 = vmatpush1.bf16.msra.mxu0 %v581
    %1187 = vmatprep.subr.bf16.mxu0 %v578
    %1188 = vmatpush1.bf16.msra.mxu0 %v577
    %1189 = vmatprep.subr.bf16.mxu0 %v574
    %1190 = vmatpush1.bf16.msra.mxu0 %v573
    %1191 = vmatprep.subr.bf16.mxu0 %v570
    %1192 = vmatpush1.bf16.msra.mxu0 %v569
    %1193 = vmatprep.subr.bf16.mxu0 0
    %1194 = vmatpush2.bf16.msra.mxu0 0
    %1195 = vmatprep.subr.bf16.mxu0 0
    %1196 = vmatpush2.bf16.msra.mxu0 0
    %1197 = vmatprep.subr.bf16.mxu0 0
    %1198 = vmatpush2.bf16.msra.mxu0 0
    %1199 = vmatprep.subr.bf16.mxu0 0
    %1200 = vmatpush2.bf16.msra.mxu0 0
    %1201 = vmatprep.subr.bf16.mxu0 0
    %1202 = vmatpush2.bf16.msra.mxu0 0
    %1203 = vmatprep.subr.bf16.mxu0 0
    %1204 = vmatpush2.bf16.msra.mxu0 0
    %1205 = vmatprep.subr.bf16.mxu0 0
    %1206 = vmatpush2.bf16.msra.mxu0 0
    %1207 = vmatprep.subr.bf16.mxu0 0
    %1208 = vmatpush2.bf16.msra.mxu0 0
    %1209 = vmatprep.mubr.bf16.mxu0 0
    %1210 = vmatmul.mubr.bf16.gmra.mxu0 %v1113
    %v1211 = vpop.f32.mrf.mxu0
    %v1212 = vadd.f32 %v668, %v1211
    %v1213 = vpop.f32.mrf.mxu0
    %v1214 = vadd.f32 %v668, %v1213
    %v1215 = vpop.f32.mrf.mxu0
    %v1216 = vadd.f32 %v673, %v1215
    %v1217 = vpop.f32.mrf.mxu0
    %v1218 = vadd.f32 %v673, %v1217
    %1219 = vmatprep.mubr.bf16.mxu0 0
    %1220 = vmatmul.mubr.bf16.gmra.mxu0 %v1114
    %v1221 = vpop.f32.mrf.mxu0
    %v1222 = vadd.f32 %v678, %v1221
    %v1223 = vpop.f32.mrf.mxu0
    %v1224 = vadd.f32 %v678, %v1223
    %v1225 = vpop.f32.mrf.mxu0
    %v1226 = vadd.f32 %v683, %v1225
    %v1227 = vpop.f32.mrf.mxu0
    %v1228 = vadd.f32 %v683, %v1227
    %1229 = vmatprep.mubr.bf16.mxu0 0
    %1230 = vmatmul.mubr.bf16.gmra.mxu0 %v1115
    %v1231 = vpop.f32.mrf.mxu0
    %v1232 = vadd.f32 %v688, %v1231
    %v1233 = vpop.f32.mrf.mxu0
    %v1234 = vadd.f32 %v688, %v1233
    %v1235 = vpop.f32.mrf.mxu0
    %v1236 = vadd.f32 %v693, %v1235
    %v1237 = vpop.f32.mrf.mxu0
    %v1238 = vadd.f32 %v693, %v1237
    %1239 = vmatprep.mubr.bf16.mxu0 0
    %1240 = vmatmul.mubr.bf16.gmra.mxu0 %v1116
    %v1241 = vpop.f32.mrf.mxu0
    %v1242 = vadd.f32 %v698, %v1241
    %v1243 = vpop.f32.mrf.mxu0
    %v1244 = vadd.f32 %v698, %v1243
    %v1245 = vpop.f32.mrf.mxu0
    %v1246 = vadd.f32 %v703, %v1245
    %v1247 = vpop.f32.mrf.mxu0
    %v1248 = vadd.f32 %v703, %v1247
    %1249 = vmatprep.mubr.bf16.mxu0 0
    %1250 = vmatmul.mubr.bf16.gmra.mxu0 %v1117
    %v1251 = vpop.f32.mrf.mxu0
    %v1252 = vadd.f32 %v708, %v1251
    %v1253 = vpop.f32.mrf.mxu0
    %v1254 = vadd.f32 %v708, %v1253
    %v1255 = vpop.f32.mrf.mxu0
    %v1256 = vadd.f32 %v713, %v1255
    %v1257 = vpop.f32.mrf.mxu0
    %v1258 = vadd.f32 %v713, %v1257
    %1259 = vmatprep.mubr.bf16.mxu0 0
    %1260 = vmatmul.mubr.bf16.gmra.mxu0 %v1118
    %v1261 = vpop.f32.mrf.mxu0
    %v1262 = vadd.f32 %v718, %v1261
    %v1263 = vpop.f32.mrf.mxu0
    %v1264 = vadd.f32 %v718, %v1263
    %v1265 = vpop.f32.mrf.mxu0
    %v1266 = vadd.f32 %v723, %v1265
    %v1267 = vpop.f32.mrf.mxu0
    %v1268 = vadd.f32 %v723, %v1267
    %1269 = vmatprep.mubr.bf16.mxu0 0
    %1270 = vmatmul.mubr.bf16.gmra.mxu0 %v1119
    %v1271 = vpop.f32.mrf.mxu0
    %v1272 = vadd.f32 %v728, %v1271
    %v1273 = vpop.f32.mrf.mxu0
    %v1274 = vadd.f32 %v728, %v1273
    %v1275 = vpop.f32.mrf.mxu0
    %v1276 = vadd.f32 %v733, %v1275
    %v1277 = vpop.f32.mrf.mxu0
    %v1278 = vadd.f32 %v733, %v1277
    %1279 = vmatprep.mubr.bf16.mxu0 0
    %1280 = vmatmul.mubr.bf16.gmra.mxu0 %v1120
    %v1281 = vpop.f32.mrf.mxu0
    %v1282 = vadd.f32 %v738, %v1281
    %v1283 = vpop.f32.mrf.mxu0
    %v1284 = vadd.f32 %v738, %v1283
    %v1285 = vpop.f32.mrf.mxu0
    %v1286 = vadd.f32 %v743, %v1285
    %v1287 = vpop.f32.mrf.mxu0
    %v1288 = vadd.f32 %v743, %v1287
    %1289 = vmatprep.mubr.bf16.mxu0 0
    %1290 = vmatmul.mubr.bf16.gmra.mxu0 %v1121
    %v1291 = vpop.f32.mrf.mxu0
    %v1292 = vadd.f32 %v748, %v1291
    %v1293 = vpop.f32.mrf.mxu0
    %v1294 = vadd.f32 %v748, %v1293
    %v1295 = vpop.f32.mrf.mxu0
    %v1296 = vadd.f32 %v753, %v1295
    %v1297 = vpop.f32.mrf.mxu0
    %v1298 = vadd.f32 %v753, %v1297
    %1299 = vmatprep.mubr.bf16.mxu0 0
    %1300 = vmatmul.mubr.bf16.gmra.mxu0 %v1122
    %v1301 = vpop.f32.mrf.mxu0
    %v1302 = vadd.f32 %v758, %v1301
    %v1303 = vpop.f32.mrf.mxu0
    %v1304 = vadd.f32 %v758, %v1303
    %v1305 = vpop.f32.mrf.mxu0
    %v1306 = vadd.f32 %v763, %v1305
    %v1307 = vpop.f32.mrf.mxu0
    %v1308 = vadd.f32 %v763, %v1307
    %1309 = vmatprep.mubr.bf16.mxu0 0
    %1310 = vmatmul.mubr.bf16.gmra.mxu0 %v1123
    %v1311 = vpop.f32.mrf.mxu0
    %v1312 = vadd.f32 %v768, %v1311
    %v1313 = vpop.f32.mrf.mxu0
    %v1314 = vadd.f32 %v768, %v1313
    %v1315 = vpop.f32.mrf.mxu0
    %v1316 = vadd.f32 %v773, %v1315
    %v1317 = vpop.f32.mrf.mxu0
    %v1318 = vadd.f32 %v773, %v1317
    %1319 = vmatprep.mubr.bf16.mxu0 0
    %1320 = vmatmul.mubr.bf16.gmra.mxu0 %v1124
    %v1321 = vpop.f32.mrf.mxu0
    %v1322 = vadd.f32 %v778, %v1321
    %v1323 = vpop.f32.mrf.mxu0
    %v1324 = vadd.f32 %v778, %v1323
    %v1325 = vpop.f32.mrf.mxu0
    %v1326 = vadd.f32 %v783, %v1325
    %v1327 = vpop.f32.mrf.mxu0
    %v1328 = vadd.f32 %v783, %v1327
    %1329 = vmatprep.mubr.bf16.mxu0 0
    %1330 = vmatmul.mubr.bf16.gmra.mxu0 %v1125
    %v1331 = vpop.f32.mrf.mxu0
    %v1332 = vadd.f32 %v788, %v1331
    %v1333 = vpop.f32.mrf.mxu0
    %v1334 = vadd.f32 %v788, %v1333
    %v1335 = vpop.f32.mrf.mxu0
    %v1336 = vadd.f32 %v793, %v1335
    %v1337 = vpop.f32.mrf.mxu0
    %v1338 = vadd.f32 %v793, %v1337
    %1339 = vmatprep.mubr.bf16.mxu0 0
    %1340 = vmatmul.mubr.bf16.gmra.mxu0 %v1126
    %v1341 = vpop.f32.mrf.mxu0
    %v1342 = vadd.f32 %v798, %v1341
    %v1343 = vpop.f32.mrf.mxu0
    %v1344 = vadd.f32 %v798, %v1343
    %v1345 = vpop.f32.mrf.mxu0
    %v1346 = vadd.f32 %v803, %v1345
    %v1347 = vpop.f32.mrf.mxu0
    %v1348 = vadd.f32 %v803, %v1347
    %1349 = vmatprep.mubr.bf16.mxu0 0
    %1350 = vmatmul.mubr.bf16.gmra.mxu0 %v1127
    %v1351 = vpop.f32.mrf.mxu0
    %v1352 = vadd.f32 %v808, %v1351
    %v1353 = vpop.f32.mrf.mxu0
    %v1354 = vadd.f32 %v808, %v1353
    %v1355 = vpop.f32.mrf.mxu0
    %v1356 = vadd.f32 %v813, %v1355
    %v1357 = vpop.f32.mrf.mxu0
    %v1358 = vadd.f32 %v813, %v1357
    %1359 = vmatprep.mubr.bf16.mxu0 0
    %1360 = vmatmul.mubr.bf16.gmra.mxu0 %v1128
    %v1361 = vpop.f32.mrf.mxu0
    %v1362 = vadd.f32 %v818, %v1361
    %v1363 = vpop.f32.mrf.mxu0
    %v1364 = vadd.f32 %v818, %v1363
    %v1365 = vpop.f32.mrf.mxu0
    %v1366 = vadd.f32 %v823, %v1365
    %v1367 = vpop.f32.mrf.mxu0
    %v1368 = vadd.f32 %v823, %v1367
    %1369 = vmatprep.mubr.bf16.mxu0 0
    %1370 = vmatmul.mubr.bf16.gmra.mxu0 %v1129
    %v1371 = vpop.f32.mrf.mxu0
    %v1372 = vadd.f32 %v828, %v1371
    %v1373 = vpop.f32.mrf.mxu0
    %v1374 = vadd.f32 %v828, %v1373
    %v1375 = vpop.f32.mrf.mxu0
    %v1376 = vadd.f32 %v833, %v1375
    %v1377 = vpop.f32.mrf.mxu0
    %v1378 = vadd.f32 %v833, %v1377
    %1379 = vmatprep.mubr.bf16.mxu0 0
    %1380 = vmatmul.mubr.bf16.gmra.mxu0 %v1130
    %v1381 = vpop.f32.mrf.mxu0
    %v1382 = vadd.f32 %v838, %v1381
    %v1383 = vpop.f32.mrf.mxu0
    %v1384 = vadd.f32 %v838, %v1383
    %v1385 = vpop.f32.mrf.mxu0
    %v1386 = vadd.f32 %v843, %v1385
    %v1387 = vpop.f32.mrf.mxu0
    %v1388 = vadd.f32 %v843, %v1387
    %1389 = vmatprep.mubr.bf16.mxu0 0
    %1390 = vmatmul.mubr.bf16.gmra.mxu0 %v1131
    %v1391 = vpop.f32.mrf.mxu0
    %v1392 = vadd.f32 %v848, %v1391
    %v1393 = vpop.f32.mrf.mxu0
    %v1394 = vadd.f32 %v848, %v1393
    %v1395 = vpop.f32.mrf.mxu0
    %v1396 = vadd.f32 %v853, %v1395
    %v1397 = vpop.f32.mrf.mxu0
    %v1398 = vadd.f32 %v853, %v1397
    %1399 = vmatprep.mubr.bf16.mxu0 0
    %1400 = vmatmul.mubr.bf16.gmra.mxu0 %v1132
    %v1401 = vpop.f32.mrf.mxu0
    %v1402 = vadd.f32 %v858, %v1401
    %v1403 = vpop.f32.mrf.mxu0
    %v1404 = vadd.f32 %v858, %v1403
    %v1405 = vpop.f32.mrf.mxu0
    %v1406 = vadd.f32 %v863, %v1405
    %v1407 = vpop.f32.mrf.mxu0
    %v1408 = vadd.f32 %v863, %v1407
    %1409 = vmatprep.mubr.bf16.mxu0 0
    %1410 = vmatmul.mubr.bf16.gmra.mxu0 %v1133
    %v1411 = vpop.f32.mrf.mxu0
    %v1412 = vadd.f32 %v868, %v1411
    %v1413 = vpop.f32.mrf.mxu0
    %v1414 = vadd.f32 %v868, %v1413
    %v1415 = vpop.f32.mrf.mxu0
    %v1416 = vadd.f32 %v873, %v1415
    %v1417 = vpop.f32.mrf.mxu0
    %v1418 = vadd.f32 %v873, %v1417
    %1419 = vmatprep.mubr.bf16.mxu0 0
    %1420 = vmatmul.mubr.bf16.gmra.mxu0 %v1134
    %v1421 = vpop.f32.mrf.mxu0
    %v1422 = vadd.f32 %v878, %v1421
    %v1423 = vpop.f32.mrf.mxu0
    %v1424 = vadd.f32 %v878, %v1423
    %v1425 = vpop.f32.mrf.mxu0
    %v1426 = vadd.f32 %v883, %v1425
    %v1427 = vpop.f32.mrf.mxu0
    %v1428 = vadd.f32 %v883, %v1427
    %1429 = vmatprep.mubr.bf16.mxu0 0
    %1430 = vmatmul.mubr.bf16.gmra.mxu0 %v1135
    %v1431 = vpop.f32.mrf.mxu0
    %v1432 = vadd.f32 %v888, %v1431
    %v1433 = vpop.f32.mrf.mxu0
    %v1434 = vadd.f32 %v888, %v1433
    %v1435 = vpop.f32.mrf.mxu0
    %v1436 = vadd.f32 %v893, %v1435
    %v1437 = vpop.f32.mrf.mxu0
    %v1438 = vadd.f32 %v893, %v1437
    %1439 = vmatprep.mubr.bf16.mxu0 0
    %1440 = vmatmul.mubr.bf16.gmra.mxu0 %v1136
    %v1441 = vpop.f32.mrf.mxu0
    %v1442 = vadd.f32 %v898, %v1441
    %v1443 = vpop.f32.mrf.mxu0
    %v1444 = vadd.f32 %v898, %v1443
    %v1445 = vpop.f32.mrf.mxu0
    %v1446 = vadd.f32 %v903, %v1445
    %v1447 = vpop.f32.mrf.mxu0
    %v1448 = vadd.f32 %v903, %v1447
    %1449 = vmatprep.mubr.bf16.mxu0 0
    %1450 = vmatmul.mubr.bf16.gmra.mxu0 %v1137
    %v1451 = vpop.f32.mrf.mxu0
    %v1452 = vadd.f32 %v908, %v1451
    %v1453 = vpop.f32.mrf.mxu0
    %v1454 = vadd.f32 %v908, %v1453
    %v1455 = vpop.f32.mrf.mxu0
    %v1456 = vadd.f32 %v913, %v1455
    %v1457 = vpop.f32.mrf.mxu0
    %v1458 = vadd.f32 %v913, %v1457
    %1459 = vmatprep.mubr.bf16.mxu0 0
    %1460 = vmatmul.mubr.bf16.gmra.mxu0 %v1138
    %v1461 = vpop.f32.mrf.mxu0
    %v1462 = vadd.f32 %v918, %v1461
    %v1463 = vpop.f32.mrf.mxu0
    %v1464 = vadd.f32 %v918, %v1463
    %v1465 = vpop.f32.mrf.mxu0
    %v1466 = vadd.f32 %v923, %v1465
    %v1467 = vpop.f32.mrf.mxu0
    %v1468 = vadd.f32 %v923, %v1467
    %1469 = vmatprep.mubr.bf16.mxu0 0
    %1470 = vmatmul.mubr.bf16.gmra.mxu0 %v1139
    %v1471 = vpop.f32.mrf.mxu0
    %v1472 = vadd.f32 %v928, %v1471
    %v1473 = vpop.f32.mrf.mxu0
    %v1474 = vadd.f32 %v928, %v1473
    %v1475 = vpop.f32.mrf.mxu0
    %v1476 = vadd.f32 %v933, %v1475
    %v1477 = vpop.f32.mrf.mxu0
    %v1478 = vadd.f32 %v933, %v1477
    %1479 = vmatprep.mubr.bf16.mxu0 0
    %1480 = vmatmul.mubr.bf16.gmra.mxu0 %v1140
    %v1481 = vpop.f32.mrf.mxu0
    %v1482 = vadd.f32 %v938, %v1481
    %v1483 = vpop.f32.mrf.mxu0
    %v1484 = vadd.f32 %v938, %v1483
    %v1485 = vpop.f32.mrf.mxu0
    %v1486 = vadd.f32 %v943, %v1485
    %v1487 = vpop.f32.mrf.mxu0
    %v1488 = vadd.f32 %v943, %v1487
    %1489 = vmatprep.mubr.bf16.mxu0 0
    %1490 = vmatmul.mubr.bf16.gmra.mxu0 %v1141
    %v1491 = vpop.f32.mrf.mxu0
    %v1492 = vadd.f32 %v948, %v1491
    %v1493 = vpop.f32.mrf.mxu0
    %v1494 = vadd.f32 %v948, %v1493
    %v1495 = vpop.f32.mrf.mxu0
    %v1496 = vadd.f32 %v953, %v1495
    %v1497 = vpop.f32.mrf.mxu0
    %v1498 = vadd.f32 %v953, %v1497
    %1499 = vmatprep.mubr.bf16.mxu0 0
    %1500 = vmatmul.mubr.bf16.gmra.mxu0 %v1142
    %v1501 = vpop.f32.mrf.mxu0
    %v1502 = vadd.f32 %v958, %v1501
    %v1503 = vpop.f32.mrf.mxu0
    %v1504 = vadd.f32 %v958, %v1503
    %v1505 = vpop.f32.mrf.mxu0
    %v1506 = vadd.f32 %v963, %v1505
    %v1507 = vpop.f32.mrf.mxu0
    %v1508 = vadd.f32 %v963, %v1507
    %1509 = vmatprep.mubr.bf16.mxu0 0
    %1510 = vmatmul.mubr.bf16.gmra.mxu0 %v1143
    %v1511 = vpop.f32.mrf.mxu0
    %v1512 = vadd.f32 %v968, %v1511
    %v1513 = vpop.f32.mrf.mxu0
    %v1514 = vadd.f32 %v968, %v1513
    %v1515 = vpop.f32.mrf.mxu0
    %v1516 = vadd.f32 %v973, %v1515
    %v1517 = vpop.f32.mrf.mxu0
    %v1518 = vadd.f32 %v973, %v1517
    %1519 = vmatprep.mubr.bf16.mxu0 0
    %1520 = vmatmul.mubr.bf16.gmra.mxu0 %v1144
    %v1521 = vpop.f32.mrf.mxu0
    %v1522 = vadd.f32 %v978, %v1521
    %v1523 = vpop.f32.mrf.mxu0
    %v1524 = vadd.f32 %v978, %v1523
    %v1525 = vpop.f32.mrf.mxu0
    %v1526 = vadd.f32 %v983, %v1525
    %v1527 = vpop.f32.mrf.mxu0
    %v1528 = vadd.f32 %v983, %v1527
    %1529 = vdwg.mxu0
    %1530 = vmatprep.subr.bf16.mxu0 %v600
    %1531 = vmatpush1.bf16.msra.mxu0 %v599
    %1532 = vmatprep.subr.bf16.mxu0 %v596
    %1533 = vmatpush1.bf16.msra.mxu0 %v595
    %1534 = vmatprep.subr.bf16.mxu0 %v592
    %1535 = vmatpush1.bf16.msra.mxu0 %v591
    %1536 = vmatprep.subr.bf16.mxu0 %v588
    %1537 = vmatpush1.bf16.msra.mxu0 %v587
    %1538 = vmatprep.subr.bf16.mxu0 %v584
    %1539 = vmatpush1.bf16.msra.mxu0 %v583
    %1540 = vmatprep.subr.bf16.mxu0 %v580
    %1541 = vmatpush1.bf16.msra.mxu0 %v579
    %1542 = vmatprep.subr.bf16.mxu0 %v576
    %1543 = vmatpush1.bf16.msra.mxu0 %v575
    %1544 = vmatprep.subr.bf16.mxu0 %v572
    %1545 = vmatpush1.bf16.msra.mxu0 %v571
    %1546 = vmatprep.subr.bf16.mxu0 0
    %1547 = vmatpush2.bf16.msra.mxu0 0
    %1548 = vmatprep.subr.bf16.mxu0 0
    %1549 = vmatpush2.bf16.msra.mxu0 0
    %1550 = vmatprep.subr.bf16.mxu0 0
    %1551 = vmatpush2.bf16.msra.mxu0 0
    %1552 = vmatprep.subr.bf16.mxu0 0
    %1553 = vmatpush2.bf16.msra.mxu0 0
    %1554 = vmatprep.subr.bf16.mxu0 0
    %1555 = vmatpush2.bf16.msra.mxu0 0
    %1556 = vmatprep.subr.bf16.mxu0 0
    %1557 = vmatpush2.bf16.msra.mxu0 0
    %1558 = vmatprep.subr.bf16.mxu0 0
    %1559 = vmatpush2.bf16.msra.mxu0 0
    %1560 = vmatprep.subr.bf16.mxu0 0
    %1561 = vmatpush2.bf16.msra.mxu0 0
    %1562 = vmatprep.mubr.bf16.mxu0 0
    %1563 = vmatmul.mubr.bf16.gmra.mxu0 %v1113
    %v1564 = vpop.f32.mrf.mxu0
    %v1565 = vadd.f32 %v668, %v1564
    %v1566 = vpop.f32.mrf.mxu0
    %v1567 = vadd.f32 %v668, %v1566
    %v1568 = vpop.f32.mrf.mxu0
    %v1569 = vadd.f32 %v673, %v1568
    %v1570 = vpop.f32.mrf.mxu0
    %v1571 = vadd.f32 %v673, %v1570
    %1572 = vmatprep.mubr.bf16.mxu0 0
    %1573 = vmatmul.mubr.bf16.gmra.mxu0 %v1114
    %v1574 = vpop.f32.mrf.mxu0
    %v1575 = vadd.f32 %v678, %v1574
    %v1576 = vpop.f32.mrf.mxu0
    %v1577 = vadd.f32 %v678, %v1576
    %v1578 = vpop.f32.mrf.mxu0
    %v1579 = vadd.f32 %v683, %v1578
    %v1580 = vpop.f32.mrf.mxu0
    %v1581 = vadd.f32 %v683, %v1580
    %1582 = vmatprep.mubr.bf16.mxu0 0
    %1583 = vmatmul.mubr.bf16.gmra.mxu0 %v1115
    %v1584 = vpop.f32.mrf.mxu0
    %v1585 = vadd.f32 %v688, %v1584
    %v1586 = vpop.f32.mrf.mxu0
    %v1587 = vadd.f32 %v688, %v1586
    %v1588 = vpop.f32.mrf.mxu0
    %v1589 = vadd.f32 %v693, %v1588
    %v1590 = vpop.f32.mrf.mxu0
    %v1591 = vadd.f32 %v693, %v1590
    %1592 = vmatprep.mubr.bf16.mxu0 0
    %1593 = vmatmul.mubr.bf16.gmra.mxu0 %v1116
    %v1594 = vpop.f32.mrf.mxu0
    %v1595 = vadd.f32 %v698, %v1594
    %v1596 = vpop.f32.mrf.mxu0
    %v1597 = vadd.f32 %v698, %v1596
    %v1598 = vpop.f32.mrf.mxu0
    %v1599 = vadd.f32 %v703, %v1598
    %v1600 = vpop.f32.mrf.mxu0
    %v1601 = vadd.f32 %v703, %v1600
    %1602 = vmatprep.mubr.bf16.mxu0 0
    %1603 = vmatmul.mubr.bf16.gmra.mxu0 %v1117
    %v1604 = vpop.f32.mrf.mxu0
    %v1605 = vadd.f32 %v708, %v1604
    %v1606 = vpop.f32.mrf.mxu0
    %v1607 = vadd.f32 %v708, %v1606
    %v1608 = vpop.f32.mrf.mxu0
    %v1609 = vadd.f32 %v713, %v1608
    %v1610 = vpop.f32.mrf.mxu0
    %v1611 = vadd.f32 %v713, %v1610
    %1612 = vmatprep.mubr.bf16.mxu0 0
    %1613 = vmatmul.mubr.bf16.gmra.mxu0 %v1118
    %v1614 = vpop.f32.mrf.mxu0
    %v1615 = vadd.f32 %v718, %v1614
    %v1616 = vpop.f32.mrf.mxu0
    %v1617 = vadd.f32 %v718, %v1616
    %v1618 = vpop.f32.mrf.mxu0
    %v1619 = vadd.f32 %v723, %v1618
    %v1620 = vpop.f32.mrf.mxu0
    %v1621 = vadd.f32 %v723, %v1620
    %1622 = vmatprep.mubr.bf16.mxu0 0
    %1623 = vmatmul.mubr.bf16.gmra.mxu0 %v1119
    %v1624 = vpop.f32.mrf.mxu0
    %v1625 = vadd.f32 %v728, %v1624
    %v1626 = vpop.f32.mrf.mxu0
    %v1627 = vadd.f32 %v728, %v1626
    %v1628 = vpop.f32.mrf.mxu0
    %v1629 = vadd.f32 %v733, %v1628
    %v1630 = vpop.f32.mrf.mxu0
    %v1631 = vadd.f32 %v733, %v1630
    %1632 = vmatprep.mubr.bf16.mxu0 0
    %1633 = vmatmul.mubr.bf16.gmra.mxu0 %v1120
    %v1634 = vpop.f32.mrf.mxu0
    %v1635 = vadd.f32 %v738, %v1634
    %v1636 = vpop.f32.mrf.mxu0
    %v1637 = vadd.f32 %v738, %v1636
    %v1638 = vpop.f32.mrf.mxu0
    %v1639 = vadd.f32 %v743, %v1638
    %v1640 = vpop.f32.mrf.mxu0
    %v1641 = vadd.f32 %v743, %v1640
    %1642 = vmatprep.mubr.bf16.mxu0 0
    %1643 = vmatmul.mubr.bf16.gmra.mxu0 %v1121
    %v1644 = vpop.f32.mrf.mxu0
    %v1645 = vadd.f32 %v748, %v1644
    %v1646 = vpop.f32.mrf.mxu0
    %v1647 = vadd.f32 %v748, %v1646
    %v1648 = vpop.f32.mrf.mxu0
    %v1649 = vadd.f32 %v753, %v1648
    %v1650 = vpop.f32.mrf.mxu0
    %v1651 = vadd.f32 %v753, %v1650
    %1652 = vmatprep.mubr.bf16.mxu0 0
    %1653 = vmatmul.mubr.bf16.gmra.mxu0 %v1122
    %v1654 = vpop.f32.mrf.mxu0
    %v1655 = vadd.f32 %v758, %v1654
    %v1656 = vpop.f32.mrf.mxu0
    %v1657 = vadd.f32 %v758, %v1656
    %v1658 = vpop.f32.mrf.mxu0
    %v1659 = vadd.f32 %v763, %v1658
    %v1660 = vpop.f32.mrf.mxu0
    %v1661 = vadd.f32 %v763, %v1660
    %1662 = vmatprep.mubr.bf16.mxu0 0
    %1663 = vmatmul.mubr.bf16.gmra.mxu0 %v1123
    %v1664 = vpop.f32.mrf.mxu0
    %v1665 = vadd.f32 %v768, %v1664
    %v1666 = vpop.f32.mrf.mxu0
    %v1667 = vadd.f32 %v768, %v1666
    %v1668 = vpop.f32.mrf.mxu0
    %v1669 = vadd.f32 %v773, %v1668
    %v1670 = vpop.f32.mrf.mxu0
    %v1671 = vadd.f32 %v773, %v1670
    %1672 = vmatprep.mubr.bf16.mxu0 0
    %1673 = vmatmul.mubr.bf16.gmra.mxu0 %v1124
    %v1674 = vpop.f32.mrf.mxu0
    %v1675 = vadd.f32 %v778, %v1674
    %v1676 = vpop.f32.mrf.mxu0
    %v1677 = vadd.f32 %v778, %v1676
    %v1678 = vpop.f32.mrf.mxu0
    %v1679 = vadd.f32 %v783, %v1678
    %v1680 = vpop.f32.mrf.mxu0
    %v1681 = vadd.f32 %v783, %v1680
    %1682 = vmatprep.mubr.bf16.mxu0 0
    %1683 = vmatmul.mubr.bf16.gmra.mxu0 %v1125
    %v1684 = vpop.f32.mrf.mxu0
    %v1685 = vadd.f32 %v788, %v1684
    %v1686 = vpop.f32.mrf.mxu0
    %v1687 = vadd.f32 %v788, %v1686
    %v1688 = vpop.f32.mrf.mxu0
    %v1689 = vadd.f32 %v793, %v1688
    %v1690 = vpop.f32.mrf.mxu0
    %v1691 = vadd.f32 %v793, %v1690
    %1692 = vmatprep.mubr.bf16.mxu0 0
    %1693 = vmatmul.mubr.bf16.gmra.mxu0 %v1126
    %v1694 = vpop.f32.mrf.mxu0
    %v1695 = vadd.f32 %v798, %v1694
    %v1696 = vpop.f32.mrf.mxu0
    %v1697 = vadd.f32 %v798, %v1696
    %v1698 = vpop.f32.mrf.mxu0
    %v1699 = vadd.f32 %v803, %v1698
    %v1700 = vpop.f32.mrf.mxu0
    %v1701 = vadd.f32 %v803, %v1700
    %1702 = vmatprep.mubr.bf16.mxu0 0
    %1703 = vmatmul.mubr.bf16.gmra.mxu0 %v1127
    %v1704 = vpop.f32.mrf.mxu0
    %v1705 = vadd.f32 %v808, %v1704
    %v1706 = vpop.f32.mrf.mxu0
    %v1707 = vadd.f32 %v808, %v1706
    %v1708 = vpop.f32.mrf.mxu0
    %v1709 = vadd.f32 %v813, %v1708
    %v1710 = vpop.f32.mrf.mxu0
    %v1711 = vadd.f32 %v813, %v1710
    %1712 = vmatprep.mubr.bf16.mxu0 0
    %1713 = vmatmul.mubr.bf16.gmra.mxu0 %v1128
    %v1714 = vpop.f32.mrf.mxu0
    %v1715 = vadd.f32 %v818, %v1714
    %v1716 = vpop.f32.mrf.mxu0
    %v1717 = vadd.f32 %v818, %v1716
    %v1718 = vpop.f32.mrf.mxu0
    %v1719 = vadd.f32 %v823, %v1718
    %v1720 = vpop.f32.mrf.mxu0
    %v1721 = vadd.f32 %v823, %v1720
    %1722 = vmatprep.mubr.bf16.mxu0 0
    %1723 = vmatmul.mubr.bf16.gmra.mxu0 %v1129
    %v1724 = vpop.f32.mrf.mxu0
    %v1725 = vadd.f32 %v828, %v1724
    %v1726 = vpop.f32.mrf.mxu0
    %v1727 = vadd.f32 %v828, %v1726
    %v1728 = vpop.f32.mrf.mxu0
    %v1729 = vadd.f32 %v833, %v1728
    %v1730 = vpop.f32.mrf.mxu0
    %v1731 = vadd.f32 %v833, %v1730
    %1732 = vmatprep.mubr.bf16.mxu0 0
    %1733 = vmatmul.mubr.bf16.gmra.mxu0 %v1130
    %v1734 = vpop.f32.mrf.mxu0
    %v1735 = vadd.f32 %v838, %v1734
    %v1736 = vpop.f32.mrf.mxu0
    %v1737 = vadd.f32 %v838, %v1736
    %v1738 = vpop.f32.mrf.mxu0
    %v1739 = vadd.f32 %v843, %v1738
    %v1740 = vpop.f32.mrf.mxu0
    %v1741 = vadd.f32 %v843, %v1740
    %1742 = vmatprep.mubr.bf16.mxu0 0
    %1743 = vmatmul.mubr.bf16.gmra.mxu0 %v1131
    %v1744 = vpop.f32.mrf.mxu0
    %v1745 = vadd.f32 %v848, %v1744
    %v1746 = vpop.f32.mrf.mxu0
    %v1747 = vadd.f32 %v848, %v1746
    %v1748 = vpop.f32.mrf.mxu0
    %v1749 = vadd.f32 %v853, %v1748
    %v1750 = vpop.f32.mrf.mxu0
    %v1751 = vadd.f32 %v853, %v1750
    %1752 = vmatprep.mubr.bf16.mxu0 0
    %1753 = vmatmul.mubr.bf16.gmra.mxu0 %v1132
    %v1754 = vpop.f32.mrf.mxu0
    %v1755 = vadd.f32 %v858, %v1754
    %v1756 = vpop.f32.mrf.mxu0
    %v1757 = vadd.f32 %v858, %v1756
    %v1758 = vpop.f32.mrf.mxu0
    %v1759 = vadd.f32 %v863, %v1758
    %v1760 = vpop.f32.mrf.mxu0
    %v1761 = vadd.f32 %v863, %v1760
    %1762 = vmatprep.mubr.bf16.mxu0 0
    %1763 = vmatmul.mubr.bf16.gmra.mxu0 %v1133
    %v1764 = vpop.f32.mrf.mxu0
    %v1765 = vadd.f32 %v868, %v1764
    %v1766 = vpop.f32.mrf.mxu0
    %v1767 = vadd.f32 %v868, %v1766
    %v1768 = vpop.f32.mrf.mxu0
    %v1769 = vadd.f32 %v873, %v1768
    %v1770 = vpop.f32.mrf.mxu0
    %v1771 = vadd.f32 %v873, %v1770
    %1772 = vmatprep.mubr.bf16.mxu0 0
    %1773 = vmatmul.mubr.bf16.gmra.mxu0 %v1134
    %v1774 = vpop.f32.mrf.mxu0
    %v1775 = vadd.f32 %v878, %v1774
    %v1776 = vpop.f32.mrf.mxu0
    %v1777 = vadd.f32 %v878, %v1776
    %v1778 = vpop.f32.mrf.mxu0
    %v1779 = vadd.f32 %v883, %v1778
    %v1780 = vpop.f32.mrf.mxu0
    %v1781 = vadd.f32 %v883, %v1780
    %1782 = vmatprep.mubr.bf16.mxu0 0
    %1783 = vmatmul.mubr.bf16.gmra.mxu0 %v1135
    %v1784 = vpop.f32.mrf.mxu0
    %v1785 = vadd.f32 %v888, %v1784
    %v1786 = vpop.f32.mrf.mxu0
    %v1787 = vadd.f32 %v888, %v1786
    %v1788 = vpop.f32.mrf.mxu0
    %v1789 = vadd.f32 %v893, %v1788
    %v1790 = vpop.f32.mrf.mxu0
    %v1791 = vadd.f32 %v893, %v1790
    %1792 = vmatprep.mubr.bf16.mxu0 0
    %1793 = vmatmul.mubr.bf16.gmra.mxu0 %v1136
    %v1794 = vpop.f32.mrf.mxu0
    %v1795 = vadd.f32 %v898, %v1794
    %v1796 = vpop.f32.mrf.mxu0
    %v1797 = vadd.f32 %v898, %v1796
    %v1798 = vpop.f32.mrf.mxu0
    %v1799 = vadd.f32 %v903, %v1798
    %v1800 = vpop.f32.mrf.mxu0
    %v1801 = vadd.f32 %v903, %v1800
    %1802 = vmatprep.mubr.bf16.mxu0 0
    %1803 = vmatmul.mubr.bf16.gmra.mxu0 %v1137
    %v1804 = vpop.f32.mrf.mxu0
    %v1805 = vadd.f32 %v908, %v1804
    %v1806 = vpop.f32.mrf.mxu0
    %v1807 = vadd.f32 %v908, %v1806
    %v1808 = vpop.f32.mrf.mxu0
    %v1809 = vadd.f32 %v913, %v1808
    %v1810 = vpop.f32.mrf.mxu0
    %v1811 = vadd.f32 %v913, %v1810
    %1812 = vmatprep.mubr.bf16.mxu0 0
    %1813 = vmatmul.mubr.bf16.gmra.mxu0 %v1138
    %v1814 = vpop.f32.mrf.mxu0
    %v1815 = vadd.f32 %v918, %v1814
    %v1816 = vpop.f32.mrf.mxu0
    %v1817 = vadd.f32 %v918, %v1816
    %v1818 = vpop.f32.mrf.mxu0
    %v1819 = vadd.f32 %v923, %v1818
    %v1820 = vpop.f32.mrf.mxu0
    %v1821 = vadd.f32 %v923, %v1820
    %1822 = vmatprep.mubr.bf16.mxu0 0
    %1823 = vmatmul.mubr.bf16.gmra.mxu0 %v1139
    %v1824 = vpop.f32.mrf.mxu0
    %v1825 = vadd.f32 %v928, %v1824
    %v1826 = vpop.f32.mrf.mxu0
    %v1827 = vadd.f32 %v928, %v1826
    %v1828 = vpop.f32.mrf.mxu0
    %v1829 = vadd.f32 %v933, %v1828
    %v1830 = vpop.f32.mrf.mxu0
    %v1831 = vadd.f32 %v933, %v1830
    %1832 = vmatprep.mubr.bf16.mxu0 0
    %1833 = vmatmul.mubr.bf16.gmra.mxu0 %v1140
    %v1834 = vpop.f32.mrf.mxu0
    %v1835 = vadd.f32 %v938, %v1834
    %v1836 = vpop.f32.mrf.mxu0
    %v1837 = vadd.f32 %v938, %v1836
    %v1838 = vpop.f32.mrf.mxu0
    %v1839 = vadd.f32 %v943, %v1838
    %v1840 = vpop.f32.mrf.mxu0
    %v1841 = vadd.f32 %v943, %v1840
    %1842 = vmatprep.mubr.bf16.mxu0 0
    %1843 = vmatmul.mubr.bf16.gmra.mxu0 %v1141
    %v1844 = vpop.f32.mrf.mxu0
    %v1845 = vadd.f32 %v948, %v1844
    %v1846 = vpop.f32.mrf.mxu0
    %v1847 = vadd.f32 %v948, %v1846
    %v1848 = vpop.f32.mrf.mxu0
    %v1849 = vadd.f32 %v953, %v1848
    %v1850 = vpop.f32.mrf.mxu0
    %v1851 = vadd.f32 %v953, %v1850
    %1852 = vmatprep.mubr.bf16.mxu0 0
    %1853 = vmatmul.mubr.bf16.gmra.mxu0 %v1142
    %v1854 = vpop.f32.mrf.mxu0
    %v1855 = vadd.f32 %v958, %v1854
    %v1856 = vpop.f32.mrf.mxu0
    %v1857 = vadd.f32 %v958, %v1856
    %v1858 = vpop.f32.mrf.mxu0
    %v1859 = vadd.f32 %v963, %v1858
    %v1860 = vpop.f32.mrf.mxu0
    %v1861 = vadd.f32 %v963, %v1860
    %1862 = vmatprep.mubr.bf16.mxu0 0
    %1863 = vmatmul.mubr.bf16.gmra.mxu0 %v1143
    %v1864 = vpop.f32.mrf.mxu0
    %v1865 = vadd.f32 %v968, %v1864
    %v1866 = vpop.f32.mrf.mxu0
    %v1867 = vadd.f32 %v968, %v1866
    %v1868 = vpop.f32.mrf.mxu0
    %v1869 = vadd.f32 %v973, %v1868
    %v1870 = vpop.f32.mrf.mxu0
    %v1871 = vadd.f32 %v973, %v1870
    %1872 = vmatprep.mubr.bf16.mxu0 0
    %1873 = vmatmul.mubr.bf16.gmra.mxu0 %v1144
    %v1874 = vpop.f32.mrf.mxu0
    %v1875 = vadd.f32 %v978, %v1874
    %v1876 = vpop.f32.mrf.mxu0
    %v1877 = vadd.f32 %v978, %v1876
    %v1878 = vpop.f32.mrf.mxu0
    %v1879 = vadd.f32 %v983, %v1878
    %v1880 = vpop.f32.mrf.mxu0
    %v1881 = vadd.f32 %v983, %v1880
    %1882 = vdwg.mxu0
    %v1883 = vmul.f32 %v1212, 0.01
    %v1884 = vmul.f32 %v1214, 0.01
    %v1885 = vmul.f32 %v1565, 0.01
    %v1886 = vmul.f32 %v1567, 0.01
    %v1887 = vmul.f32 %v1216, 0.01
    %v1888 = vmul.f32 %v1218, 0.01
    %v1889 = vmul.f32 %v1569, 0.01
    %v1890 = vmul.f32 %v1571, 0.01
    %v1891 = vmul.f32 %v1222, 0.01
    %v1892 = vmul.f32 %v1224, 0.01
    %v1893 = vmul.f32 %v1575, 0.01
    %v1894 = vmul.f32 %v1577, 0.01
    %v1895 = vmul.f32 %v1226, 0.01
    %v1896 = vmul.f32 %v1228, 0.01
    %v1897 = vmul.f32 %v1579, 0.01
    %v1898 = vmul.f32 %v1581, 0.01
    %v1899 = vmul.f32 %v1232, 0.01
    %v1900 = vmul.f32 %v1234, 0.01
    %v1901 = vmul.f32 %v1585, 0.01
    %v1902 = vmul.f32 %v1587, 0.01
    %v1903 = vmul.f32 %v1236, 0.01
    %v1904 = vmul.f32 %v1238, 0.01
    %v1905 = vmul.f32 %v1589, 0.01
    %v1906 = vmul.f32 %v1591, 0.01
    %v1907 = vmul.f32 %v1242, 0.01
    %v1908 = vmul.f32 %v1244, 0.01
    %v1909 = vmul.f32 %v1595, 0.01
    %v1910 = vmul.f32 %v1597, 0.01
    %v1911 = vmul.f32 %v1246, 0.01
    %v1912 = vmul.f32 %v1248, 0.01
    %v1913 = vmul.f32 %v1599, 0.01
    %v1914 = vmul.f32 %v1601, 0.01
    %v1915 = vmul.f32 %v1252, 0.01
    %v1916 = vmul.f32 %v1254, 0.01
    %v1917 = vmul.f32 %v1605, 0.01
    %v1918 = vmul.f32 %v1607, 0.01
    %v1919 = vmul.f32 %v1256, 0.01
    %v1920 = vmul.f32 %v1258, 0.01
    %v1921 = vmul.f32 %v1609, 0.01
    %v1922 = vmul.f32 %v1611, 0.01
    %v1923 = vmul.f32 %v1262, 0.01
    %v1924 = vmul.f32 %v1264, 0.01
    %v1925 = vmul.f32 %v1615, 0.01
    %v1926 = vmul.f32 %v1617, 0.01
    %v1927 = vmul.f32 %v1266, 0.01
    %v1928 = vmul.f32 %v1268, 0.01
    %v1929 = vmul.f32 %v1619, 0.01
    %v1930 = vmul.f32 %v1621, 0.01
    %v1931 = vmul.f32 %v1272, 0.01
    %v1932 = vmul.f32 %v1274, 0.01
    %v1933 = vmul.f32 %v1625, 0.01
    %v1934 = vmul.f32 %v1627, 0.01
    %v1935 = vmul.f32 %v1276, 0.01
    %v1936 = vmul.f32 %v1278, 0.01
    %v1937 = vmul.f32 %v1629, 0.01
    %v1938 = vmul.f32 %v1631, 0.01
    %v1939 = vmul.f32 %v1282, 0.01
    %v1940 = vmul.f32 %v1284, 0.01
    %v1941 = vmul.f32 %v1635, 0.01
    %v1942 = vmul.f32 %v1637, 0.01
    %v1943 = vmul.f32 %v1286, 0.01
    %v1944 = vmul.f32 %v1288, 0.01
    %v1945 = vmul.f32 %v1639, 0.01
    %v1946 = vmul.f32 %v1641, 0.01
    %v1947 = vmul.f32 %v1292, 0.01
    %v1948 = vmul.f32 %v1294, 0.01
    %v1949 = vmul.f32 %v1645, 0.01
    %v1950 = vmul.f32 %v1647, 0.01
    %v1951 = vmul.f32 %v1296, 0.01
    %v1952 = vmul.f32 %v1298, 0.01
    %v1953 = vmul.f32 %v1649, 0.01
    %v1954 = vmul.f32 %v1651, 0.01
    %v1955 = vmul.f32 %v1302, 0.01
    %v1956 = vmul.f32 %v1304, 0.01
    %v1957 = vmul.f32 %v1655, 0.01
    %v1958 = vmul.f32 %v1657, 0.01
    %v1959 = vmul.f32 %v1306, 0.01
    %v1960 = vmul.f32 %v1308, 0.01
    %v1961 = vmul.f32 %v1659, 0.01
    %v1962 = vmul.f32 %v1661, 0.01
    %v1963 = vmul.f32 %v1312, 0.01
    %v1964 = vmul.f32 %v1314, 0.01
    %v1965 = vmul.f32 %v1665, 0.01
    %v1966 = vmul.f32 %v1667, 0.01
    %v1967 = vmul.f32 %v1316, 0.01
    %v1968 = vmul.f32 %v1318, 0.01
    %v1969 = vmul.f32 %v1669, 0.01
    %v1970 = vmul.f32 %v1671, 0.01
    %v1971 = vmul.f32 %v1322, 0.01
    %v1972 = vmul.f32 %v1324, 0.01
    %v1973 = vmul.f32 %v1675, 0.01
    %v1974 = vmul.f32 %v1677, 0.01
    %v1975 = vmul.f32 %v1326, 0.01
    %v1976 = vmul.f32 %v1328, 0.01
    %v1977 = vmul.f32 %v1679, 0.01
    %v1978 = vmul.f32 %v1681, 0.01
    %v1979 = vmul.f32 %v1332, 0.01
    %v1980 = vmul.f32 %v1334, 0.01
    %v1981 = vmul.f32 %v1685, 0.01
    %v1982 = vmul.f32 %v1687, 0.01
    %v1983 = vmul.f32 %v1336, 0.01
    %v1984 = vmul.f32 %v1338, 0.01
    %v1985 = vmul.f32 %v1689, 0.01
    %v1986 = vmul.f32 %v1691, 0.01
    %v1987 = vmul.f32 %v1342, 0.01
    %v1988 = vmul.f32 %v1344, 0.01
    %v1989 = vmul.f32 %v1695, 0.01
    %v1990 = vmul.f32 %v1697, 0.01
    %v1991 = vmul.f32 %v1346, 0.01
    %v1992 = vmul.f32 %v1348, 0.01
    %v1993 = vmul.f32 %v1699, 0.01
    %v1994 = vmul.f32 %v1701, 0.01
    %v1995 = vmul.f32 %v1352, 0.01
    %v1996 = vmul.f32 %v1354, 0.01
    %v1997 = vmul.f32 %v1705, 0.01
    %v1998 = vmul.f32 %v1707, 0.01
    %v1999 = vmul.f32 %v1356, 0.01
    %v2000 = vmul.f32 %v1358, 0.01
    %v2001 = vmul.f32 %v1709, 0.01
    %v2002 = vmul.f32 %v1711, 0.01
    %v2003 = vmul.f32 %v1362, 0.01
    %v2004 = vmul.f32 %v1364, 0.01
    %v2005 = vmul.f32 %v1715, 0.01
    %v2006 = vmul.f32 %v1717, 0.01
    %v2007 = vmul.f32 %v1366, 0.01
    %v2008 = vmul.f32 %v1368, 0.01
    %v2009 = vmul.f32 %v1719, 0.01
    %v2010 = vmul.f32 %v1721, 0.01
    %v2011 = vmul.f32 %v1372, 0.01
    %v2012 = vmul.f32 %v1374, 0.01
    %v2013 = vmul.f32 %v1725, 0.01
    %v2014 = vmul.f32 %v1727, 0.01
    %v2015 = vmul.f32 %v1376, 0.01
    %v2016 = vmul.f32 %v1378, 0.01
    %v2017 = vmul.f32 %v1729, 0.01
    %v2018 = vmul.f32 %v1731, 0.01
    %v2019 = vmul.f32 %v1382, 0.01
    %v2020 = vmul.f32 %v1384, 0.01
    %v2021 = vmul.f32 %v1735, 0.01
    %v2022 = vmul.f32 %v1737, 0.01
    %v2023 = vmul.f32 %v1386, 0.01
    %v2024 = vmul.f32 %v1388, 0.01
    %v2025 = vmul.f32 %v1739, 0.01
    %v2026 = vmul.f32 %v1741, 0.01
    %v2027 = vmul.f32 %v1392, 0.01
    %v2028 = vmul.f32 %v1394, 0.01
    %v2029 = vmul.f32 %v1745, 0.01
    %v2030 = vmul.f32 %v1747, 0.01
    %v2031 = vmul.f32 %v1396, 0.01
    %v2032 = vmul.f32 %v1398, 0.01
    %v2033 = vmul.f32 %v1749, 0.01
    %v2034 = vmul.f32 %v1751, 0.01
    %v2035 = vmul.f32 %v1402, 0.01
    %v2036 = vmul.f32 %v1404, 0.01
    %v2037 = vmul.f32 %v1755, 0.01
    %v2038 = vmul.f32 %v1757, 0.01
    %v2039 = vmul.f32 %v1406, 0.01
    %v2040 = vmul.f32 %v1408, 0.01
    %v2041 = vmul.f32 %v1759, 0.01
    %v2042 = vmul.f32 %v1761, 0.01
    %v2043 = vmul.f32 %v1412, 0.01
    %v2044 = vmul.f32 %v1414, 0.01
    %v2045 = vmul.f32 %v1765, 0.01
    %v2046 = vmul.f32 %v1767, 0.01
    %v2047 = vmul.f32 %v1416, 0.01
    %v2048 = vmul.f32 %v1418, 0.01
    %v2049 = vmul.f32 %v1769, 0.01
    %v2050 = vmul.f32 %v1771, 0.01
    %v2051 = vmul.f32 %v1422, 0.01
    %v2052 = vmul.f32 %v1424, 0.01
    %v2053 = vmul.f32 %v1775, 0.01
    %v2054 = vmul.f32 %v1777, 0.01
    %v2055 = vmul.f32 %v1426, 0.01
    %v2056 = vmul.f32 %v1428, 0.01
    %v2057 = vmul.f32 %v1779, 0.01
    %v2058 = vmul.f32 %v1781, 0.01
    %v2059 = vmul.f32 %v1432, 0.01
    %v2060 = vmul.f32 %v1434, 0.01
    %v2061 = vmul.f32 %v1785, 0.01
    %v2062 = vmul.f32 %v1787, 0.01
    %v2063 = vmul.f32 %v1436, 0.01
    %v2064 = vmul.f32 %v1438, 0.01
    %v2065 = vmul.f32 %v1789, 0.01
    %v2066 = vmul.f32 %v1791, 0.01
    %v2067 = vmul.f32 %v1442, 0.01
    %v2068 = vmul.f32 %v1444, 0.01
    %v2069 = vmul.f32 %v1795, 0.01
    %v2070 = vmul.f32 %v1797, 0.01
    %v2071 = vmul.f32 %v1446, 0.01
    %v2072 = vmul.f32 %v1448, 0.01
    %v2073 = vmul.f32 %v1799, 0.01
    %v2074 = vmul.f32 %v1801, 0.01
    %v2075 = vmul.f32 %v1452, 0.01
    %v2076 = vmul.f32 %v1454, 0.01
    %v2077 = vmul.f32 %v1805, 0.01
    %v2078 = vmul.f32 %v1807, 0.01
    %v2079 = vmul.f32 %v1456, 0.01
    %v2080 = vmul.f32 %v1458, 0.01
    %v2081 = vmul.f32 %v1809, 0.01
    %v2082 = vmul.f32 %v1811, 0.01
    %v2083 = vmul.f32 %v1462, 0.01
    %v2084 = vmul.f32 %v1464, 0.01
    %v2085 = vmul.f32 %v1815, 0.01
    %v2086 = vmul.f32 %v1817, 0.01
    %v2087 = vmul.f32 %v1466, 0.01
    %v2088 = vmul.f32 %v1468, 0.01
    %v2089 = vmul.f32 %v1819, 0.01
    %v2090 = vmul.f32 %v1821, 0.01
    %v2091 = vmul.f32 %v1472, 0.01
    %v2092 = vmul.f32 %v1474, 0.01
    %v2093 = vmul.f32 %v1825, 0.01
    %v2094 = vmul.f32 %v1827, 0.01
    %v2095 = vmul.f32 %v1476, 0.01
    %v2096 = vmul.f32 %v1478, 0.01
    %v2097 = vmul.f32 %v1829, 0.01
    %v2098 = vmul.f32 %v1831, 0.01
    %v2099 = vmul.f32 %v1482, 0.01
    %v2100 = vmul.f32 %v1484, 0.01
    %v2101 = vmul.f32 %v1835, 0.01
    %v2102 = vmul.f32 %v1837, 0.01
    %v2103 = vmul.f32 %v1486, 0.01
    %v2104 = vmul.f32 %v1488, 0.01
    %v2105 = vmul.f32 %v1839, 0.01
    %v2106 = vmul.f32 %v1841, 0.01
    %v2107 = vmul.f32 %v1492, 0.01
    %v2108 = vmul.f32 %v1494, 0.01
    %v2109 = vmul.f32 %v1845, 0.01
    %v2110 = vmul.f32 %v1847, 0.01
    %v2111 = vmul.f32 %v1496, 0.01
    %v2112 = vmul.f32 %v1498, 0.01
    %v2113 = vmul.f32 %v1849, 0.01
    %v2114 = vmul.f32 %v1851, 0.01
    %v2115 = vmul.f32 %v1502, 0.01
    %v2116 = vmul.f32 %v1504, 0.01
    %v2117 = vmul.f32 %v1855, 0.01
    %v2118 = vmul.f32 %v1857, 0.01
    %v2119 = vmul.f32 %v1506, 0.01
    %v2120 = vmul.f32 %v1508, 0.01
    %v2121 = vmul.f32 %v1859, 0.01
    %v2122 = vmul.f32 %v1861, 0.01
    %v2123 = vmul.f32 %v1512, 0.01
    %v2124 = vmul.f32 %v1514, 0.01
    %v2125 = vmul.f32 %v1865, 0.01
    %v2126 = vmul.f32 %v1867, 0.01
    %v2127 = vmul.f32 %v1516, 0.01
    %v2128 = vmul.f32 %v1518, 0.01
    %v2129 = vmul.f32 %v1869, 0.01
    %v2130 = vmul.f32 %v1871, 0.01
    %v2131 = vmul.f32 %v1522, 0.01
    %v2132 = vmul.f32 %v1524, 0.01
    %v2133 = vmul.f32 %v1875, 0.01
    %v2134 = vmul.f32 %v1877, 0.01
    %v2135 = vmul.f32 %v1526, 0.01
    %v2136 = vmul.f32 %v1528, 0.01
    %v2137 = vmul.f32 %v1879, 0.01
    %v2138 = vmul.f32 %v1881, 0.01
    %v2139 = vmax.f32 %v1212, %v1883
    %v2140 = vmax.f32 %v1214, %v1884
    %v2141 = vmax.f32 %v1565, %v1885
    %v2142 = vmax.f32 %v1567, %v1886
    %v2143 = vmax.f32 %v1216, %v1887
    %v2144 = vmax.f32 %v1218, %v1888
    %v2145 = vmax.f32 %v1569, %v1889
    %v2146 = vmax.f32 %v1571, %v1890
    %v2147 = vmax.f32 %v1222, %v1891
    %v2148 = vmax.f32 %v1224, %v1892
    %v2149 = vmax.f32 %v1575, %v1893
    %v2150 = vmax.f32 %v1577, %v1894
    %v2151 = vmax.f32 %v1226, %v1895
    %v2152 = vmax.f32 %v1228, %v1896
    %v2153 = vmax.f32 %v1579, %v1897
    %v2154 = vmax.f32 %v1581, %v1898
    %v2155 = vmax.f32 %v1232, %v1899
    %v2156 = vmax.f32 %v1234, %v1900
    %v2157 = vmax.f32 %v1585, %v1901
    %v2158 = vmax.f32 %v1587, %v1902
    %v2159 = vmax.f32 %v1236, %v1903
    %v2160 = vmax.f32 %v1238, %v1904
    %v2161 = vmax.f32 %v1589, %v1905
    %v2162 = vmax.f32 %v1591, %v1906
    %v2163 = vmax.f32 %v1242, %v1907
    %v2164 = vmax.f32 %v1244, %v1908
    %v2165 = vmax.f32 %v1595, %v1909
    %v2166 = vmax.f32 %v1597, %v1910
    %v2167 = vmax.f32 %v1246, %v1911
    %v2168 = vmax.f32 %v1248, %v1912
    %v2169 = vmax.f32 %v1599, %v1913
    %v2170 = vmax.f32 %v1601, %v1914
    %v2171 = vmax.f32 %v1252, %v1915
    %v2172 = vmax.f32 %v1254, %v1916
    %v2173 = vmax.f32 %v1605, %v1917
    %v2174 = vmax.f32 %v1607, %v1918
    %v2175 = vmax.f32 %v1256, %v1919
    %v2176 = vmax.f32 %v1258, %v1920
    %v2177 = vmax.f32 %v1609, %v1921
    %v2178 = vmax.f32 %v1611, %v1922
    %v2179 = vmax.f32 %v1262, %v1923
    %v2180 = vmax.f32 %v1264, %v1924
    %v2181 = vmax.f32 %v1615, %v1925
    %v2182 = vmax.f32 %v1617, %v1926
    %v2183 = vmax.f32 %v1266, %v1927
    %v2184 = vmax.f32 %v1268, %v1928
    %v2185 = vmax.f32 %v1619, %v1929
    %v2186 = vmax.f32 %v1621, %v1930
    %v2187 = vmax.f32 %v1272, %v1931
    %v2188 = vmax.f32 %v1274, %v1932
    %v2189 = vmax.f32 %v1625, %v1933
    %v2190 = vmax.f32 %v1627, %v1934
    %v2191 = vmax.f32 %v1276, %v1935
    %v2192 = vmax.f32 %v1278, %v1936
    %v2193 = vmax.f32 %v1629, %v1937
    %v2194 = vmax.f32 %v1631, %v1938
    %v2195 = vmax.f32 %v1282, %v1939
    %v2196 = vmax.f32 %v1284, %v1940
    %v2197 = vmax.f32 %v1635, %v1941
    %v2198 = vmax.f32 %v1637, %v1942
    %v2199 = vmax.f32 %v1286, %v1943
    %v2200 = vmax.f32 %v1288, %v1944
    %v2201 = vmax.f32 %v1639, %v1945
    %v2202 = vmax.f32 %v1641, %v1946
    %v2203 = vmax.f32 %v1292, %v1947
    %v2204 = vmax.f32 %v1294, %v1948
    %v2205 = vmax.f32 %v1645, %v1949
    %v2206 = vmax.f32 %v1647, %v1950
    %v2207 = vmax.f32 %v1296, %v1951
    %v2208 = vmax.f32 %v1298, %v1952
    %v2209 = vmax.f32 %v1649, %v1953
    %v2210 = vmax.f32 %v1651, %v1954
    %v2211 = vmax.f32 %v1302, %v1955
    %v2212 = vmax.f32 %v1304, %v1956
    %v2213 = vmax.f32 %v1655, %v1957
    %v2214 = vmax.f32 %v1657, %v1958
    %v2215 = vmax.f32 %v1306, %v1959
    %v2216 = vmax.f32 %v1308, %v1960
    %v2217 = vmax.f32 %v1659, %v1961
    %v2218 = vmax.f32 %v1661, %v1962
    %v2219 = vmax.f32 %v1312, %v1963
    %v2220 = vmax.f32 %v1314, %v1964
    %v2221 = vmax.f32 %v1665, %v1965
    %v2222 = vmax.f32 %v1667, %v1966
    %v2223 = vmax.f32 %v1316, %v1967
    %v2224 = vmax.f32 %v1318, %v1968
    %v2225 = vmax.f32 %v1669, %v1969
    %v2226 = vmax.f32 %v1671, %v1970
    %v2227 = vmax.f32 %v1322, %v1971
    %v2228 = vmax.f32 %v1324, %v1972
    %v2229 = vmax.f32 %v1675, %v1973
    %v2230 = vmax.f32 %v1677, %v1974
    %v2231 = vmax.f32 %v1326, %v1975
    %v2232 = vmax.f32 %v1328, %v1976
    %v2233 = vmax.f32 %v1679, %v1977
    %v2234 = vmax.f32 %v1681, %v1978
    %v2235 = vmax.f32 %v1332, %v1979
    %v2236 = vmax.f32 %v1334, %v1980
    %v2237 = vmax.f32 %v1685, %v1981
    %v2238 = vmax.f32 %v1687, %v1982
    %v2239 = vmax.f32 %v1336, %v1983
    %v2240 = vmax.f32 %v1338, %v1984
    %v2241 = vmax.f32 %v1689, %v1985
    %v2242 = vmax.f32 %v1691, %v1986
    %v2243 = vmax.f32 %v1342, %v1987
    %v2244 = vmax.f32 %v1344, %v1988
    %v2245 = vmax.f32 %v1695, %v1989
    %v2246 = vmax.f32 %v1697, %v1990
    %v2247 = vmax.f32 %v1346, %v1991
    %v2248 = vmax.f32 %v1348, %v1992
    %v2249 = vmax.f32 %v1699, %v1993
    %v2250 = vmax.f32 %v1701, %v1994
    %v2251 = vmax.f32 %v1352, %v1995
    %v2252 = vmax.f32 %v1354, %v1996
    %v2253 = vmax.f32 %v1705, %v1997
    %v2254 = vmax.f32 %v1707, %v1998
    %v2255 = vmax.f32 %v1356, %v1999
    %v2256 = vmax.f32 %v1358, %v2000
    %v2257 = vmax.f32 %v1709, %v2001
    %v2258 = vmax.f32 %v1711, %v2002
    %v2259 = vmax.f32 %v1362, %v2003
    %v2260 = vmax.f32 %v1364, %v2004
    %v2261 = vmax.f32 %v1715, %v2005
    %v2262 = vmax.f32 %v1717, %v2006
    %v2263 = vmax.f32 %v1366, %v2007
    %v2264 = vmax.f32 %v1368, %v2008
    %v2265 = vmax.f32 %v1719, %v2009
    %v2266 = vmax.f32 %v1721, %v2010
    %v2267 = vmax.f32 %v1372, %v2011
    %v2268 = vmax.f32 %v1374, %v2012
    %v2269 = vmax.f32 %v1725, %v2013
    %v2270 = vmax.f32 %v1727, %v2014
    %v2271 = vmax.f32 %v1376, %v2015
    %v2272 = vmax.f32 %v1378, %v2016
    %v2273 = vmax.f32 %v1729, %v2017
    %v2274 = vmax.f32 %v1731, %v2018
    %v2275 = vmax.f32 %v1382, %v2019
    %v2276 = vmax.f32 %v1384, %v2020
    %v2277 = vmax.f32 %v1735, %v2021
    %v2278 = vmax.f32 %v1737, %v2022
    %v2279 = vmax.f32 %v1386, %v2023
    %v2280 = vmax.f32 %v1388, %v2024
    %v2281 = vmax.f32 %v1739, %v2025
    %v2282 = vmax.f32 %v1741, %v2026
    %v2283 = vmax.f32 %v1392, %v2027
    %v2284 = vmax.f32 %v1394, %v2028
    %v2285 = vmax.f32 %v1745, %v2029
    %v2286 = vmax.f32 %v1747, %v2030
    %v2287 = vmax.f32 %v1396, %v2031
    %v2288 = vmax.f32 %v1398, %v2032
    %v2289 = vmax.f32 %v1749, %v2033
    %v2290 = vmax.f32 %v1751, %v2034
    %v2291 = vmax.f32 %v1402, %v2035
    %v2292 = vmax.f32 %v1404, %v2036
    %v2293 = vmax.f32 %v1755, %v2037
    %v2294 = vmax.f32 %v1757, %v2038
    %v2295 = vmax.f32 %v1406, %v2039
    %v2296 = vmax.f32 %v1408, %v2040
    %v2297 = vmax.f32 %v1759, %v2041
    %v2298 = vmax.f32 %v1761, %v2042
    %v2299 = vmax.f32 %v1412, %v2043
    %v2300 = vmax.f32 %v1414, %v2044
    %v2301 = vmax.f32 %v1765, %v2045
    %v2302 = vmax.f32 %v1767, %v2046
    %v2303 = vmax.f32 %v1416, %v2047
    %v2304 = vmax.f32 %v1418, %v2048
    %v2305 = vmax.f32 %v1769, %v2049
    %v2306 = vmax.f32 %v1771, %v2050
    %v2307 = vmax.f32 %v1422, %v2051
    %v2308 = vmax.f32 %v1424, %v2052
    %v2309 = vmax.f32 %v1775, %v2053
    %v2310 = vmax.f32 %v1777, %v2054
    %v2311 = vmax.f32 %v1426, %v2055
    %v2312 = vmax.f32 %v1428, %v2056
    %v2313 = vmax.f32 %v1779, %v2057
    %v2314 = vmax.f32 %v1781, %v2058
    %v2315 = vmax.f32 %v1432, %v2059
    %v2316 = vmax.f32 %v1434, %v2060
    %v2317 = vmax.f32 %v1785, %v2061
    %v2318 = vmax.f32 %v1787, %v2062
    %v2319 = vmax.f32 %v1436, %v2063
    %v2320 = vmax.f32 %v1438, %v2064
    %v2321 = vmax.f32 %v1789, %v2065
    %v2322 = vmax.f32 %v1791, %v2066
    %v2323 = vmax.f32 %v1442, %v2067
    %v2324 = vmax.f32 %v1444, %v2068
    %v2325 = vmax.f32 %v1795, %v2069
    %v2326 = vmax.f32 %v1797, %v2070
    %v2327 = vmax.f32 %v1446, %v2071
    %v2328 = vmax.f32 %v1448, %v2072
    %v2329 = vmax.f32 %v1799, %v2073
    %v2330 = vmax.f32 %v1801, %v2074
    %v2331 = vmax.f32 %v1452, %v2075
    %v2332 = vmax.f32 %v1454, %v2076
    %v2333 = vmax.f32 %v1805, %v2077
    %v2334 = vmax.f32 %v1807, %v2078
    %v2335 = vmax.f32 %v1456, %v2079
    %v2336 = vmax.f32 %v1458, %v2080
    %v2337 = vmax.f32 %v1809, %v2081
    %v2338 = vmax.f32 %v1811, %v2082
    %v2339 = vmax.f32 %v1462, %v2083
    %v2340 = vmax.f32 %v1464, %v2084
    %v2341 = vmax.f32 %v1815, %v2085
    %v2342 = vmax.f32 %v1817, %v2086
    %v2343 = vmax.f32 %v1466, %v2087
    %v2344 = vmax.f32 %v1468, %v2088
    %v2345 = vmax.f32 %v1819, %v2089
    %v2346 = vmax.f32 %v1821, %v2090
    %v2347 = vmax.f32 %v1472, %v2091
    %v2348 = vmax.f32 %v1474, %v2092
    %v2349 = vmax.f32 %v1825, %v2093
    %v2350 = vmax.f32 %v1827, %v2094
    %v2351 = vmax.f32 %v1476, %v2095
    %v2352 = vmax.f32 %v1478, %v2096
    %v2353 = vmax.f32 %v1829, %v2097
    %v2354 = vmax.f32 %v1831, %v2098
    %v2355 = vmax.f32 %v1482, %v2099
    %v2356 = vmax.f32 %v1484, %v2100
    %v2357 = vmax.f32 %v1835, %v2101
    %v2358 = vmax.f32 %v1837, %v2102
    %v2359 = vmax.f32 %v1486, %v2103
    %v2360 = vmax.f32 %v1488, %v2104
    %v2361 = vmax.f32 %v1839, %v2105
    %v2362 = vmax.f32 %v1841, %v2106
    %v2363 = vmax.f32 %v1492, %v2107
    %v2364 = vmax.f32 %v1494, %v2108
    %v2365 = vmax.f32 %v1845, %v2109
    %v2366 = vmax.f32 %v1847, %v2110
    %v2367 = vmax.f32 %v1496, %v2111
    %v2368 = vmax.f32 %v1498, %v2112
    %v2369 = vmax.f32 %v1849, %v2113
    %v2370 = vmax.f32 %v1851, %v2114
    %v2371 = vmax.f32 %v1502, %v2115
    %v2372 = vmax.f32 %v1504, %v2116
    %v2373 = vmax.f32 %v1855, %v2117
    %v2374 = vmax.f32 %v1857, %v2118
    %v2375 = vmax.f32 %v1506, %v2119
    %v2376 = vmax.f32 %v1508, %v2120
    %v2377 = vmax.f32 %v1859, %v2121
    %v2378 = vmax.f32 %v1861, %v2122
    %v2379 = vmax.f32 %v1512, %v2123
    %v2380 = vmax.f32 %v1514, %v2124
    %v2381 = vmax.f32 %v1865, %v2125
    %v2382 = vmax.f32 %v1867, %v2126
    %v2383 = vmax.f32 %v1516, %v2127
    %v2384 = vmax.f32 %v1518, %v2128
    %v2385 = vmax.f32 %v1869, %v2129
    %v2386 = vmax.f32 %v1871, %v2130
    %v2387 = vmax.f32 %v1522, %v2131
    %v2388 = vmax.f32 %v1524, %v2132
    %v2389 = vmax.f32 %v1875, %v2133
    %v2390 = vmax.f32 %v1877, %v2134
    %v2391 = vmax.f32 %v1526, %v2135
    %v2392 = vmax.f32 %v1528, %v2136
    %v2393 = vmax.f32 %v1879, %v2137
    %v2394 = vmax.f32 %v1881, %v2138
    %v2395 = vld [vmem:[%s5] sm:$0xff]
    %v2396 = vld [vmem:[%s5 + $0x8] sm:$0xff]
    %v2397 = vld [vmem:[%s5 + $0x10] sm:$0xff]
    %v2398 = vld [vmem:[%s5 + $0x18] sm:$0xff]
    %v2399 = vld [vmem:[%s5 + $0x20] sm:$0xff]
    %v2400 = vld [vmem:[%s5 + $0x28] sm:$0xff]
    %v2401 = vld [vmem:[%s5 + $0x30] sm:$0xff]
    %v2402 = vld [vmem:[%s5 + $0x38] sm:$0xff]
    %v2403 = vld [vmem:[%s5 + $0x40] sm:$0xff]
    %v2404 = vld [vmem:[%s5 + $0x48] sm:$0xff]
    %v2405 = vld [vmem:[%s5 + $0x50] sm:$0xff]
    %v2406 = vld [vmem:[%s5 + $0x58] sm:$0xff]
    %v2407 = vld [vmem:[%s5 + $0x60] sm:$0xff]
    %v2408 = vld [vmem:[%s5 + $0x68] sm:$0xff]
    %v2409 = vld [vmem:[%s5 + $0x70] sm:$0xff]
    %v2410 = vld [vmem:[%s5 + $0x78] sm:$0xff]
    %v2411 = vld [vmem:[%s5 + $0x80] sm:$0xff]
    %v2412 = vld [vmem:[%s5 + $0x88] sm:$0xff]
    %v2413 = vld [vmem:[%s5 + $0x90] sm:$0xff]
    %v2414 = vld [vmem:[%s5 + $0x98] sm:$0xff]
    %v2415 = vld [vmem:[%s5 + $0xa0] sm:$0xff]
    %v2416 = vld [vmem:[%s5 + $0xa8] sm:$0xff]
    %v2417 = vld [vmem:[%s5 + $0xb0] sm:$0xff]
    %v2418 = vld [vmem:[%s5 + $0xb8] sm:$0xff]
    %v2419 = vld [vmem:[%s5 + $0xc0] sm:$0xff]
    %v2420 = vld [vmem:[%s5 + $0xc8] sm:$0xff]
    %v2421 = vld [vmem:[%s5 + $0xd0] sm:$0xff]
    %v2422 = vld [vmem:[%s5 + $0xd8] sm:$0xff]
    %v2423 = vld [vmem:[%s5 + $0xe0] sm:$0xff]
    %v2424 = vld [vmem:[%s5 + $0xe8] sm:$0xff]
    %v2425 = vld [vmem:[%s5 + $0xf0] sm:$0xff]
    %v2426 = vld [vmem:[%s5 + $0xf8] sm:$0xff]
    %v2427 = vpack.c.bf16 %v2143, %v2139
    %v2428 = vpack.c.bf16 %v2144, %v2140
    %v2429 = vpack.c.bf16 %v2145, %v2141
    %v2430 = vpack.c.bf16 %v2146, %v2142
    %v2431 = vpack.c.bf16 %v2151, %v2147
    %v2432 = vpack.c.bf16 %v2152, %v2148
    %v2433 = vpack.c.bf16 %v2153, %v2149
    %v2434 = vpack.c.bf16 %v2154, %v2150
    %v2435 = vpack.c.bf16 %v2159, %v2155
    %v2436 = vpack.c.bf16 %v2160, %v2156
    %v2437 = vpack.c.bf16 %v2161, %v2157
    %v2438 = vpack.c.bf16 %v2162, %v2158
    %v2439 = vpack.c.bf16 %v2167, %v2163
    %v2440 = vpack.c.bf16 %v2168, %v2164
    %v2441 = vpack.c.bf16 %v2169, %v2165
    %v2442 = vpack.c.bf16 %v2170, %v2166
    %v2443 = vpack.c.bf16 %v2175, %v2171
    %v2444 = vpack.c.bf16 %v2176, %v2172
    %v2445 = vpack.c.bf16 %v2177, %v2173
    %v2446 = vpack.c.bf16 %v2178, %v2174
    %v2447 = vpack.c.bf16 %v2183, %v2179
    %v2448 = vpack.c.bf16 %v2184, %v2180
    %v2449 = vpack.c.bf16 %v2185, %v2181
    %v2450 = vpack.c.bf16 %v2186, %v2182
    %v2451 = vpack.c.bf16 %v2191, %v2187
    %v2452 = vpack.c.bf16 %v2192, %v2188
    %v2453 = vpack.c.bf16 %v2193, %v2189
    %v2454 = vpack.c.bf16 %v2194, %v2190
    %v2455 = vpack.c.bf16 %v2199, %v2195
    %v2456 = vpack.c.bf16 %v2200, %v2196
    %v2457 = vpack.c.bf16 %v2201, %v2197
    %v2458 = vpack.c.bf16 %v2202, %v2198
    %v2459 = vpack.c.bf16 %v2207, %v2203
    %v2460 = vpack.c.bf16 %v2208, %v2204
    %v2461 = vpack.c.bf16 %v2209, %v2205
    %v2462 = vpack.c.bf16 %v2210, %v2206
    %v2463 = vpack.c.bf16 %v2215, %v2211
    %v2464 = vpack.c.bf16 %v2216, %v2212
    %v2465 = vpack.c.bf16 %v2217, %v2213
    %v2466 = vpack.c.bf16 %v2218, %v2214
    %v2467 = vpack.c.bf16 %v2223, %v2219
    %v2468 = vpack.c.bf16 %v2224, %v2220
    %v2469 = vpack.c.bf16 %v2225, %v2221
    %v2470 = vpack.c.bf16 %v2226, %v2222
    %v2471 = vpack.c.bf16 %v2231, %v2227
    %v2472 = vpack.c.bf16 %v2232, %v2228
    %v2473 = vpack.c.bf16 %v2233, %v2229
    %v2474 = vpack.c.bf16 %v2234, %v2230
    %v2475 = vpack.c.bf16 %v2239, %v2235
    %v2476 = vpack.c.bf16 %v2240, %v2236
    %v2477 = vpack.c.bf16 %v2241, %v2237
    %v2478 = vpack.c.bf16 %v2242, %v2238
    %v2479 = vpack.c.bf16 %v2247, %v2243
    %v2480 = vpack.c.bf16 %v2248, %v2244
    %v2481 = vpack.c.bf16 %v2249, %v2245
    %v2482 = vpack.c.bf16 %v2250, %v2246
    %v2483 = vpack.c.bf16 %v2255, %v2251
    %v2484 = vpack.c.bf16 %v2256, %v2252
    %v2485 = vpack.c.bf16 %v2257, %v2253
    %v2486 = vpack.c.bf16 %v2258, %v2254
    %v2487 = vpack.c.bf16 %v2263, %v2259
    %v2488 = vpack.c.bf16 %v2264, %v2260
    %v2489 = vpack.c.bf16 %v2265, %v2261
    %v2490 = vpack.c.bf16 %v2266, %v2262
    %v2491 = vpack.c.bf16 %v2271, %v2267
    %v2492 = vpack.c.bf16 %v2272, %v2268
    %v2493 = vpack.c.bf16 %v2273, %v2269
    %v2494 = vpack.c.bf16 %v2274, %v2270
    %v2495 = vpack.c.bf16 %v2279, %v2275
    %v2496 = vpack.c.bf16 %v2280, %v2276
    %v2497 = vpack.c.bf16 %v2281, %v2277
    %v2498 = vpack.c.bf16 %v2282, %v2278
    %v2499 = vpack.c.bf16 %v2287, %v2283
    %v2500 = vpack.c.bf16 %v2288, %v2284
    %v2501 = vpack.c.bf16 %v2289, %v2285
    %v2502 = vpack.c.bf16 %v2290, %v2286
    %v2503 = vpack.c.bf16 %v2295, %v2291
    %v2504 = vpack.c.bf16 %v2296, %v2292
    %v2505 = vpack.c.bf16 %v2297, %v2293
    %v2506 = vpack.c.bf16 %v2298, %v2294
    %v2507 = vpack.c.bf16 %v2303, %v2299
    %v2508 = vpack.c.bf16 %v2304, %v2300
    %v2509 = vpack.c.bf16 %v2305, %v2301
    %v2510 = vpack.c.bf16 %v2306, %v2302
    %v2511 = vpack.c.bf16 %v2311, %v2307
    %v2512 = vpack.c.bf16 %v2312, %v2308
    %v2513 = vpack.c.bf16 %v2313, %v2309
    %v2514 = vpack.c.bf16 %v2314, %v2310
    %v2515 = vpack.c.bf16 %v2319, %v2315
    %v2516 = vpack.c.bf16 %v2320, %v2316
    %v2517 = vpack.c.bf16 %v2321, %v2317
    %v2518 = vpack.c.bf16 %v2322, %v2318
    %v2519 = vpack.c.bf16 %v2327, %v2323
    %v2520 = vpack.c.bf16 %v2328, %v2324
    %v2521 = vpack.c.bf16 %v2329, %v2325
    %v2522 = vpack.c.bf16 %v2330, %v2326
    %v2523 = vpack.c.bf16 %v2335, %v2331
    %v2524 = vpack.c.bf16 %v2336, %v2332
    %v2525 = vpack.c.bf16 %v2337, %v2333
    %v2526 = vpack.c.bf16 %v2338, %v2334
    %v2527 = vpack.c.bf16 %v2343, %v2339
    %v2528 = vpack.c.bf16 %v2344, %v2340
    %v2529 = vpack.c.bf16 %v2345, %v2341
    %v2530 = vpack.c.bf16 %v2346, %v2342
    %v2531 = vpack.c.bf16 %v2351, %v2347
    %v2532 = vpack.c.bf16 %v2352, %v2348
    %v2533 = vpack.c.bf16 %v2353, %v2349
    %v2534 = vpack.c.bf16 %v2354, %v2350
    %v2535 = vpack.c.bf16 %v2359, %v2355
    %v2536 = vpack.c.bf16 %v2360, %v2356
    %v2537 = vpack.c.bf16 %v2361, %v2357
    %v2538 = vpack.c.bf16 %v2362, %v2358
    %v2539 = vpack.c.bf16 %v2367, %v2363
    %v2540 = vpack.c.bf16 %v2368, %v2364
    %v2541 = vpack.c.bf16 %v2369, %v2365
    %v2542 = vpack.c.bf16 %v2370, %v2366
    %v2543 = vpack.c.bf16 %v2375, %v2371
    %v2544 = vpack.c.bf16 %v2376, %v2372
    %v2545 = vpack.c.bf16 %v2377, %v2373
    %v2546 = vpack.c.bf16 %v2378, %v2374
    %v2547 = vpack.c.bf16 %v2383, %v2379
    %v2548 = vpack.c.bf16 %v2384, %v2380
    %v2549 = vpack.c.bf16 %v2385, %v2381
    %v2550 = vpack.c.bf16 %v2386, %v2382
    %v2551 = vpack.c.bf16 %v2391, %v2387
    %v2552 = vpack.c.bf16 %v2392, %v2388
    %v2553 = vpack.c.bf16 %v2393, %v2389
    %v2554 = vpack.c.bf16 %v2394, %v2390
    %v2555 = vld [vmem:[%s6] sm:$0xff]
    %v2556 = vld [vmem:[%s6 + $0x8] sm:$0xff]
    %v2557 = vld [vmem:[%s6 + $0x10] sm:$0xff]
    %v2558 = vld [vmem:[%s6 + $0x18] sm:$0xff]
    %v2559 = vld [vmem:[%s6 + $0x20] sm:$0xff]
    %v2560 = vld [vmem:[%s6 + $0x28] sm:$0xff]
    %v2561 = vld [vmem:[%s6 + $0x30] sm:$0xff]
    %v2562 = vld [vmem:[%s6 + $0x38] sm:$0xff]
    %v2563 = vld [vmem:[%s6 + $0x40] sm:$0xff]
    %v2564 = vld [vmem:[%s6 + $0x48] sm:$0xff]
    %v2565 = vld [vmem:[%s6 + $0x50] sm:$0xff]
    %v2566 = vld [vmem:[%s6 + $0x58] sm:$0xff]
    %v2567 = vld [vmem:[%s6 + $0x60] sm:$0xff]
    %v2568 = vld [vmem:[%s6 + $0x68] sm:$0xff]
    %v2569 = vld [vmem:[%s6 + $0x70] sm:$0xff]
    %v2570 = vld [vmem:[%s6 + $0x78] sm:$0xff]
    %2572 = vset.pattern.permute.xlu0 0
    %2573 = vperm.xlu0 %2572, %v2555
    %v2574 = vpop.permute.xlu0 %2573
    %2577 = vset.pattern.permute.xlu0 0
    %2578 = vperm.xlu0 %2577, %v2556
    %v2579 = vpop.permute.xlu0 %2578
    %2582 = vset.pattern.permute.xlu0 0
    %2583 = vperm.xlu0 %2582, %v2557
    %v2584 = vpop.permute.xlu0 %2583
    %2587 = vset.pattern.permute.xlu0 0
    %2588 = vperm.xlu0 %2587, %v2558
    %v2589 = vpop.permute.xlu0 %2588
    %2592 = vset.pattern.permute.xlu0 0
    %2593 = vperm.xlu0 %2592, %v2559
    %v2594 = vpop.permute.xlu0 %2593
    %2597 = vset.pattern.permute.xlu0 0
    %2598 = vperm.xlu0 %2597, %v2560
    %v2599 = vpop.permute.xlu0 %2598
    %2602 = vset.pattern.permute.xlu0 0
    %2603 = vperm.xlu0 %2602, %v2561
    %v2604 = vpop.permute.xlu0 %2603
    %2607 = vset.pattern.permute.xlu0 0
    %2608 = vperm.xlu0 %2607, %v2562
    %v2609 = vpop.permute.xlu0 %2608
    %2612 = vset.pattern.permute.xlu0 0
    %2613 = vperm.xlu0 %2612, %v2563
    %v2614 = vpop.permute.xlu0 %2613
    %2617 = vset.pattern.permute.xlu0 0
    %2618 = vperm.xlu0 %2617, %v2564
    %v2619 = vpop.permute.xlu0 %2618
    %2622 = vset.pattern.permute.xlu0 0
    %2623 = vperm.xlu0 %2622, %v2565
    %v2624 = vpop.permute.xlu0 %2623
    %2627 = vset.pattern.permute.xlu0 0
    %2628 = vperm.xlu0 %2627, %v2566
    %v2629 = vpop.permute.xlu0 %2628
    %2632 = vset.pattern.permute.xlu0 0
    %2633 = vperm.xlu0 %2632, %v2567
    %v2634 = vpop.permute.xlu0 %2633
    %2637 = vset.pattern.permute.xlu0 0
    %2638 = vperm.xlu0 %2637, %v2568
    %v2639 = vpop.permute.xlu0 %2638
    %2642 = vset.pattern.permute.xlu0 0
    %2643 = vperm.xlu0 %2642, %v2569
    %v2644 = vpop.permute.xlu0 %2643
    %2647 = vset.pattern.permute.xlu0 0
    %2648 = vperm.xlu0 %2647, %v2570
    %v2649 = vpop.permute.xlu0 %2648
    %v2683 = vunpack.c.l.b16 %v2395
    %v2684 = vunpack.c.h.b16 %v2395
    %v2685 = vunpack.c.l.b16 %v2396
    %v2686 = vunpack.c.h.b16 %v2396
    %v2687 = vunpack.c.l.b16 %v2397
    %v2688 = vunpack.c.h.b16 %v2397
    %v2689 = vunpack.c.l.b16 %v2398
    %v2690 = vunpack.c.h.b16 %v2398
    %v2691 = vunpack.c.l.b16 %v2399
    %v2692 = vunpack.c.h.b16 %v2399
    %v2693 = vunpack.c.l.b16 %v2400
    %v2694 = vunpack.c.h.b16 %v2400
    %v2695 = vunpack.c.l.b16 %v2401
    %v2696 = vunpack.c.h.b16 %v2401
    %v2697 = vunpack.c.l.b16 %v2402
    %v2698 = vunpack.c.h.b16 %v2402
    %v2699 = vunpack.c.l.b16 %v2403
    %v2700 = vunpack.c.h.b16 %v2403
    %v2701 = vunpack.c.l.b16 %v2404
    %v2702 = vunpack.c.h.b16 %v2404
    %v2703 = vunpack.c.l.b16 %v2405
    %v2704 = vunpack.c.h.b16 %v2405
    %v2705 = vunpack.c.l.b16 %v2406
    %v2706 = vunpack.c.h.b16 %v2406
    %v2707 = vunpack.c.l.b16 %v2407
    %v2708 = vunpack.c.h.b16 %v2407
    %v2709 = vunpack.c.l.b16 %v2408
    %v2710 = vunpack.c.h.b16 %v2408
    %v2711 = vunpack.c.l.b16 %v2409
    %v2712 = vunpack.c.h.b16 %v2409
    %v2713 = vunpack.c.l.b16 %v2410
    %v2714 = vunpack.c.h.b16 %v2410
    %v2715 = vunpack.c.l.b16 %v2411
    %v2716 = vunpack.c.h.b16 %v2411
    %v2717 = vunpack.c.l.b16 %v2412
    %v2718 = vunpack.c.h.b16 %v2412
    %v2719 = vunpack.c.l.b16 %v2413
    %v2720 = vunpack.c.h.b16 %v2413
    %v2721 = vunpack.c.l.b16 %v2414
    %v2722 = vunpack.c.h.b16 %v2414
    %v2723 = vunpack.c.l.b16 %v2415
    %v2724 = vunpack.c.h.b16 %v2415
    %v2725 = vunpack.c.l.b16 %v2416
    %v2726 = vunpack.c.h.b16 %v2416
    %v2727 = vunpack.c.l.b16 %v2417
    %v2728 = vunpack.c.h.b16 %v2417
    %v2729 = vunpack.c.l.b16 %v2418
    %v2730 = vunpack.c.h.b16 %v2418
    %v2731 = vunpack.c.l.b16 %v2419
    %v2732 = vunpack.c.h.b16 %v2419
    %v2733 = vunpack.c.l.b16 %v2420
    %v2734 = vunpack.c.h.b16 %v2420
    %v2735 = vunpack.c.l.b16 %v2421
    %v2736 = vunpack.c.h.b16 %v2421
    %v2737 = vunpack.c.l.b16 %v2422
    %v2738 = vunpack.c.h.b16 %v2422
    %v2739 = vunpack.c.l.b16 %v2423
    %v2740 = vunpack.c.h.b16 %v2423
    %v2741 = vunpack.c.l.b16 %v2424
    %v2742 = vunpack.c.h.b16 %v2424
    %v2743 = vunpack.c.l.b16 %v2425
    %v2744 = vunpack.c.h.b16 %v2425
    %v2745 = vunpack.c.l.b16 %v2426
    %v2746 = vunpack.c.h.b16 %v2426
    %v2747 = vpack.c.b16 %v2687, %v2683
    %v2748 = vpack.c.b16 %v2688, %v2684
    %v2749 = vpack.c.b16 %v2689, %v2685
    %v2750 = vpack.c.b16 %v2690, %v2686
    %v2751 = vpack.c.b16 %v2695, %v2691
    %v2752 = vpack.c.b16 %v2696, %v2692
    %v2753 = vpack.c.b16 %v2697, %v2693
    %v2754 = vpack.c.b16 %v2698, %v2694
    %v2755 = vpack.c.b16 %v2703, %v2699
    %v2756 = vpack.c.b16 %v2704, %v2700
    %v2757 = vpack.c.b16 %v2705, %v2701
    %v2758 = vpack.c.b16 %v2706, %v2702
    %v2759 = vpack.c.b16 %v2711, %v2707
    %v2760 = vpack.c.b16 %v2712, %v2708
    %v2761 = vpack.c.b16 %v2713, %v2709
    %v2762 = vpack.c.b16 %v2714, %v2710
    %v2763 = vpack.c.b16 %v2719, %v2715
    %v2764 = vpack.c.b16 %v2720, %v2716
    %v2765 = vpack.c.b16 %v2721, %v2717
    %v2766 = vpack.c.b16 %v2722, %v2718
    %v2767 = vpack.c.b16 %v2727, %v2723
    %v2768 = vpack.c.b16 %v2728, %v2724
    %v2769 = vpack.c.b16 %v2729, %v2725
    %v2770 = vpack.c.b16 %v2730, %v2726
    %v2771 = vpack.c.b16 %v2735, %v2731
    %v2772 = vpack.c.b16 %v2736, %v2732
    %v2773 = vpack.c.b16 %v2737, %v2733
    %v2774 = vpack.c.b16 %v2738, %v2734
    %v2775 = vpack.c.b16 %v2743, %v2739
    %v2776 = vpack.c.b16 %v2744, %v2740
    %v2777 = vpack.c.b16 %v2745, %v2741
    %v2778 = vpack.c.b16 %v2746, %v2742
    %2811 = vmatprep.subr.bf16.mxu0 %v2456
    %2812 = vmatpush1.bf16.msra.mxu0 %v2455
    %2813 = vmatprep.subr.bf16.mxu0 %v2452
    %2814 = vmatpush1.bf16.msra.mxu0 %v2451
    %2815 = vmatprep.subr.bf16.mxu0 %v2448
    %2816 = vmatpush1.bf16.msra.mxu0 %v2447
    %2817 = vmatprep.subr.bf16.mxu0 %v2444
    %2818 = vmatpush1.bf16.msra.mxu0 %v2443
    %2819 = vmatprep.subr.bf16.mxu0 %v2440
    %2820 = vmatpush1.bf16.msra.mxu0 %v2439
    %2821 = vmatprep.subr.bf16.mxu0 %v2436
    %2822 = vmatpush1.bf16.msra.mxu0 %v2435
    %2823 = vmatprep.subr.bf16.mxu0 %v2432
    %2824 = vmatpush1.bf16.msra.mxu0 %v2431
    %2825 = vmatprep.subr.bf16.mxu0 %v2428
    %2826 = vmatpush1.bf16.msra.mxu0 %v2427
    %2827 = vmatprep.subr.bf16.mxu0 %v2488
    %2828 = vmatpush2.bf16.msra.mxu0 %v2487
    %2829 = vmatprep.subr.bf16.mxu0 %v2484
    %2830 = vmatpush2.bf16.msra.mxu0 %v2483
    %2831 = vmatprep.subr.bf16.mxu0 %v2480
    %2832 = vmatpush2.bf16.msra.mxu0 %v2479
    %2833 = vmatprep.subr.bf16.mxu0 %v2476
    %2834 = vmatpush2.bf16.msra.mxu0 %v2475
    %2835 = vmatprep.subr.bf16.mxu0 %v2472
    %2836 = vmatpush2.bf16.msra.mxu0 %v2471
    %2837 = vmatprep.subr.bf16.mxu0 %v2468
    %2838 = vmatpush2.bf16.msra.mxu0 %v2467
    %2839 = vmatprep.subr.bf16.mxu0 %v2464
    %2840 = vmatpush2.bf16.msra.mxu0 %v2463
    %2841 = vmatprep.subr.bf16.mxu0 %v2460
    %2842 = vmatpush2.bf16.msra.mxu0 %v2459
    %2843 = vmatprep.mubr.bf16.mxu0 %v2748
    %2844 = vmatmul.mubr.bf16.gmra.mxu0 %v2747
    %v2845 = vpop.f32.mrf.mxu0
    %v2846 = vadd.f32 %v2574, %v2845
    %v2847 = vpop.f32.mrf.mxu0
    %v2848 = vadd.f32 %v2574, %v2847
    %v2849 = vpop.f32.mrf.mxu0
    %v2850 = vadd.f32 %v2579, %v2849
    %v2851 = vpop.f32.mrf.mxu0
    %v2852 = vadd.f32 %v2579, %v2851
    %2853 = vmatprep.mubr.bf16.mxu0 %v2752
    %2854 = vmatmul.mubr.bf16.gmra.mxu0 %v2751
    %v2855 = vpop.f32.mrf.mxu0
    %v2856 = vadd.f32 %v2584, %v2855
    %v2857 = vpop.f32.mrf.mxu0
    %v2858 = vadd.f32 %v2584, %v2857
    %v2859 = vpop.f32.mrf.mxu0
    %v2860 = vadd.f32 %v2589, %v2859
    %v2861 = vpop.f32.mrf.mxu0
    %v2862 = vadd.f32 %v2589, %v2861
    %2863 = vmatprep.mubr.bf16.mxu0 %v2756
    %2864 = vmatmul.mubr.bf16.gmra.mxu0 %v2755
    %v2865 = vpop.f32.mrf.mxu0
    %v2866 = vadd.f32 %v2594, %v2865
    %v2867 = vpop.f32.mrf.mxu0
    %v2868 = vadd.f32 %v2594, %v2867
    %v2869 = vpop.f32.mrf.mxu0
    %v2870 = vadd.f32 %v2599, %v2869
    %v2871 = vpop.f32.mrf.mxu0
    %v2872 = vadd.f32 %v2599, %v2871
    %2873 = vmatprep.mubr.bf16.mxu0 %v2760
    %2874 = vmatmul.mubr.bf16.gmra.mxu0 %v2759
    %v2875 = vpop.f32.mrf.mxu0
    %v2876 = vadd.f32 %v2604, %v2875
    %v2877 = vpop.f32.mrf.mxu0
    %v2878 = vadd.f32 %v2604, %v2877
    %v2879 = vpop.f32.mrf.mxu0
    %v2880 = vadd.f32 %v2609, %v2879
    %v2881 = vpop.f32.mrf.mxu0
    %v2882 = vadd.f32 %v2609, %v2881
    %2883 = vmatprep.mubr.bf16.mxu0 %v2764
    %2884 = vmatmul.mubr.bf16.gmra.mxu0 %v2763
    %v2885 = vpop.f32.mrf.mxu0
    %v2886 = vadd.f32 %v2614, %v2885
    %v2887 = vpop.f32.mrf.mxu0
    %v2888 = vadd.f32 %v2614, %v2887
    %v2889 = vpop.f32.mrf.mxu0
    %v2890 = vadd.f32 %v2619, %v2889
    %v2891 = vpop.f32.mrf.mxu0
    %v2892 = vadd.f32 %v2619, %v2891
    %2893 = vmatprep.mubr.bf16.mxu0 %v2768
    %2894 = vmatmul.mubr.bf16.gmra.mxu0 %v2767
    %v2895 = vpop.f32.mrf.mxu0
    %v2896 = vadd.f32 %v2624, %v2895
    %v2897 = vpop.f32.mrf.mxu0
    %v2898 = vadd.f32 %v2624, %v2897
    %v2899 = vpop.f32.mrf.mxu0
    %v2900 = vadd.f32 %v2629, %v2899
    %v2901 = vpop.f32.mrf.mxu0
    %v2902 = vadd.f32 %v2629, %v2901
    %2903 = vmatprep.mubr.bf16.mxu0 %v2772
    %2904 = vmatmul.mubr.bf16.gmra.mxu0 %v2771
    %v2905 = vpop.f32.mrf.mxu0
    %v2906 = vadd.f32 %v2634, %v2905
    %v2907 = vpop.f32.mrf.mxu0
    %v2908 = vadd.f32 %v2634, %v2907
    %v2909 = vpop.f32.mrf.mxu0
    %v2910 = vadd.f32 %v2639, %v2909
    %v2911 = vpop.f32.mrf.mxu0
    %v2912 = vadd.f32 %v2639, %v2911
    %2913 = vmatprep.mubr.bf16.mxu0 %v2776
    %2914 = vmatmul.mubr.bf16.gmra.mxu0 %v2775
    %v2915 = vpop.f32.mrf.mxu0
    %v2916 = vadd.f32 %v2644, %v2915
    %v2917 = vpop.f32.mrf.mxu0
    %v2918 = vadd.f32 %v2644, %v2917
    %v2919 = vpop.f32.mrf.mxu0
    %v2920 = vadd.f32 %v2649, %v2919
    %v2921 = vpop.f32.mrf.mxu0
    %v2922 = vadd.f32 %v2649, %v2921
    %2923 = vdwg.mxu0
    %2924 = vmatprep.subr.bf16.mxu0 %v2520
    %2925 = vmatpush1.bf16.msra.mxu0 %v2519
    %2926 = vmatprep.subr.bf16.mxu0 %v2516
    %2927 = vmatpush1.bf16.msra.mxu0 %v2515
    %2928 = vmatprep.subr.bf16.mxu0 %v2512
    %2929 = vmatpush1.bf16.msra.mxu0 %v2511
    %2930 = vmatprep.subr.bf16.mxu0 %v2508
    %2931 = vmatpush1.bf16.msra.mxu0 %v2507
    %2932 = vmatprep.subr.bf16.mxu0 %v2504
    %2933 = vmatpush1.bf16.msra.mxu0 %v2503
    %2934 = vmatprep.subr.bf16.mxu0 %v2500
    %2935 = vmatpush1.bf16.msra.mxu0 %v2499
    %2936 = vmatprep.subr.bf16.mxu0 %v2496
    %2937 = vmatpush1.bf16.msra.mxu0 %v2495
    %2938 = vmatprep.subr.bf16.mxu0 %v2492
    %2939 = vmatpush1.bf16.msra.mxu0 %v2491
    %2940 = vmatprep.subr.bf16.mxu0 %v2552
    %2941 = vmatpush2.bf16.msra.mxu0 %v2551
    %2942 = vmatprep.subr.bf16.mxu0 %v2548
    %2943 = vmatpush2.bf16.msra.mxu0 %v2547
    %2944 = vmatprep.subr.bf16.mxu0 %v2544
    %2945 = vmatpush2.bf16.msra.mxu0 %v2543
    %2946 = vmatprep.subr.bf16.mxu0 %v2540
    %2947 = vmatpush2.bf16.msra.mxu0 %v2539
    %2948 = vmatprep.subr.bf16.mxu0 %v2536
    %2949 = vmatpush2.bf16.msra.mxu0 %v2535
    %2950 = vmatprep.subr.bf16.mxu0 %v2532
    %2951 = vmatpush2.bf16.msra.mxu0 %v2531
    %2952 = vmatprep.subr.bf16.mxu0 %v2528
    %2953 = vmatpush2.bf16.msra.mxu0 %v2527
    %2954 = vmatprep.subr.bf16.mxu0 %v2524
    %2955 = vmatpush2.bf16.msra.mxu0 %v2523
    %2956 = vmatprep.mubr.bf16.mxu0 %v2750
    %2957 = vmatmul.mubr.bf16.gmra.mxu0 %v2749
    %v2958 = vpop.f32.mrf.mxu0
    %v2959 = vadd.f32 %v2846, %v2958
    %v2960 = vpop.f32.mrf.mxu0
    %v2961 = vadd.f32 %v2848, %v2960
    %v2962 = vpop.f32.mrf.mxu0
    %v2963 = vadd.f32 %v2850, %v2962
    %v2964 = vpop.f32.mrf.mxu0
    %v2965 = vadd.f32 %v2852, %v2964
    %2966 = vmatprep.mubr.bf16.mxu0 %v2754
    %2967 = vmatmul.mubr.bf16.gmra.mxu0 %v2753
    %v2968 = vpop.f32.mrf.mxu0
    %v2969 = vadd.f32 %v2856, %v2968
    %v2970 = vpop.f32.mrf.mxu0
    %v2971 = vadd.f32 %v2858, %v2970
    %v2972 = vpop.f32.mrf.mxu0
    %v2973 = vadd.f32 %v2860, %v2972
    %v2974 = vpop.f32.mrf.mxu0
    %v2975 = vadd.f32 %v2862, %v2974
    %2976 = vmatprep.mubr.bf16.mxu0 %v2758
    %2977 = vmatmul.mubr.bf16.gmra.mxu0 %v2757
    %v2978 = vpop.f32.mrf.mxu0
    %v2979 = vadd.f32 %v2866, %v2978
    %v2980 = vpop.f32.mrf.mxu0
    %v2981 = vadd.f32 %v2868, %v2980
    %v2982 = vpop.f32.mrf.mxu0
    %v2983 = vadd.f32 %v2870, %v2982
    %v2984 = vpop.f32.mrf.mxu0
    %v2985 = vadd.f32 %v2872, %v2984
    %2986 = vmatprep.mubr.bf16.mxu0 %v2762
    %2987 = vmatmul.mubr.bf16.gmra.mxu0 %v2761
    %v2988 = vpop.f32.mrf.mxu0
    %v2989 = vadd.f32 %v2876, %v2988
    %v2990 = vpop.f32.mrf.mxu0
    %v2991 = vadd.f32 %v2878, %v2990
    %v2992 = vpop.f32.mrf.mxu0
    %v2993 = vadd.f32 %v2880, %v2992
    %v2994 = vpop.f32.mrf.mxu0
    %v2995 = vadd.f32 %v2882, %v2994
    %2996 = vmatprep.mubr.bf16.mxu0 %v2766
    %2997 = vmatmul.mubr.bf16.gmra.mxu0 %v2765
    %v2998 = vpop.f32.mrf.mxu0
    %v2999 = vadd.f32 %v2886, %v2998
    %v3000 = vpop.f32.mrf.mxu0
    %v3001 = vadd.f32 %v2888, %v3000
    %v3002 = vpop.f32.mrf.mxu0
    %v3003 = vadd.f32 %v2890, %v3002
    %v3004 = vpop.f32.mrf.mxu0
    %v3005 = vadd.f32 %v2892, %v3004
    %3006 = vmatprep.mubr.bf16.mxu0 %v2770
    %3007 = vmatmul.mubr.bf16.gmra.mxu0 %v2769
    %v3008 = vpop.f32.mrf.mxu0
    %v3009 = vadd.f32 %v2896, %v3008
    %v3010 = vpop.f32.mrf.mxu0
    %v3011 = vadd.f32 %v2898, %v3010
    %v3012 = vpop.f32.mrf.mxu0
    %v3013 = vadd.f32 %v2900, %v3012
    %v3014 = vpop.f32.mrf.mxu0
    %v3015 = vadd.f32 %v2902, %v3014
    %3016 = vmatprep.mubr.bf16.mxu0 %v2774
    %3017 = vmatmul.mubr.bf16.gmra.mxu0 %v2773
    %v3018 = vpop.f32.mrf.mxu0
    %v3019 = vadd.f32 %v2906, %v3018
    %v3020 = vpop.f32.mrf.mxu0
    %v3021 = vadd.f32 %v2908, %v3020
    %v3022 = vpop.f32.mrf.mxu0
    %v3023 = vadd.f32 %v2910, %v3022
    %v3024 = vpop.f32.mrf.mxu0
    %v3025 = vadd.f32 %v2912, %v3024
    %3026 = vmatprep.mubr.bf16.mxu0 %v2778
    %3027 = vmatmul.mubr.bf16.gmra.mxu0 %v2777
    %v3028 = vpop.f32.mrf.mxu0
    %v3029 = vadd.f32 %v2916, %v3028
    %v3030 = vpop.f32.mrf.mxu0
    %v3031 = vadd.f32 %v2918, %v3030
    %v3032 = vpop.f32.mrf.mxu0
    %v3033 = vadd.f32 %v2920, %v3032
    %v3034 = vpop.f32.mrf.mxu0
    %v3035 = vadd.f32 %v2922, %v3034
    %3036 = vdwg.mxu0
    %3037 = vmatprep.subr.bf16.mxu0 %v2458
    %3038 = vmatpush1.bf16.msra.mxu0 %v2457
    %3039 = vmatprep.subr.bf16.mxu0 %v2454
    %3040 = vmatpush1.bf16.msra.mxu0 %v2453
    %3041 = vmatprep.subr.bf16.mxu0 %v2450
    %3042 = vmatpush1.bf16.msra.mxu0 %v2449
    %3043 = vmatprep.subr.bf16.mxu0 %v2446
    %3044 = vmatpush1.bf16.msra.mxu0 %v2445
    %3045 = vmatprep.subr.bf16.mxu0 %v2442
    %3046 = vmatpush1.bf16.msra.mxu0 %v2441
    %3047 = vmatprep.subr.bf16.mxu0 %v2438
    %3048 = vmatpush1.bf16.msra.mxu0 %v2437
    %3049 = vmatprep.subr.bf16.mxu0 %v2434
    %3050 = vmatpush1.bf16.msra.mxu0 %v2433
    %3051 = vmatprep.subr.bf16.mxu0 %v2430
    %3052 = vmatpush1.bf16.msra.mxu0 %v2429
    %3053 = vmatprep.subr.bf16.mxu0 %v2490
    %3054 = vmatpush2.bf16.msra.mxu0 %v2489
    %3055 = vmatprep.subr.bf16.mxu0 %v2486
    %3056 = vmatpush2.bf16.msra.mxu0 %v2485
    %3057 = vmatprep.subr.bf16.mxu0 %v2482
    %3058 = vmatpush2.bf16.msra.mxu0 %v2481
    %3059 = vmatprep.subr.bf16.mxu0 %v2478
    %3060 = vmatpush2.bf16.msra.mxu0 %v2477
    %3061 = vmatprep.subr.bf16.mxu0 %v2474
    %3062 = vmatpush2.bf16.msra.mxu0 %v2473
    %3063 = vmatprep.subr.bf16.mxu0 %v2470
    %3064 = vmatpush2.bf16.msra.mxu0 %v2469
    %3065 = vmatprep.subr.bf16.mxu0 %v2466
    %3066 = vmatpush2.bf16.msra.mxu0 %v2465
    %3067 = vmatprep.subr.bf16.mxu0 %v2462
    %3068 = vmatpush2.bf16.msra.mxu0 %v2461
    %3069 = vmatprep.mubr.bf16.mxu0 %v2748
    %3070 = vmatmul.mubr.bf16.gmra.mxu0 %v2747
    %v3071 = vpop.f32.mrf.mxu0
    %v3072 = vadd.f32 %v2574, %v3071
    %v3073 = vpop.f32.mrf.mxu0
    %v3074 = vadd.f32 %v2574, %v3073
    %v3075 = vpop.f32.mrf.mxu0
    %v3076 = vadd.f32 %v2579, %v3075
    %v3077 = vpop.f32.mrf.mxu0
    %v3078 = vadd.f32 %v2579, %v3077
    %3079 = vmatprep.mubr.bf16.mxu0 %v2752
    %3080 = vmatmul.mubr.bf16.gmra.mxu0 %v2751
    %v3081 = vpop.f32.mrf.mxu0
    %v3082 = vadd.f32 %v2584, %v3081
    %v3083 = vpop.f32.mrf.mxu0
    %v3084 = vadd.f32 %v2584, %v3083
    %v3085 = vpop.f32.mrf.mxu0
    %v3086 = vadd.f32 %v2589, %v3085
    %v3087 = vpop.f32.mrf.mxu0
    %v3088 = vadd.f32 %v2589, %v3087
    %3089 = vmatprep.mubr.bf16.mxu0 %v2756
    %3090 = vmatmul.mubr.bf16.gmra.mxu0 %v2755
    %v3091 = vpop.f32.mrf.mxu0
    %v3092 = vadd.f32 %v2594, %v3091
    %v3093 = vpop.f32.mrf.mxu0
    %v3094 = vadd.f32 %v2594, %v3093
    %v3095 = vpop.f32.mrf.mxu0
    %v3096 = vadd.f32 %v2599, %v3095
    %v3097 = vpop.f32.mrf.mxu0
    %v3098 = vadd.f32 %v2599, %v3097
    %3099 = vmatprep.mubr.bf16.mxu0 %v2760
    %3100 = vmatmul.mubr.bf16.gmra.mxu0 %v2759
    %v3101 = vpop.f32.mrf.mxu0
    %v3102 = vadd.f32 %v2604, %v3101
    %v3103 = vpop.f32.mrf.mxu0
    %v3104 = vadd.f32 %v2604, %v3103
    %v3105 = vpop.f32.mrf.mxu0
    %v3106 = vadd.f32 %v2609, %v3105
    %v3107 = vpop.f32.mrf.mxu0
    %v3108 = vadd.f32 %v2609, %v3107
    %3109 = vmatprep.mubr.bf16.mxu0 %v2764
    %3110 = vmatmul.mubr.bf16.gmra.mxu0 %v2763
    %v3111 = vpop.f32.mrf.mxu0
    %v3112 = vadd.f32 %v2614, %v3111
    %v3113 = vpop.f32.mrf.mxu0
    %v3114 = vadd.f32 %v2614, %v3113
    %v3115 = vpop.f32.mrf.mxu0
    %v3116 = vadd.f32 %v2619, %v3115
    %v3117 = vpop.f32.mrf.mxu0
    %v3118 = vadd.f32 %v2619, %v3117
    %3119 = vmatprep.mubr.bf16.mxu0 %v2768
    %3120 = vmatmul.mubr.bf16.gmra.mxu0 %v2767
    %v3121 = vpop.f32.mrf.mxu0
    %v3122 = vadd.f32 %v2624, %v3121
    %v3123 = vpop.f32.mrf.mxu0
    %v3124 = vadd.f32 %v2624, %v3123
    %v3125 = vpop.f32.mrf.mxu0
    %v3126 = vadd.f32 %v2629, %v3125
    %v3127 = vpop.f32.mrf.mxu0
    %v3128 = vadd.f32 %v2629, %v3127
    %3129 = vmatprep.mubr.bf16.mxu0 %v2772
    %3130 = vmatmul.mubr.bf16.gmra.mxu0 %v2771
    %v3131 = vpop.f32.mrf.mxu0
    %v3132 = vadd.f32 %v2634, %v3131
    %v3133 = vpop.f32.mrf.mxu0
    %v3134 = vadd.f32 %v2634, %v3133
    %v3135 = vpop.f32.mrf.mxu0
    %v3136 = vadd.f32 %v2639, %v3135
    %v3137 = vpop.f32.mrf.mxu0
    %v3138 = vadd.f32 %v2639, %v3137
    %3139 = vmatprep.mubr.bf16.mxu0 %v2776
    %3140 = vmatmul.mubr.bf16.gmra.mxu0 %v2775
    %v3141 = vpop.f32.mrf.mxu0
    %v3142 = vadd.f32 %v2644, %v3141
    %v3143 = vpop.f32.mrf.mxu0
    %v3144 = vadd.f32 %v2644, %v3143
    %v3145 = vpop.f32.mrf.mxu0
    %v3146 = vadd.f32 %v2649, %v3145
    %v3147 = vpop.f32.mrf.mxu0
    %v3148 = vadd.f32 %v2649, %v3147
    %3149 = vdwg.mxu0
    %3150 = vmatprep.subr.bf16.mxu0 %v2522
    %3151 = vmatpush1.bf16.msra.mxu0 %v2521
    %3152 = vmatprep.subr.bf16.mxu0 %v2518
    %3153 = vmatpush1.bf16.msra.mxu0 %v2517
    %3154 = vmatprep.subr.bf16.mxu0 %v2514
    %3155 = vmatpush1.bf16.msra.mxu0 %v2513
    %3156 = vmatprep.subr.bf16.mxu0 %v2510
    %3157 = vmatpush1.bf16.msra.mxu0 %v2509
    %3158 = vmatprep.subr.bf16.mxu0 %v2506
    %3159 = vmatpush1.bf16.msra.mxu0 %v2505
    %3160 = vmatprep.subr.bf16.mxu0 %v2502
    %3161 = vmatpush1.bf16.msra.mxu0 %v2501
    %3162 = vmatprep.subr.bf16.mxu0 %v2498
    %3163 = vmatpush1.bf16.msra.mxu0 %v2497
    %3164 = vmatprep.subr.bf16.mxu0 %v2494
    %3165 = vmatpush1.bf16.msra.mxu0 %v2493
    %3166 = vmatprep.subr.bf16.mxu0 %v2554
    %3167 = vmatpush2.bf16.msra.mxu0 %v2553
    %3168 = vmatprep.subr.bf16.mxu0 %v2550
    %3169 = vmatpush2.bf16.msra.mxu0 %v2549
    %3170 = vmatprep.subr.bf16.mxu0 %v2546
    %3171 = vmatpush2.bf16.msra.mxu0 %v2545
    %3172 = vmatprep.subr.bf16.mxu0 %v2542
    %3173 = vmatpush2.bf16.msra.mxu0 %v2541
    %3174 = vmatprep.subr.bf16.mxu0 %v2538
    %3175 = vmatpush2.bf16.msra.mxu0 %v2537
    %3176 = vmatprep.subr.bf16.mxu0 %v2534
    %3177 = vmatpush2.bf16.msra.mxu0 %v2533
    %3178 = vmatprep.subr.bf16.mxu0 %v2530
    %3179 = vmatpush2.bf16.msra.mxu0 %v2529
    %3180 = vmatprep.subr.bf16.mxu0 %v2526
    %3181 = vmatpush2.bf16.msra.mxu0 %v2525
    %3182 = vmatprep.mubr.bf16.mxu0 %v2750
    %3183 = vmatmul.mubr.bf16.gmra.mxu0 %v2749
    %v3184 = vpop.f32.mrf.mxu0
    %v3185 = vadd.f32 %v3072, %v3184
    %v3186 = vpop.f32.mrf.mxu0
    %v3187 = vadd.f32 %v3074, %v3186
    %v3188 = vpop.f32.mrf.mxu0
    %v3189 = vadd.f32 %v3076, %v3188
    %v3190 = vpop.f32.mrf.mxu0
    %v3191 = vadd.f32 %v3078, %v3190
    %3192 = vmatprep.mubr.bf16.mxu0 %v2754
    %3193 = vmatmul.mubr.bf16.gmra.mxu0 %v2753
    %v3194 = vpop.f32.mrf.mxu0
    %v3195 = vadd.f32 %v3082, %v3194
    %v3196 = vpop.f32.mrf.mxu0
    %v3197 = vadd.f32 %v3084, %v3196
    %v3198 = vpop.f32.mrf.mxu0
    %v3199 = vadd.f32 %v3086, %v3198
    %v3200 = vpop.f32.mrf.mxu0
    %v3201 = vadd.f32 %v3088, %v3200
    %3202 = vmatprep.mubr.bf16.mxu0 %v2758
    %3203 = vmatmul.mubr.bf16.gmra.mxu0 %v2757
    %v3204 = vpop.f32.mrf.mxu0
    %v3205 = vadd.f32 %v3092, %v3204
    %v3206 = vpop.f32.mrf.mxu0
    %v3207 = vadd.f32 %v3094, %v3206
    %v3208 = vpop.f32.mrf.mxu0
    %v3209 = vadd.f32 %v3096, %v3208
    %v3210 = vpop.f32.mrf.mxu0
    %v3211 = vadd.f32 %v3098, %v3210
    %3212 = vmatprep.mubr.bf16.mxu0 %v2762
    %3213 = vmatmul.mubr.bf16.gmra.mxu0 %v2761
    %v3214 = vpop.f32.mrf.mxu0
    %v3215 = vadd.f32 %v3102, %v3214
    %v3216 = vpop.f32.mrf.mxu0
    %v3217 = vadd.f32 %v3104, %v3216
    %v3218 = vpop.f32.mrf.mxu0
    %v3219 = vadd.f32 %v3106, %v3218
    %v3220 = vpop.f32.mrf.mxu0
    %v3221 = vadd.f32 %v3108, %v3220
    %3222 = vmatprep.mubr.bf16.mxu0 %v2766
    %3223 = vmatmul.mubr.bf16.gmra.mxu0 %v2765
    %v3224 = vpop.f32.mrf.mxu0
    %v3225 = vadd.f32 %v3112, %v3224
    %v3226 = vpop.f32.mrf.mxu0
    %v3227 = vadd.f32 %v3114, %v3226
    %v3228 = vpop.f32.mrf.mxu0
    %v3229 = vadd.f32 %v3116, %v3228
    %v3230 = vpop.f32.mrf.mxu0
    %v3231 = vadd.f32 %v3118, %v3230
    %3232 = vmatprep.mubr.bf16.mxu0 %v2770
    %3233 = vmatmul.mubr.bf16.gmra.mxu0 %v2769
    %v3234 = vpop.f32.mrf.mxu0
    %v3235 = vadd.f32 %v3122, %v3234
    %v3236 = vpop.f32.mrf.mxu0
    %v3237 = vadd.f32 %v3124, %v3236
    %v3238 = vpop.f32.mrf.mxu0
    %v3239 = vadd.f32 %v3126, %v3238
    %v3240 = vpop.f32.mrf.mxu0
    %v3241 = vadd.f32 %v3128, %v3240
    %3242 = vmatprep.mubr.bf16.mxu0 %v2774
    %3243 = vmatmul.mubr.bf16.gmra.mxu0 %v2773
    %v3244 = vpop.f32.mrf.mxu0
    %v3245 = vadd.f32 %v3132, %v3244
    %v3246 = vpop.f32.mrf.mxu0
    %v3247 = vadd.f32 %v3134, %v3246
    %v3248 = vpop.f32.mrf.mxu0
    %v3249 = vadd.f32 %v3136, %v3248
    %v3250 = vpop.f32.mrf.mxu0
    %v3251 = vadd.f32 %v3138, %v3250
    %3252 = vmatprep.mubr.bf16.mxu0 %v2778
    %3253 = vmatmul.mubr.bf16.gmra.mxu0 %v2777
    %v3254 = vpop.f32.mrf.mxu0
    %v3255 = vadd.f32 %v3142, %v3254
    %v3256 = vpop.f32.mrf.mxu0
    %v3257 = vadd.f32 %v3144, %v3256
    %v3258 = vpop.f32.mrf.mxu0
    %v3259 = vadd.f32 %v3146, %v3258
    %v3260 = vpop.f32.mrf.mxu0
    %v3261 = vadd.f32 %v3148, %v3260
    %3262 = vdwg.mxu0
    %v3263 = vmul.f32 %v2959, 0.01
    %v3264 = vmul.f32 %v2961, 0.01
    %v3265 = vmul.f32 %v3185, 0.01
    %v3266 = vmul.f32 %v3187, 0.01
    %v3267 = vmul.f32 %v2963, 0.01
    %v3268 = vmul.f32 %v2965, 0.01
    %v3269 = vmul.f32 %v3189, 0.01
    %v3270 = vmul.f32 %v3191, 0.01
    %v3271 = vmul.f32 %v2969, 0.01
    %v3272 = vmul.f32 %v2971, 0.01
    %v3273 = vmul.f32 %v3195, 0.01
    %v3274 = vmul.f32 %v3197, 0.01
    %v3275 = vmul.f32 %v2973, 0.01
    %v3276 = vmul.f32 %v2975, 0.01
    %v3277 = vmul.f32 %v3199, 0.01
    %v3278 = vmul.f32 %v3201, 0.01
    %v3279 = vmul.f32 %v2979, 0.01
    %v3280 = vmul.f32 %v2981, 0.01
    %v3281 = vmul.f32 %v3205, 0.01
    %v3282 = vmul.f32 %v3207, 0.01
    %v3283 = vmul.f32 %v2983, 0.01
    %v3284 = vmul.f32 %v2985, 0.01
    %v3285 = vmul.f32 %v3209, 0.01
    %v3286 = vmul.f32 %v3211, 0.01
    %v3287 = vmul.f32 %v2989, 0.01
    %v3288 = vmul.f32 %v2991, 0.01
    %v3289 = vmul.f32 %v3215, 0.01
    %v3290 = vmul.f32 %v3217, 0.01
    %v3291 = vmul.f32 %v2993, 0.01
    %v3292 = vmul.f32 %v2995, 0.01
    %v3293 = vmul.f32 %v3219, 0.01
    %v3294 = vmul.f32 %v3221, 0.01
    %v3295 = vmul.f32 %v2999, 0.01
    %v3296 = vmul.f32 %v3001, 0.01
    %v3297 = vmul.f32 %v3225, 0.01
    %v3298 = vmul.f32 %v3227, 0.01
    %v3299 = vmul.f32 %v3003, 0.01
    %v3300 = vmul.f32 %v3005, 0.01
    %v3301 = vmul.f32 %v3229, 0.01
    %v3302 = vmul.f32 %v3231, 0.01
    %v3303 = vmul.f32 %v3009, 0.01
    %v3304 = vmul.f32 %v3011, 0.01
    %v3305 = vmul.f32 %v3235, 0.01
    %v3306 = vmul.f32 %v3237, 0.01
    %v3307 = vmul.f32 %v3013, 0.01
    %v3308 = vmul.f32 %v3015, 0.01
    %v3309 = vmul.f32 %v3239, 0.01
    %v3310 = vmul.f32 %v3241, 0.01
    %v3311 = vmul.f32 %v3019, 0.01
    %v3312 = vmul.f32 %v3021, 0.01
    %v3313 = vmul.f32 %v3245, 0.01
    %v3314 = vmul.f32 %v3247, 0.01
    %v3315 = vmul.f32 %v3023, 0.01
    %v3316 = vmul.f32 %v3025, 0.01
    %v3317 = vmul.f32 %v3249, 0.01
    %v3318 = vmul.f32 %v3251, 0.01
    %v3319 = vmul.f32 %v3029, 0.01
    %v3320 = vmul.f32 %v3031, 0.01
    %v3321 = vmul.f32 %v3255, 0.01
    %v3322 = vmul.f32 %v3257, 0.01
    %v3323 = vmul.f32 %v3033, 0.01
    %v3324 = vmul.f32 %v3035, 0.01
    %v3325 = vmul.f32 %v3259, 0.01
    %v3326 = vmul.f32 %v3261, 0.01
    %v3327 = vmax.f32 %v2959, %v3263
    %v3328 = vmax.f32 %v2961, %v3264
    %v3329 = vmax.f32 %v3185, %v3265
    %v3330 = vmax.f32 %v3187, %v3266
    %v3331 = vmax.f32 %v2963, %v3267
    %v3332 = vmax.f32 %v2965, %v3268
    %v3333 = vmax.f32 %v3189, %v3269
    %v3334 = vmax.f32 %v3191, %v3270
    %v3335 = vmax.f32 %v2969, %v3271
    %v3336 = vmax.f32 %v2971, %v3272
    %v3337 = vmax.f32 %v3195, %v3273
    %v3338 = vmax.f32 %v3197, %v3274
    %v3339 = vmax.f32 %v2973, %v3275
    %v3340 = vmax.f32 %v2975, %v3276
    %v3341 = vmax.f32 %v3199, %v3277
    %v3342 = vmax.f32 %v3201, %v3278
    %v3343 = vmax.f32 %v2979, %v3279
    %v3344 = vmax.f32 %v2981, %v3280
    %v3345 = vmax.f32 %v3205, %v3281
    %v3346 = vmax.f32 %v3207, %v3282
    %v3347 = vmax.f32 %v2983, %v3283
    %v3348 = vmax.f32 %v2985, %v3284
    %v3349 = vmax.f32 %v3209, %v3285
    %v3350 = vmax.f32 %v3211, %v3286
    %v3351 = vmax.f32 %v2989, %v3287
    %v3352 = vmax.f32 %v2991, %v3288
    %v3353 = vmax.f32 %v3215, %v3289
    %v3354 = vmax.f32 %v3217, %v3290
    %v3355 = vmax.f32 %v2993, %v3291
    %v3356 = vmax.f32 %v2995, %v3292
    %v3357 = vmax.f32 %v3219, %v3293
    %v3358 = vmax.f32 %v3221, %v3294
    %v3359 = vmax.f32 %v2999, %v3295
    %v3360 = vmax.f32 %v3001, %v3296
    %v3361 = vmax.f32 %v3225, %v3297
    %v3362 = vmax.f32 %v3227, %v3298
    %v3363 = vmax.f32 %v3003, %v3299
    %v3364 = vmax.f32 %v3005, %v3300
    %v3365 = vmax.f32 %v3229, %v3301
    %v3366 = vmax.f32 %v3231, %v3302
    %v3367 = vmax.f32 %v3009, %v3303
    %v3368 = vmax.f32 %v3011, %v3304
    %v3369 = vmax.f32 %v3235, %v3305
    %v3370 = vmax.f32 %v3237, %v3306
    %v3371 = vmax.f32 %v3013, %v3307
    %v3372 = vmax.f32 %v3015, %v3308
    %v3373 = vmax.f32 %v3239, %v3309
    %v3374 = vmax.f32 %v3241, %v3310
    %v3375 = vmax.f32 %v3019, %v3311
    %v3376 = vmax.f32 %v3021, %v3312
    %v3377 = vmax.f32 %v3245, %v3313
    %v3378 = vmax.f32 %v3247, %v3314
    %v3379 = vmax.f32 %v3023, %v3315
    %v3380 = vmax.f32 %v3025, %v3316
    %v3381 = vmax.f32 %v3249, %v3317
    %v3382 = vmax.f32 %v3251, %v3318
    %v3383 = vmax.f32 %v3029, %v3319
    %v3384 = vmax.f32 %v3031, %v3320
    %v3385 = vmax.f32 %v3255, %v3321
    %v3386 = vmax.f32 %v3257, %v3322
    %v3387 = vmax.f32 %v3033, %v3323
    %v3388 = vmax.f32 %v3035, %v3324
    %v3389 = vmax.f32 %v3259, %v3325
    %v3390 = vmax.f32 %v3261, %v3326
    %v3391 = vld [vmem:[%s7] sm:$0xff]
    %v3392 = vld [vmem:[%s7 + $0x8] sm:$0xff]
    %v3393 = vld [vmem:[%s7 + $0x10] sm:$0xff]
    %v3394 = vld [vmem:[%s7 + $0x18] sm:$0xff]
    %v3395 = vld [vmem:[%s7 + $0x20] sm:$0xff]
    %v3396 = vld [vmem:[%s7 + $0x28] sm:$0xff]
    %v3397 = vld [vmem:[%s7 + $0x30] sm:$0xff]
    %v3398 = vld [vmem:[%s7 + $0x38] sm:$0xff]
    %v3399 = vld [vmem:[%s7 + $0x40] sm:$0xff]
    %v3400 = vld [vmem:[%s7 + $0x48] sm:$0xff]
    %v3401 = vld [vmem:[%s7 + $0x50] sm:$0xff]
    %v3402 = vld [vmem:[%s7 + $0x58] sm:$0xff]
    %v3403 = vld [vmem:[%s7 + $0x60] sm:$0xff]
    %v3404 = vld [vmem:[%s7 + $0x68] sm:$0xff]
    %v3405 = vld [vmem:[%s7 + $0x70] sm:$0xff]
    %v3406 = vld [vmem:[%s7 + $0x78] sm:$0xff]
    %3408 = vset.pattern.permute.xlu0 0
    %3409 = vperm.xlu0 %3408, %v3391
    %v3410 = vpop.permute.xlu0 %3409
    %3413 = vset.pattern.permute.xlu0 0
    %3414 = vperm.xlu0 %3413, %v3392
    %v3415 = vpop.permute.xlu0 %3414
    %3418 = vset.pattern.permute.xlu0 0
    %3419 = vperm.xlu0 %3418, %v3393
    %v3420 = vpop.permute.xlu0 %3419
    %3423 = vset.pattern.permute.xlu0 0
    %3424 = vperm.xlu0 %3423, %v3394
    %v3425 = vpop.permute.xlu0 %3424
    %3428 = vset.pattern.permute.xlu0 0
    %3429 = vperm.xlu0 %3428, %v3395
    %v3430 = vpop.permute.xlu0 %3429
    %3433 = vset.pattern.permute.xlu0 0
    %3434 = vperm.xlu0 %3433, %v3396
    %v3435 = vpop.permute.xlu0 %3434
    %3438 = vset.pattern.permute.xlu0 0
    %3439 = vperm.xlu0 %3438, %v3397
    %v3440 = vpop.permute.xlu0 %3439
    %3443 = vset.pattern.permute.xlu0 0
    %3444 = vperm.xlu0 %3443, %v3398
    %v3445 = vpop.permute.xlu0 %3444
    %3448 = vset.pattern.permute.xlu0 0
    %3449 = vperm.xlu0 %3448, %v3399
    %v3450 = vpop.permute.xlu0 %3449
    %3453 = vset.pattern.permute.xlu0 0
    %3454 = vperm.xlu0 %3453, %v3400
    %v3455 = vpop.permute.xlu0 %3454
    %3458 = vset.pattern.permute.xlu0 0
    %3459 = vperm.xlu0 %3458, %v3401
    %v3460 = vpop.permute.xlu0 %3459
    %3463 = vset.pattern.permute.xlu0 0
    %3464 = vperm.xlu0 %3463, %v3402
    %v3465 = vpop.permute.xlu0 %3464
    %3468 = vset.pattern.permute.xlu0 0
    %3469 = vperm.xlu0 %3468, %v3403
    %v3470 = vpop.permute.xlu0 %3469
    %3473 = vset.pattern.permute.xlu0 0
    %3474 = vperm.xlu0 %3473, %v3404
    %v3475 = vpop.permute.xlu0 %3474
    %3478 = vset.pattern.permute.xlu0 0
    %3479 = vperm.xlu0 %3478, %v3405
    %v3480 = vpop.permute.xlu0 %3479
    %3483 = vset.pattern.permute.xlu0 0
    %3484 = vperm.xlu0 %3483, %v3406
    %v3485 = vpop.permute.xlu0 %3484
    %v3487 = vmul.f32 %v3410, %v3327
    %v3488 = vmul.f32 %v3410, %v3328
    %v3489 = vmul.f32 %v3410, %v3329
    %v3490 = vmul.f32 %v3410, %v3330
    %v3491 = vmul.f32 %v3415, %v3331
    %v3492 = vmul.f32 %v3415, %v3332
    %v3493 = vmul.f32 %v3415, %v3333
    %v3494 = vmul.f32 %v3415, %v3334
    %v3495 = vmul.f32 %v3420, %v3335
    %v3496 = vmul.f32 %v3420, %v3336
    %v3497 = vmul.f32 %v3420, %v3337
    %v3498 = vmul.f32 %v3420, %v3338
    %v3499 = vmul.f32 %v3425, %v3339
    %v3500 = vmul.f32 %v3425, %v3340
    %v3501 = vmul.f32 %v3425, %v3341
    %v3502 = vmul.f32 %v3425, %v3342
    %v3503 = vmul.f32 %v3430, %v3343
    %v3504 = vmul.f32 %v3430, %v3344
    %v3505 = vmul.f32 %v3430, %v3345
    %v3506 = vmul.f32 %v3430, %v3346
    %v3507 = vmul.f32 %v3435, %v3347
    %v3508 = vmul.f32 %v3435, %v3348
    %v3509 = vmul.f32 %v3435, %v3349
    %v3510 = vmul.f32 %v3435, %v3350
    %v3511 = vmul.f32 %v3440, %v3351
    %v3512 = vmul.f32 %v3440, %v3352
    %v3513 = vmul.f32 %v3440, %v3353
    %v3514 = vmul.f32 %v3440, %v3354
    %v3515 = vmul.f32 %v3445, %v3355
    %v3516 = vmul.f32 %v3445, %v3356
    %v3517 = vmul.f32 %v3445, %v3357
    %v3518 = vmul.f32 %v3445, %v3358
    %v3519 = vmul.f32 %v3450, %v3359
    %v3520 = vmul.f32 %v3450, %v3360
    %v3521 = vmul.f32 %v3450, %v3361
    %v3522 = vmul.f32 %v3450, %v3362
    %v3523 = vmul.f32 %v3455, %v3363
    %v3524 = vmul.f32 %v3455, %v3364
    %v3525 = vmul.f32 %v3455, %v3365
    %v3526 = vmul.f32 %v3455, %v3366
    %v3527 = vmul.f32 %v3460, %v3367
    %v3528 = vmul.f32 %v3460, %v3368
    %v3529 = vmul.f32 %v3460, %v3369
    %v3530 = vmul.f32 %v3460, %v3370
    %v3531 = vmul.f32 %v3465, %v3371
    %v3532 = vmul.f32 %v3465, %v3372
    %v3533 = vmul.f32 %v3465, %v3373
    %v3534 = vmul.f32 %v3465, %v3374
    %v3535 = vmul.f32 %v3470, %v3375
    %v3536 = vmul.f32 %v3470, %v3376
    %v3537 = vmul.f32 %v3470, %v3377
    %v3538 = vmul.f32 %v3470, %v3378
    %v3539 = vmul.f32 %v3475, %v3379
    %v3540 = vmul.f32 %v3475, %v3380
    %v3541 = vmul.f32 %v3475, %v3381
    %v3542 = vmul.f32 %v3475, %v3382
    %v3543 = vmul.f32 %v3480, %v3383
    %v3544 = vmul.f32 %v3480, %v3384
    %v3545 = vmul.f32 %v3480, %v3385
    %v3546 = vmul.f32 %v3480, %v3386
    %v3547 = vmul.f32 %v3485, %v3387
    %v3548 = vmul.f32 %v3485, %v3388
    %v3549 = vmul.f32 %v3485, %v3389
    %v3550 = vmul.f32 %v3485, %v3390
    %v3551 = vadd.f32 %v3487, %v3491
    %v3552 = vadd.f32 %v3551, %v3495
    %v3553 = vadd.f32 %v3552, %v3499
    %v3554 = vadd.f32 %v3553, %v3503
    %v3555 = vadd.f32 %v3554, %v3507
    %v3556 = vadd.f32 %v3555, %v3511
    %v3557 = vadd.f32 %v3556, %v3515
    %v3558 = vadd.f32 %v3557, %v3519
    %v3559 = vadd.f32 %v3558, %v3523
    %v3560 = vadd.f32 %v3559, %v3527
    %v3561 = vadd.f32 %v3560, %v3531
    %v3562 = vadd.f32 %v3561, %v3535
    %v3563 = vadd.f32 %v3562, %v3539
    %v3564 = vadd.f32 %v3563, %v3543
    %v3565 = vadd.f32 %v3564, %v3547
    %v3566 = vrot.slane %v3565, 4
    %v3567 = vadd.f32 %v3565, %v3566
    %v3568 = vrot.slane %v3567, 2
    %v3569 = vadd.f32 %v3567, %v3568
    %v3570 = vrot.slane %v3569, 1
    %v3571 = vadd.f32 %v3569, %v3570
    %v3572 = vadd.f32 %v3488, %v3492
    %v3573 = vadd.f32 %v3572, %v3496
    %v3574 = vadd.f32 %v3573, %v3500
    %v3575 = vadd.f32 %v3574, %v3504
    %v3576 = vadd.f32 %v3575, %v3508
    %v3577 = vadd.f32 %v3576, %v3512
    %v3578 = vadd.f32 %v3577, %v3516
    %v3579 = vadd.f32 %v3578, %v3520
    %v3580 = vadd.f32 %v3579, %v3524
    %v3581 = vadd.f32 %v3580, %v3528
    %v3582 = vadd.f32 %v3581, %v3532
    %v3583 = vadd.f32 %v3582, %v3536
    %v3584 = vadd.f32 %v3583, %v3540
    %v3585 = vadd.f32 %v3584, %v3544
    %v3586 = vadd.f32 %v3585, %v3548
    %v3587 = vrot.slane %v3586, 4
    %v3588 = vadd.f32 %v3586, %v3587
    %v3589 = vrot.slane %v3588, 2
    %v3590 = vadd.f32 %v3588, %v3589
    %v3591 = vrot.slane %v3590, 1
    %v3592 = vadd.f32 %v3590, %v3591
    %v3593 = vadd.f32 %v3489, %v3493
    %v3594 = vadd.f32 %v3593, %v3497
    %v3595 = vadd.f32 %v3594, %v3501
    %v3596 = vadd.f32 %v3595, %v3505
    %v3597 = vadd.f32 %v3596, %v3509
    %v3598 = vadd.f32 %v3597, %v3513
    %v3599 = vadd.f32 %v3598, %v3517
    %v3600 = vadd.f32 %v3599, %v3521
    %v3601 = vadd.f32 %v3600, %v3525
    %v3602 = vadd.f32 %v3601, %v3529
    %v3603 = vadd.f32 %v3602, %v3533
    %v3604 = vadd.f32 %v3603, %v3537
    %v3605 = vadd.f32 %v3604, %v3541
    %v3606 = vadd.f32 %v3605, %v3545
    %v3607 = vadd.f32 %v3606, %v3549
    %v3608 = vrot.slane %v3607, 4
    %v3609 = vadd.f32 %v3607, %v3608
    %v3610 = vrot.slane %v3609, 2
    %v3611 = vadd.f32 %v3609, %v3610
    %v3612 = vrot.slane %v3611, 1
    %v3613 = vadd.f32 %v3611, %v3612
    %v3614 = vadd.f32 %v3490, %v3494
    %v3615 = vadd.f32 %v3614, %v3498
    %v3616 = vadd.f32 %v3615, %v3502
    %v3617 = vadd.f32 %v3616, %v3506
    %v3618 = vadd.f32 %v3617, %v3510
    %v3619 = vadd.f32 %v3618, %v3514
    %v3620 = vadd.f32 %v3619, %v3518
    %v3621 = vadd.f32 %v3620, %v3522
    %v3622 = vadd.f32 %v3621, %v3526
    %v3623 = vadd.f32 %v3622, %v3530
    %v3624 = vadd.f32 %v3623, %v3534
    %v3625 = vadd.f32 %v3624, %v3538
    %v3626 = vadd.f32 %v3625, %v3542
    %v3627 = vadd.f32 %v3626, %v3546
    %v3628 = vadd.f32 %v3627, %v3550
    %v3629 = vrot.slane %v3628, 4
    %v3630 = vadd.f32 %v3628, %v3629
    %v3631 = vrot.slane %v3630, 2
    %v3632 = vadd.f32 %v3630, %v3631
    %v3633 = vrot.slane %v3632, 1
    %v3634 = vadd.f32 %v3632, %v3633
    %s3635 = sld [smem:[#allocation2]]
    %v3636 = vstv %s3635
    %v3637 = vadd.f32 %v3571, %v3636
    %v3638 = vadd.f32 %v3592, %v3636
    %v3639 = vadd.f32 %v3613, %v3636
    %v3640 = vadd.f32 %v3634, %v3636
    %v3645 = vcombine.low %v3637, %v3638
    %v3646 = vcombine.low %v3639, %v3640
    %v3648 = vunpack.c.l.s4 1966171168
    %v3649 = vunpack.c.0.s8 %v3648
    %v3650 = vlaneseq
    %v3651 = vshrl.u32 %v3650, 7
    %v3652 = vsub.s32 %v3649, %v3651
    %v3653 = vrot.slane %v3645, %v3652
    %v3655 = vunpack.c.l.s4 1966171168
    %v3656 = vunpack.c.0.s8 %v3655
    %v3657 = vlaneseq
    %v3658 = vshrl.u32 %v3657, 7
    %v3659 = vsub.s32 %v3656, %v3658
    %v3660 = vrot.slane %v3646, %v3659
    %v3661 = vcombine.low %v3653, %v3660
    %v3663 = vunpack.c.l.s4 1966171168
    %v3664 = vunpack.c.0.s8 %v3663
    %v3665 = vlaneseq
    %v3666 = vshrl.u32 %v3665, 7
    %v3667 = vsub.s32 %v3664, %v3666
    %v3668 = vrot.slane %v3661, %v3667
    %v3670 = vlaneseq
    %vm3671 = vcmp.ge.s32.totalorder %v3670, 0
    %vm3672 = vcmp.lt.s32.totalorder %v3670, 512
    %vm3673 = vmand %vm3671, %vm3672
    %3674 = vst.msk [vmem:[#allocation3] sm:$0xf] %vm3673, %v3668
    // Predicated region
    $region38: #{tpu_custom_call.1} parent=1 // pred_check
      _
    $region39: #{tpu_custom_call.1} parent=1 // pred_check_branch
      %3676 = sbr.rel (0) target = $region41
    $region40: #{tpu_custom_call.1} parent=1 // pred_region
      %s3678 = ssub.s32 64, 64
      %3679 = vsyncadd [#allocation4], %s3678
      %s3681 = sshll.u32 [#allocation3], 4
      %s3682 = int_to_ptr.vmem [resolvable:$true] %s3681
      %3684 = dma.vmem_to_hbm [thread:$0]  %s3682, 64, %s9, [#allocation4]
    $region41: #{tpu_custom_call.1} parent=1 // pred_fallthru
      _
    // Predicated region
    $region42: #{tpu_custom_call.1} parent=1 // pred_check
      _
    $region43: #{tpu_custom_call.1} parent=1 // pred_check_branch
      %3686 = sbr.rel (0) target = $region45
    $region44: #{tpu_custom_call.1} parent=1 // pred_region
      %3687 = dma.done [#allocation4], 64
    $region45: #{tpu_custom_call.1} parent=1 // pred_fallthru
      _
    %3688 = vsyncpa [#allocation4], 1

</llo_original>
